<compile_context>
chip_gen: v6e
topology: v6e:2x2x1
jax: 0.10.0
libtpu: 0.0.40
codegen_flags: <defaults>
</compile_context>

<pallas_src>
import functools

import jax
import jax.numpy as jnp
from jax.experimental import pallas as pl
from jax.experimental.pallas import tpu as pltpu

EPS = 1e-5  # nn.LayerNorm default


def _layernorm(v, g, b):
    mu = jnp.mean(v, axis=-1, keepdims=True)
    var = jnp.mean((v - mu) ** 2, axis=-1, keepdims=True)
    return (v - mu) * jax.lax.rsqrt(var + EPS) * g + b


def _gelu_exact(x):
    # nn.GELU() default = exact (erf) formulation
    return 0.5 * x * (1.0 + jax.lax.erf(x / jnp.sqrt(2.0).astype(x.dtype)))


def block_tamparal_kernel(
    xkv_ref,                          # (1, N_pad, C) full (padded) sequence
    g1_ref, b1_ref,                   # LayerNorm1 (1, C)
    wq_ref, wk_ref, wv_ref,           # (nh, C, hd_pad) bf16
    projw_ref, projb_ref,             # (nh, hd_pad, C) bf16 / (1, C) f32
    g2_ref, b2_ref,                   # LayerNorm2 (1, C)
    fc1w_ref, fc1b_ref,               # (C, H) bf16 / (1, H) f32
    fc2w_ref, fc2b_ref,               # (H, C) bf16 / (1, C) f32
    o_ref,                            # (1, TQ, C)
    k_scr, v_scr,                     # VMEM scratch (nh, N_pad, hd_pad) bf16, resident
    acc_scr,                          # VMEM scratch (TQ, C) f32 (attn-proj accumulator)
    *,
    num_heads: int,
    valid_n: int,
):
    qi = pl.program_id(1)
    nh = num_heads
    TQ = o_ref.shape[1]
    N_pad = xkv_ref.shape[1]
    C = xkv_ref.shape[2]
    hd = C // nh
    scale = hd ** -0.5

    g1 = g1_ref[...]
    b1 = b1_ref[...]

    # ---- K/V for the full sequence: computed once per batch element, kept in
    # ---- VMEM scratch across all of its query tiles (flash-style residency). --
    @pl.when(qi == 0)
    def _():
        xkv = xkv_ref[0].astype(jnp.float32)                          # (N_pad, C)
        ln1_kv = _layernorm(xkv, g1, b1).astype(jnp.bfloat16)

        @pl.loop(0, nh, unroll=True)
        def _(h):
            k_scr[h] = jnp.dot(ln1_kv, wk_ref[h],
                               preferred_element_type=jnp.float32
                               ).astype(jnp.bfloat16)                 # (N_pad, hd_pad)
            v_scr[h] = jnp.dot(ln1_kv, wv_ref[h],
                               preferred_element_type=jnp.float32
                               ).astype(jnp.bfloat16)

    # ---- query / residual tile: sliced from the VMEM-resident sequence -------
    q_start = pl.multiple_of(qi * TQ, TQ)
    xq = xkv_ref[0, pl.ds(q_start, TQ), :].astype(jnp.float32)        # (TQ, C)
    ln1_q = _layernorm(xq, g1, b1).astype(jnp.bfloat16)

    acc_scr[...] = jnp.zeros_like(acc_scr)
    # contract last dims of both operands => q @ k^T with no explicit transpose
    dnums = (((1,), (1,)), ((), ()))

    @pl.loop(0, nh, unroll=True)
    def _(h):
        q_h = jnp.dot(ln1_q, wq_ref[h],
                      preferred_element_type=jnp.float32)             # (TQ, hd_pad)
        q_h = (q_h * scale).astype(jnp.bfloat16)                      # fold scale into q
        s = jax.lax.dot_general(q_h, k_scr[h], dnums,
                                preferred_element_type=jnp.float32)   # (TQ, N_pad)
        if valid_n < N_pad:  # static: mask padded keys
            kidx = jax.lax.broadcasted_iota(jnp.int32, s.shape, 1)
            s = jnp.where(kidx < valid_n, s, -1e30)
        s = s - jnp.max(s, axis=-1, keepdims=True)
        p = jnp.exp(s)
        p = p * pl.reciprocal(jnp.sum(p, axis=-1, keepdims=True), approx=True)
        ctx = jnp.dot(p.astype(jnp.bfloat16), v_scr[h],
                      preferred_element_type=jnp.float32)             # (TQ, hd_pad)
        # accumulate this head's slice of the output projection into VMEM scratch
        acc_scr[...] += jnp.dot(ctx.astype(jnp.bfloat16), projw_ref[h],
                                preferred_element_type=jnp.float32)

    x1 = xq + acc_scr[...] + projb_ref[...]                           # (TQ, C)

    # ---- MLP branch -----------------------------------------------------------
    ln2 = _layernorm(x1, g2_ref[...], b2_ref[...]).astype(jnp.bfloat16)
    h1 = jnp.dot(ln2, fc1w_ref[...],
                 preferred_element_type=jnp.float32) + fc1b_ref[...]  # (TQ, H)
    h1 = _gelu_exact(h1).astype(jnp.bfloat16)
    mlp = jnp.dot(h1, fc2w_ref[...],
                  preferred_element_type=jnp.float32) + fc2b_ref[...]

    o_ref[0] = (x1 + mlp).astype(o_ref.dtype)


def _const_spec(shape, index_map):
    """BlockSpec for a grid-invariant (or q-invariant) input, single-buffered."""
    if hasattr(pl, "Buffered"):
        try:
            return pl.BlockSpec(shape, index_map, pipeline_mode=pl.Buffered(1))
        except (TypeError, ValueError):
            pass
    return pl.BlockSpec(shape, index_map)


def block_tamparal(x, params, *, num_heads, q_tile=None):
    B, N, C = x.shape
    nh = num_heads
    assert C % nh == 0
    hd = C // nh
    H = params["fc1_w"].shape[1]

    # ---- query-tile size (generation aware; override via q_tile) -------------
    if q_tile is None:
        if N >= 128:
            big_mxu = True
            try:
                kind = jax.devices()[0].device_kind.lower()
                big_mxu = not any(v in kind for v in ("v2", "v3", "v4", "v5"))
            except Exception:
                pass
            q_tile = 256 if (big_mxu and N >= 256) else 128
        else:
            q_tile = -(-N // 8) * 8
    TQ = int(q_tile)
    assert TQ % 8 == 0 and TQ >= 8

    # ---- pad sequence length to a multiple of TQ; padded keys masked in-kernel
    N_pad = -(-N // TQ) * TQ
    x_in = x if N_pad == N else jnp.pad(x, ((0, 0), (0, N_pad - N), (0, 0)))
    NQ = N_pad // TQ

    # ---- pad head dim to a lane-dense multiple of 128 -------------------------
    hd_pad = -(-hd // 128) * 128

    bf = jnp.bfloat16
    qkv_w = params["qkv_w"]                                   # (C, 3C)

    def _head_split(w):                                       # (C, C) -> (nh, C, hd_pad)
        w = w.reshape(C, nh, hd).transpose(1, 0, 2)
        if hd_pad != hd:
            w = jnp.pad(w, ((0, 0), (0, 0), (0, hd_pad - hd)))
        return w.astype(bf)

    wq = _head_split(qkv_w[:, 0 * C:1 * C])
    wk = _head_split(qkv_w[:, 1 * C:2 * C])
    wv = _head_split(qkv_w[:, 2 * C:3 * C])
    wproj = params["proj_w"].reshape(nh, hd, C)
    if hd_pad != hd:
        wproj = jnp.pad(wproj, ((0, 0), (0, hd_pad - hd), (0, 0)))
    wproj = wproj.astype(bf)
    fc1_w = params["fc1_w"].astype(bf)
    fc2_w = params["fc2_w"].astype(bf)

    consts = [
        params["g1"], params["b1"],
        wq, wk, wv,
        wproj, params["proj_b"],
        params["g2"], params["b2"],
        fc1_w, params["fc1_b"],
        fc2_w, params["fc2_b"],
    ]

    in_specs = [_const_spec((1, N_pad, C), lambda b, q: (b, 0, 0))]  # q-invariant seq
    for a in consts:
        nd = a.ndim
        in_specs.append(_const_spec(a.shape, lambda b, q, _nd=nd: (0,) * _nd))

    # ---- VMEM budget: actual per-buffer sum + headroom, capped per chip gen ---
    xi = x.dtype.itemsize
    weight_bytes = sum(int(a.size) * a.dtype.itemsize for a in consts)
    io_bytes = N_pad * C * xi + 2 * TQ * C * xi               # seq (x1) + out tile (x2)
    scratch_bytes = 2 * nh * N_pad * hd_pad * 2 + TQ * C * 4
    act_bytes = 4 * (N_pad * C + 2 * TQ * H + TQ * N_pad + 5 * TQ * C) \
        + 2 * (N_pad * C + TQ * H)
    needed = weight_bytes + io_bytes + scratch_bytes + act_bytes
    try:
        cap = int(pltpu.get_tpu_info().vmem_capacity_bytes)
    except Exception:
        cap = 64 * 1024 * 1024                                # v7x-safe fallback
    vmem_limit = int(min(int(cap * 0.85),
                         max(32 * 1024 * 1024, int(needed * 1.5) + (4 << 20))))

    kernel = functools.partial(block_tamparal_kernel,
                               num_heads=num_heads, valid_n=N)
    out = pl.pallas_call(
        kernel,
        out_shape=jax.ShapeDtypeStruct((B, N_pad, C), x.dtype),
        grid=(B, NQ),
        in_specs=in_specs,
        out_specs=pl.BlockSpec((1, TQ, C), lambda b, q: (b, q, 0)),
        scratch_shapes=[
            pltpu.VMEM((nh, N_pad, hd_pad), jnp.bfloat16),   # K, resident per batch elem
            pltpu.VMEM((nh, N_pad, hd_pad), jnp.bfloat16),   # V, resident per batch elem
            pltpu.VMEM((TQ, C), jnp.float32),                # attn output-proj accumulator
        ],
        compiler_params=pltpu.CompilerParams(
            dimension_semantics=("parallel", "arbitrary"),
            vmem_limit_bytes=vmem_limit,
        ),
    )(x_in, *consts)
    if N_pad != N:
        out = out[:, :N, :]
    return out


def reference(x, params, *, num_heads):
    """Pure-JAX f32 reference matching the PyTorch module forward."""
    B, N, C = x.shape
    hd = C // num_heads
    scale = hd ** -0.5
    out = []
    for b in range(B):
        xb = x[b].astype(jnp.float32)
        ln1 = _layernorm(xb, params["g1"], params["b1"])
        qkv = ln1 @ params["qkv_w"]
        heads = []
        for h in range(num_heads):
            q = qkv[:, h * hd:(h + 1) * hd]
            k = qkv[:, C + h * hd: C + (h + 1) * hd]
            v = qkv[:, 2 * C + h * hd: 2 * C + (h + 1) * hd]
            p = jax.nn.softmax(q @ k.T * scale, axis=-1)
            heads.append(p @ v)
        a = jnp.concatenate(heads, axis=-1)
        x1 = xb + a @ params["proj_w"] + params["proj_b"]
        ln2 = _layernorm(x1, params["g2"], params["b2"])
        h1 = _gelu_exact(ln2 @ params["fc1_w"] + params["fc1_b"])
        out.append(x1 + h1 @ params["fc2_w"] + params["fc2_b"])
    return jnp.stack(out, axis=0).astype(x.dtype)


if __name__ == "__main__":
    B, C = 2, 32
    num_heads = 4
    mlp_ratio = 4.0
    H = int(C * mlp_ratio)

    key = jax.random.PRNGKey(0)
    ks = jax.random.split(key, 10)

    def init(k, shape, scale=0.05):
        return jax.random.normal(k, shape, dtype=jnp.float32) * scale

    params = {
        "g1": 1.0 + init(ks[0], (1, C)),
        "b1": init(ks[1], (1, C)),
        "qkv_w": init(ks[2], (C, 3 * C)),      # qkv_bias=False (module default)
        "proj_w": init(ks[3], (C, C)),
        "proj_b": init(ks[4], (1, C)),
        "g2": 1.0 + init(ks[5], (1, C)),
        "b2": init(ks[6], (1, C)),
        "fc1_w": init(ks[7], (C, H)),
        "fc1_b": init(ks[8], (1, H)),
        "fc2_w": init(ks[9], (H, C)),
        "fc2_b": jnp.zeros((1, C), dtype=jnp.float32),
    }

    # Test 1: N multiple of the tile -> grid (2, 2), exercises the resident-K/V
    # path (qi > 0) and the slice-from-resident-sequence query tiles.
    N = 16
    x = jax.random.normal(jax.random.PRNGKey(1), (B, N, C), dtype=jnp.float32)
    out = jax.block_until_ready(
        block_tamparal(x, params, num_heads=num_heads, q_tile=8))
    ref = reference(x, params, num_heads=num_heads)
    assert out.shape == (B, N, C)
    # bf16 matmul operands + approx reciprocal => looser tolerance vs f32 ref.
    assert jnp.allclose(out, ref, rtol=2e-2, atol=2e-2), (
        float(jnp.max(jnp.abs(out - ref))))

    # Test 2: ragged N (not a multiple of the tile) -> exercises sequence padding
    # and the padded-key softmax mask.
    N2 = 12
    x2 = jax.random.normal(jax.random.PRNGKey(2), (B, N2, C), dtype=jnp.float32)
    out2 = jax.block_until_ready(
        block_tamparal(x2, params, num_heads=num_heads, q_tile=8))
    ref2 = reference(x2, params, num_heads=num_heads)
    assert out2.shape == (B, N2, C)
    assert jnp.allclose(out2, ref2, rtol=2e-2, atol=2e-2), (
        float(jnp.max(jnp.abs(out2 - ref2))))

    print("KERNEL_OK")
</pallas_src>

<mosaic_0001>
module attributes {stable_mosaic.version = 11 : i64} {
  func.func @block_tamparal_kernel(%arg0: i32, %arg1: i32, %arg2: memref<1x16x32xf32, #tpu.memory_space<vmem>>, %arg3: memref<1x32xf32, #tpu.memory_space<vmem>>, %arg4: memref<1x32xf32, #tpu.memory_space<vmem>>, %arg5: memref<4x32x128xbf16, #tpu.memory_space<vmem>>, %arg6: memref<4x32x128xbf16, #tpu.memory_space<vmem>>, %arg7: memref<4x32x128xbf16, #tpu.memory_space<vmem>>, %arg8: memref<4x128x32xbf16, #tpu.memory_space<vmem>>, %arg9: memref<1x32xf32, #tpu.memory_space<vmem>>, %arg10: memref<1x32xf32, #tpu.memory_space<vmem>>, %arg11: memref<1x32xf32, #tpu.memory_space<vmem>>, %arg12: memref<32x128xbf16, #tpu.memory_space<vmem>>, %arg13: memref<1x128xf32, #tpu.memory_space<vmem>>, %arg14: memref<128x32xbf16, #tpu.memory_space<vmem>>, %arg15: memref<1x32xf32, #tpu.memory_space<vmem>>, %arg16: memref<1x8x32xf32, #tpu.memory_space<vmem>>, %arg17: memref<4x16x128xbf16, #tpu.memory_space<vmem>>, %arg18: memref<4x16x128xbf16, #tpu.memory_space<vmem>>, %arg19: memref<8x32xf32, #tpu.memory_space<vmem>>) attributes {dimension_semantics = [#tpu.dimension_semantics<parallel>, #tpu.dimension_semantics<arbitrary>], iteration_bounds = array<i64: 2, 2>, scalar_prefetch = 0 : i64, scratch_operands = 3 : i64, tpu.core_type = #tpu.core_type<tc>, window_params = [{pipeline_mode = #tpu.pipeline_mode<synchronous>, transform_indices = @transform_0, window_bounds = array<i64: 1, 16, 32>}, {pipeline_mode = #tpu.pipeline_mode<synchronous>, transform_indices = @transform_1, window_bounds = array<i64: 1, 32>}, {pipeline_mode = #tpu.pipeline_mode<synchronous>, transform_indices = @transform_2, window_bounds = array<i64: 1, 32>}, {pipeline_mode = #tpu.pipeline_mode<synchronous>, transform_indices = @transform_3, window_bounds = array<i64: 4, 32, 128>}, {pipeline_mode = #tpu.pipeline_mode<synchronous>, transform_indices = @transform_4, window_bounds = array<i64: 4, 32, 128>}, {pipeline_mode = #tpu.pipeline_mode<synchronous>, transform_indices = @transform_5, window_bounds = array<i64: 4, 32, 128>}, {pipeline_mode = #tpu.pipeline_mode<synchronous>, transform_indices = @transform_6, window_bounds = array<i64: 4, 128, 32>}, {pipeline_mode = #tpu.pipeline_mode<synchronous>, transform_indices = @transform_7, window_bounds = array<i64: 1, 32>}, {pipeline_mode = #tpu.pipeline_mode<synchronous>, transform_indices = @transform_8, window_bounds = array<i64: 1, 32>}, {pipeline_mode = #tpu.pipeline_mode<synchronous>, transform_indices = @transform_9, window_bounds = array<i64: 1, 32>}, {pipeline_mode = #tpu.pipeline_mode<synchronous>, transform_indices = @transform_10, window_bounds = array<i64: 32, 128>}, {pipeline_mode = #tpu.pipeline_mode<synchronous>, transform_indices = @transform_11, window_bounds = array<i64: 1, 128>}, {pipeline_mode = #tpu.pipeline_mode<synchronous>, transform_indices = @transform_12, window_bounds = array<i64: 128, 32>}, {pipeline_mode = #tpu.pipeline_mode<synchronous>, transform_indices = @transform_13, window_bounds = array<i64: 1, 32>}, {transform_indices = @transform_14, window_bounds = array<i64: 1, 8, 32>}]} {
    %c0 = arith.constant 0 : index
    %c0_0 = arith.constant 0 : index
    %0 = vector.load %arg3[%c0, %c0_0] : memref<1x32xf32, #tpu.memory_space<vmem>>, vector<1x32xf32>
    %c0_1 = arith.constant 0 : index
    %c0_2 = arith.constant 0 : index
    %1 = vector.load %arg4[%c0_1, %c0_2] : memref<1x32xf32, #tpu.memory_space<vmem>>, vector<1x32xf32>
    %c0_i32 = arith.constant 0 : i32
    %2 = arith.cmpi eq, %arg1, %c0_i32 : i32
    %3 = arith.extui %2 : i1 to i32
    %c0_i32_3 = arith.constant 0 : i32
    %4 = arith.cmpi ne, %3, %c0_i32_3 : i32
    scf.if %4 {
      %c0_127 = arith.constant 0 : index
      %c0_128 = arith.constant 0 : index
      %c0_129 = arith.constant 0 : index
      %233 = vector.load %arg2[%c0_127, %c0_128, %c0_129] : memref<1x16x32xf32, #tpu.memory_space<vmem>>, vector<1x16x32xf32>
      %234 = vector.shape_cast %233 : vector<1x16x32xf32> to vector<16x32xf32>
      %cst_130 = arith.constant dense<0.000000e+00> : vector<16xf32>
      %235 = vector.multi_reduction <add>, %234, %cst_130 [1] : vector<16x32xf32> to vector<16xf32>
      %236 = vector.shape_cast %235 : vector<16xf32> to vector<16x1xf32>
      %cst_131 = arith.constant 3.200000e+01 : f32
      %237 = vector.broadcast %cst_131 : f32 to vector<16x1xf32>
      %238 = arith.divf %236, %237 : vector<16x1xf32>
      %239 = vector.broadcast %238 : vector<16x1xf32> to vector<16x32xf32>
      %240 = arith.subf %234, %239 : vector<16x32xf32>
      %241 = arith.mulf %240, %240 : vector<16x32xf32>
      %cst_132 = arith.constant dense<0.000000e+00> : vector<16xf32>
      %242 = vector.multi_reduction <add>, %241, %cst_132 [1] : vector<16x32xf32> to vector<16xf32>
      %243 = vector.shape_cast %242 : vector<16xf32> to vector<16x1xf32>
      %cst_133 = arith.constant 3.200000e+01 : f32
      %244 = vector.broadcast %cst_133 : f32 to vector<16x1xf32>
      %245 = arith.divf %243, %244 : vector<16x1xf32>
      %246 = vector.broadcast %238 : vector<16x1xf32> to vector<16x32xf32>
      %247 = arith.subf %234, %246 : vector<16x32xf32>
      %cst_134 = arith.constant 9.99999974E-6 : f32
      %248 = vector.broadcast %cst_134 : f32 to vector<16x1xf32>
      %249 = arith.addf %245, %248 : vector<16x1xf32>
      %250 = math.rsqrt %249 : vector<16x1xf32>
      %251 = vector.broadcast %250 : vector<16x1xf32> to vector<16x32xf32>
      %252 = arith.mulf %247, %251 : vector<16x32xf32>
      %253 = vector.broadcast %0 : vector<1x32xf32> to vector<16x32xf32>
      %254 = arith.mulf %252, %253 : vector<16x32xf32>
      %255 = vector.broadcast %1 : vector<1x32xf32> to vector<16x32xf32>
      %256 = arith.addf %254, %255 : vector<16x32xf32>
      %257 = arith.truncf %256 : vector<16x32xf32> to vector<16x32xbf16>
      %c0_i32_135 = arith.constant 0 : i32
      %c1_i32_136 = arith.constant 1 : i32
      %258 = arith.muli %c0_i32_135, %c1_i32_136 : i32
      %c0_i32_137 = arith.constant 0 : i32
      %259 = arith.addi %c0_i32_137, %258 : i32
      %260 = arith.index_cast %259 : i32 to index
      %c0_138 = arith.constant 0 : index
      %c0_139 = arith.constant 0 : index
      %261 = vector.load %arg6[%260, %c0_138, %c0_139] : memref<4x32x128xbf16, #tpu.memory_space<vmem>>, vector<1x32x128xbf16>
      %262 = vector.shape_cast %261 : vector<1x32x128xbf16> to vector<32x128xbf16>
      %cst_140 = arith.constant dense<0.000000e+00> : vector<16x128xf32>
      %263 = tpu.matmul %257, %262, %cst_140 {dimension_numbers = #tpu.dot_dimension_numbers<[1], [0], [0], [1], [0, 0, 1, 1], [], []>} : vector<16x32xbf16>, vector<32x128xbf16>, vector<16x128xf32> -> vector<16x128xf32>
      %264 = arith.truncf %263 : vector<16x128xf32> to vector<16x128xbf16>
      %265 = arith.index_cast %259 : i32 to index
      %c0_141 = arith.constant 0 : index
      %c0_142 = arith.constant 0 : index
      %266 = vector.load %arg17[%265, %c0_141, %c0_142] : memref<4x16x128xbf16, #tpu.memory_space<vmem>>, vector<1x16x128xbf16>
      %267 = vector.shape_cast %266 : vector<1x16x128xbf16> to vector<16x128xbf16>
      %268 = vector.shape_cast %264 : vector<16x128xbf16> to vector<1x16x128xbf16>
      tpu.vector_store %arg17[%265, %c0_141, %c0_142], %268 {strides = array<i32>} : memref<4x16x128xbf16, #tpu.memory_space<vmem>>, vector<1x16x128xbf16>,
      %269 = arith.index_cast %259 : i32 to index
      %c0_143 = arith.constant 0 : index
      %c0_144 = arith.constant 0 : index
      %270 = vector.load %arg7[%269, %c0_143, %c0_144] : memref<4x32x128xbf16, #tpu.memory_space<vmem>>, vector<1x32x128xbf16>
      %271 = vector.shape_cast %270 : vector<1x32x128xbf16> to vector<32x128xbf16>
      %cst_145 = arith.constant dense<0.000000e+00> : vector<16x128xf32>
      %272 = tpu.matmul %257, %271, %cst_145 {dimension_numbers = #tpu.dot_dimension_numbers<[1], [0], [0], [1], [0, 0, 1, 1], [], []>} : vector<16x32xbf16>, vector<32x128xbf16>, vector<16x128xf32> -> vector<16x128xf32>
      %273 = arith.truncf %272 : vector<16x128xf32> to vector<16x128xbf16>
      %274 = arith.index_cast %259 : i32 to index
      %c0_146 = arith.constant 0 : index
      %c0_147 = arith.constant 0 : index
      %275 = vector.load %arg18[%274, %c0_146, %c0_147] : memref<4x16x128xbf16, #tpu.memory_space<vmem>>, vector<1x16x128xbf16>
      %276 = vector.shape_cast %275 : vector<1x16x128xbf16> to vector<16x128xbf16>
      %277 = vector.shape_cast %273 : vector<16x128xbf16> to vector<1x16x128xbf16>
      tpu.vector_store %arg18[%274, %c0_146, %c0_147], %277 {strides = array<i32>} : memref<4x16x128xbf16, #tpu.memory_space<vmem>>, vector<1x16x128xbf16>,
      %c1_i32_148 = arith.constant 1 : i32
      %c1_i32_149 = arith.constant 1 : i32
      %278 = arith.muli %c1_i32_148, %c1_i32_149 : i32
      %c0_i32_150 = arith.constant 0 : i32
      %279 = arith.addi %c0_i32_150, %278 : i32
      %280 = arith.index_cast %279 : i32 to index
      %c0_151 = arith.constant 0 : index
      %c0_152 = arith.constant 0 : index
      %281 = vector.load %arg6[%280, %c0_151, %c0_152] : memref<4x32x128xbf16, #tpu.memory_space<vmem>>, vector<1x32x128xbf16>
      %282 = vector.shape_cast %281 : vector<1x32x128xbf16> to vector<32x128xbf16>
      %cst_153 = arith.constant dense<0.000000e+00> : vector<16x128xf32>
      %283 = tpu.matmul %257, %282, %cst_153 {dimension_numbers = #tpu.dot_dimension_numbers<[1], [0], [0], [1], [0, 0, 1, 1], [], []>} : vector<16x32xbf16>, vector<32x128xbf16>, vector<16x128xf32> -> vector<16x128xf32>
      %284 = arith.truncf %283 : vector<16x128xf32> to vector<16x128xbf16>
      %285 = arith.index_cast %279 : i32 to index
      %c0_154 = arith.constant 0 : index
      %c0_155 = arith.constant 0 : index
      %286 = vector.load %arg17[%285, %c0_154, %c0_155] : memref<4x16x128xbf16, #tpu.memory_space<vmem>>, vector<1x16x128xbf16>
      %287 = vector.shape_cast %286 : vector<1x16x128xbf16> to vector<16x128xbf16>
      %288 = vector.shape_cast %284 : vector<16x128xbf16> to vector<1x16x128xbf16>
      tpu.vector_store %arg17[%285, %c0_154, %c0_155], %288 {strides = array<i32>} : memref<4x16x128xbf16, #tpu.memory_space<vmem>>, vector<1x16x128xbf16>,
      %289 = arith.index_cast %279 : i32 to index
      %c0_156 = arith.constant 0 : index
      %c0_157 = arith.constant 0 : index
      %290 = vector.load %arg7[%289, %c0_156, %c0_157] : memref<4x32x128xbf16, #tpu.memory_space<vmem>>, vector<1x32x128xbf16>
      %291 = vector.shape_cast %290 : vector<1x32x128xbf16> to vector<32x128xbf16>
      %cst_158 = arith.constant dense<0.000000e+00> : vector<16x128xf32>
      %292 = tpu.matmul %257, %291, %cst_158 {dimension_numbers = #tpu.dot_dimension_numbers<[1], [0], [0], [1], [0, 0, 1, 1], [], []>} : vector<16x32xbf16>, vector<32x128xbf16>, vector<16x128xf32> -> vector<16x128xf32>
      %293 = arith.truncf %292 : vector<16x128xf32> to vector<16x128xbf16>
      %294 = arith.index_cast %279 : i32 to index
      %c0_159 = arith.constant 0 : index
      %c0_160 = arith.constant 0 : index
      %295 = vector.load %arg18[%294, %c0_159, %c0_160] : memref<4x16x128xbf16, #tpu.memory_space<vmem>>, vector<1x16x128xbf16>
      %296 = vector.shape_cast %295 : vector<1x16x128xbf16> to vector<16x128xbf16>
      %297 = vector.shape_cast %293 : vector<16x128xbf16> to vector<1x16x128xbf16>
      tpu.vector_store %arg18[%294, %c0_159, %c0_160], %297 {strides = array<i32>} : memref<4x16x128xbf16, #tpu.memory_space<vmem>>, vector<1x16x128xbf16>,
      %c2_i32_161 = arith.constant 2 : i32
      %c1_i32_162 = arith.constant 1 : i32
      %298 = arith.muli %c2_i32_161, %c1_i32_162 : i32
      %c0_i32_163 = arith.constant 0 : i32
      %299 = arith.addi %c0_i32_163, %298 : i32
      %300 = arith.index_cast %299 : i32 to index
      %c0_164 = arith.constant 0 : index
      %c0_165 = arith.constant 0 : index
      %301 = vector.load %arg6[%300, %c0_164, %c0_165] : memref<4x32x128xbf16, #tpu.memory_space<vmem>>, vector<1x32x128xbf16>
      %302 = vector.shape_cast %301 : vector<1x32x128xbf16> to vector<32x128xbf16>
      %cst_166 = arith.constant dense<0.000000e+00> : vector<16x128xf32>
      %303 = tpu.matmul %257, %302, %cst_166 {dimension_numbers = #tpu.dot_dimension_numbers<[1], [0], [0], [1], [0, 0, 1, 1], [], []>} : vector<16x32xbf16>, vector<32x128xbf16>, vector<16x128xf32> -> vector<16x128xf32>
      %304 = arith.truncf %303 : vector<16x128xf32> to vector<16x128xbf16>
      %305 = arith.index_cast %299 : i32 to index
      %c0_167 = arith.constant 0 : index
      %c0_168 = arith.constant 0 : index
      %306 = vector.load %arg17[%305, %c0_167, %c0_168] : memref<4x16x128xbf16, #tpu.memory_space<vmem>>, vector<1x16x128xbf16>
      %307 = vector.shape_cast %306 : vector<1x16x128xbf16> to vector<16x128xbf16>
      %308 = vector.shape_cast %304 : vector<16x128xbf16> to vector<1x16x128xbf16>
      tpu.vector_store %arg17[%305, %c0_167, %c0_168], %308 {strides = array<i32>} : memref<4x16x128xbf16, #tpu.memory_space<vmem>>, vector<1x16x128xbf16>,
      %309 = arith.index_cast %299 : i32 to index
      %c0_169 = arith.constant 0 : index
      %c0_170 = arith.constant 0 : index
      %310 = vector.load %arg7[%309, %c0_169, %c0_170] : memref<4x32x128xbf16, #tpu.memory_space<vmem>>, vector<1x32x128xbf16>
      %311 = vector.shape_cast %310 : vector<1x32x128xbf16> to vector<32x128xbf16>
      %cst_171 = arith.constant dense<0.000000e+00> : vector<16x128xf32>
      %312 = tpu.matmul %257, %311, %cst_171 {dimension_numbers = #tpu.dot_dimension_numbers<[1], [0], [0], [1], [0, 0, 1, 1], [], []>} : vector<16x32xbf16>, vector<32x128xbf16>, vector<16x128xf32> -> vector<16x128xf32>
      %313 = arith.truncf %312 : vector<16x128xf32> to vector<16x128xbf16>
      %314 = arith.index_cast %299 : i32 to index
      %c0_172 = arith.constant 0 : index
      %c0_173 = arith.constant 0 : index
      %315 = vector.load %arg18[%314, %c0_172, %c0_173] : memref<4x16x128xbf16, #tpu.memory_space<vmem>>, vector<1x16x128xbf16>
      %316 = vector.shape_cast %315 : vector<1x16x128xbf16> to vector<16x128xbf16>
      %317 = vector.shape_cast %313 : vector<16x128xbf16> to vector<1x16x128xbf16>
      tpu.vector_store %arg18[%314, %c0_172, %c0_173], %317 {strides = array<i32>} : memref<4x16x128xbf16, #tpu.memory_space<vmem>>, vector<1x16x128xbf16>,
      %c3_i32_174 = arith.constant 3 : i32
      %c1_i32_175 = arith.constant 1 : i32
      %318 = arith.muli %c3_i32_174, %c1_i32_175 : i32
      %c0_i32_176 = arith.constant 0 : i32
      %319 = arith.addi %c0_i32_176, %318 : i32
      %320 = arith.index_cast %319 : i32 to index
      %c0_177 = arith.constant 0 : index
      %c0_178 = arith.constant 0 : index
      %321 = vector.load %arg6[%320, %c0_177, %c0_178] : memref<4x32x128xbf16, #tpu.memory_space<vmem>>, vector<1x32x128xbf16>
      %322 = vector.shape_cast %321 : vector<1x32x128xbf16> to vector<32x128xbf16>
      %cst_179 = arith.constant dense<0.000000e+00> : vector<16x128xf32>
      %323 = tpu.matmul %257, %322, %cst_179 {dimension_numbers = #tpu.dot_dimension_numbers<[1], [0], [0], [1], [0, 0, 1, 1], [], []>} : vector<16x32xbf16>, vector<32x128xbf16>, vector<16x128xf32> -> vector<16x128xf32>
      %324 = arith.truncf %323 : vector<16x128xf32> to vector<16x128xbf16>
      %325 = arith.index_cast %319 : i32 to index
      %c0_180 = arith.constant 0 : index
      %c0_181 = arith.constant 0 : index
      %326 = vector.load %arg17[%325, %c0_180, %c0_181] : memref<4x16x128xbf16, #tpu.memory_space<vmem>>, vector<1x16x128xbf16>
      %327 = vector.shape_cast %326 : vector<1x16x128xbf16> to vector<16x128xbf16>
      %328 = vector.shape_cast %324 : vector<16x128xbf16> to vector<1x16x128xbf16>
      tpu.vector_store %arg17[%325, %c0_180, %c0_181], %328 {strides = array<i32>} : memref<4x16x128xbf16, #tpu.memory_space<vmem>>, vector<1x16x128xbf16>,
      %329 = arith.index_cast %319 : i32 to index
      %c0_182 = arith.constant 0 : index
      %c0_183 = arith.constant 0 : index
      %330 = vector.load %arg7[%329, %c0_182, %c0_183] : memref<4x32x128xbf16, #tpu.memory_space<vmem>>, vector<1x32x128xbf16>
      %331 = vector.shape_cast %330 : vector<1x32x128xbf16> to vector<32x128xbf16>
      %cst_184 = arith.constant dense<0.000000e+00> : vector<16x128xf32>
      %332 = tpu.matmul %257, %331, %cst_184 {dimension_numbers = #tpu.dot_dimension_numbers<[1], [0], [0], [1], [0, 0, 1, 1], [], []>} : vector<16x32xbf16>, vector<32x128xbf16>, vector<16x128xf32> -> vector<16x128xf32>
      %333 = arith.truncf %332 : vector<16x128xf32> to vector<16x128xbf16>
      %334 = arith.index_cast %319 : i32 to index
      %c0_185 = arith.constant 0 : index
      %c0_186 = arith.constant 0 : index
      %335 = vector.load %arg18[%334, %c0_185, %c0_186] : memref<4x16x128xbf16, #tpu.memory_space<vmem>>, vector<1x16x128xbf16>
      %336 = vector.shape_cast %335 : vector<1x16x128xbf16> to vector<16x128xbf16>
      %337 = vector.shape_cast %333 : vector<16x128xbf16> to vector<1x16x128xbf16>
      tpu.vector_store %arg18[%334, %c0_185, %c0_186], %337 {strides = array<i32>} : memref<4x16x128xbf16, #tpu.memory_space<vmem>>, vector<1x16x128xbf16>,
      %c4_i32_187 = arith.constant 4 : i32
    } else {
    }
    %c8_i32 = arith.constant 8 : i32
    %5 = arith.muli %arg1, %c8_i32 : i32
    %6 = tpu.assume_multiple %5, 8 : i32
    %c0_4 = arith.constant 0 : index
    %7 = arith.index_cast %6 : i32 to index
    %c0_5 = arith.constant 0 : index
    %8 = vector.load %arg2[%c0_4, %7, %c0_5] : memref<1x16x32xf32, #tpu.memory_space<vmem>>, vector<1x8x32xf32>
    %9 = vector.shape_cast %8 : vector<1x8x32xf32> to vector<8x32xf32>
    %cst = arith.constant dense<0.000000e+00> : vector<8xf32>
    %10 = vector.multi_reduction <add>, %9, %cst [1] : vector<8x32xf32> to vector<8xf32>
    %11 = vector.shape_cast %10 : vector<8xf32> to vector<8x1xf32>
    %cst_6 = arith.constant 3.200000e+01 : f32
    %12 = vector.broadcast %cst_6 : f32 to vector<8x1xf32>
    %13 = arith.divf %11, %12 : vector<8x1xf32>
    %14 = vector.broadcast %13 : vector<8x1xf32> to vector<8x32xf32>
    %15 = arith.subf %9, %14 : vector<8x32xf32>
    %16 = arith.mulf %15, %15 : vector<8x32xf32>
    %cst_7 = arith.constant dense<0.000000e+00> : vector<8xf32>
    %17 = vector.multi_reduction <add>, %16, %cst_7 [1] : vector<8x32xf32> to vector<8xf32>
    %18 = vector.shape_cast %17 : vector<8xf32> to vector<8x1xf32>
    %cst_8 = arith.constant 3.200000e+01 : f32
    %19 = vector.broadcast %cst_8 : f32 to vector<8x1xf32>
    %20 = arith.divf %18, %19 : vector<8x1xf32>
    %21 = vector.broadcast %13 : vector<8x1xf32> to vector<8x32xf32>
    %22 = arith.subf %9, %21 : vector<8x32xf32>
    %cst_9 = arith.constant 9.99999974E-6 : f32
    %23 = vector.broadcast %cst_9 : f32 to vector<8x1xf32>
    %24 = arith.addf %20, %23 : vector<8x1xf32>
    %25 = math.rsqrt %24 : vector<8x1xf32>
    %26 = vector.broadcast %25 : vector<8x1xf32> to vector<8x32xf32>
    %27 = arith.mulf %22, %26 : vector<8x32xf32>
    %28 = vector.broadcast %0 : vector<1x32xf32> to vector<8x32xf32>
    %29 = arith.mulf %27, %28 : vector<8x32xf32>
    %30 = vector.broadcast %1 : vector<1x32xf32> to vector<8x32xf32>
    %31 = arith.addf %29, %30 : vector<8x32xf32>
    %32 = arith.truncf %31 : vector<8x32xf32> to vector<8x32xbf16>
    %cst_10 = arith.constant 0.000000e+00 : f32
    %33 = vector.broadcast %cst_10 : f32 to vector<8x32xf32>
    %c0_11 = arith.constant 0 : index
    %c0_12 = arith.constant 0 : index
    %34 = vector.load %arg19[%c0_11, %c0_12] : memref<8x32xf32, #tpu.memory_space<vmem>>, vector<8x32xf32>
    tpu.vector_store %arg19[%c0_11, %c0_12], %33 {strides = array<i32>} : memref<8x32xf32, #tpu.memory_space<vmem>>, vector<8x32xf32>,
    %c0_i32_13 = arith.constant 0 : i32
    %c1_i32 = arith.constant 1 : i32
    %35 = arith.muli %c0_i32_13, %c1_i32 : i32
    %c0_i32_14 = arith.constant 0 : i32
    %36 = arith.addi %c0_i32_14, %35 : i32
    %37 = arith.index_cast %36 : i32 to index
    %c0_15 = arith.constant 0 : index
    %c0_16 = arith.constant 0 : index
    %38 = vector.load %arg5[%37, %c0_15, %c0_16] : memref<4x32x128xbf16, #tpu.memory_space<vmem>>, vector<1x32x128xbf16>
    %39 = vector.shape_cast %38 : vector<1x32x128xbf16> to vector<32x128xbf16>
    %cst_17 = arith.constant dense<0.000000e+00> : vector<8x128xf32>
    %40 = tpu.matmul %32, %39, %cst_17 {dimension_numbers = #tpu.dot_dimension_numbers<[1], [0], [0], [1], [0, 0, 1, 1], [], []>} : vector<8x32xbf16>, vector<32x128xbf16>, vector<8x128xf32> -> vector<8x128xf32>
    %cst_18 = arith.constant 0.353553385 : f32
    %41 = vector.broadcast %cst_18 : f32 to vector<8x128xf32>
    %42 = arith.mulf %40, %41 : vector<8x128xf32>
    %43 = arith.truncf %42 : vector<8x128xf32> to vector<8x128xbf16>
    %44 = arith.index_cast %36 : i32 to index
    %c0_19 = arith.constant 0 : index
    %c0_20 = arith.constant 0 : index
    %45 = vector.load %arg17[%44, %c0_19, %c0_20] : memref<4x16x128xbf16, #tpu.memory_space<vmem>>, vector<1x16x128xbf16>
    %46 = vector.shape_cast %45 : vector<1x16x128xbf16> to vector<16x128xbf16>
    %cst_21 = arith.constant dense<0.000000e+00> : vector<8x16xf32>
    %47 = tpu.matmul %43, %46, %cst_21 {dimension_numbers = #tpu.dot_dimension_numbers<[1], [1], [0], [0], [0, 0, 1, 0], [], []>} : vector<8x128xbf16>, vector<16x128xbf16>, vector<8x16xf32> -> vector<8x16xf32>
    %cst_22 = arith.constant dense<0xFF800000> : vector<8xf32>
    %48 = vector.multi_reduction <maximumf>, %47, %cst_22 [1] : vector<8x16xf32> to vector<8xf32>
    %49 = vector.shape_cast %48 : vector<8xf32> to vector<8x1xf32>
    %50 = vector.broadcast %49 : vector<8x1xf32> to vector<8x16xf32>
    %51 = arith.subf %47, %50 : vector<8x16xf32>
    %52 = math.exp %51 : vector<8x16xf32>
    %cst_23 = arith.constant dense<0.000000e+00> : vector<8xf32>
    %53 = vector.multi_reduction <add>, %52, %cst_23 [1] : vector<8x16xf32> to vector<8xf32>
    %54 = vector.shape_cast %53 : vector<8xf32> to vector<8x1xf32>
    %55 = tpu.reciprocal %54 {approx = true} : vector<8x1xf32> -> vector<8x1xf32>
    %56 = vector.broadcast %55 : vector<8x1xf32> to vector<8x16xf32>
    %57 = arith.mulf %52, %56 : vector<8x16xf32>
    %58 = arith.truncf %57 : vector<8x16xf32> to vector<8x16xbf16>
    %59 = arith.index_cast %36 : i32 to index
    %c0_24 = arith.constant 0 : index
    %c0_25 = arith.constant 0 : index
    %60 = vector.load %arg18[%59, %c0_24, %c0_25] : memref<4x16x128xbf16, #tpu.memory_space<vmem>>, vector<1x16x128xbf16>
    %61 = vector.shape_cast %60 : vector<1x16x128xbf16> to vector<16x128xbf16>
    %cst_26 = arith.constant dense<0.000000e+00> : vector<8x128xf32>
    %62 = tpu.matmul %58, %61, %cst_26 {dimension_numbers = #tpu.dot_dimension_numbers<[1], [0], [0], [1], [0, 0, 1, 1], [], []>} : vector<8x16xbf16>, vector<16x128xbf16>, vector<8x128xf32> -> vector<8x128xf32>
    %c0_27 = arith.constant 0 : index
    %c0_28 = arith.constant 0 : index
    %63 = vector.load %arg19[%c0_27, %c0_28] : memref<8x32xf32, #tpu.memory_space<vmem>>, vector<8x32xf32>
    %64 = arith.truncf %62 : vector<8x128xf32> to vector<8x128xbf16>
    %65 = arith.index_cast %36 : i32 to index
    %c0_29 = arith.constant 0 : index
    %c0_30 = arith.constant 0 : index
    %66 = vector.load %arg8[%65, %c0_29, %c0_30] : memref<4x128x32xbf16, #tpu.memory_space<vmem>>, vector<1x128x32xbf16>
    %67 = vector.shape_cast %66 : vector<1x128x32xbf16> to vector<128x32xbf16>
    %cst_31 = arith.constant dense<0.000000e+00> : vector<8x32xf32>
    %68 = tpu.matmul %64, %67, %cst_31 {dimension_numbers = #tpu.dot_dimension_numbers<[1], [0], [0], [1], [0, 0, 1, 1], [], []>} : vector<8x128xbf16>, vector<128x32xbf16>, vector<8x32xf32> -> vector<8x32xf32>
    %69 = arith.addf %63, %68 : vector<8x32xf32>
    %c0_32 = arith.constant 0 : index
    %c0_33 = arith.constant 0 : index
    %70 = vector.load %arg19[%c0_32, %c0_33] : memref<8x32xf32, #tpu.memory_space<vmem>>, vector<8x32xf32>
    tpu.vector_store %arg19[%c0_32, %c0_33], %69 {strides = array<i32>} : memref<8x32xf32, #tpu.memory_space<vmem>>, vector<8x32xf32>,
    %c1_i32_34 = arith.constant 1 : i32
    %c1_i32_35 = arith.constant 1 : i32
    %71 = arith.muli %c1_i32_34, %c1_i32_35 : i32
    %c0_i32_36 = arith.constant 0 : i32
    %72 = arith.addi %c0_i32_36, %71 : i32
    %73 = arith.index_cast %72 : i32 to index
    %c0_37 = arith.constant 0 : index
    %c0_38 = arith.constant 0 : index
    %74 = vector.load %arg5[%73, %c0_37, %c0_38] : memref<4x32x128xbf16, #tpu.memory_space<vmem>>, vector<1x32x128xbf16>
    %75 = vector.shape_cast %74 : vector<1x32x128xbf16> to vector<32x128xbf16>
    %cst_39 = arith.constant dense<0.000000e+00> : vector<8x128xf32>
    %76 = tpu.matmul %32, %75, %cst_39 {dimension_numbers = #tpu.dot_dimension_numbers<[1], [0], [0], [1], [0, 0, 1, 1], [], []>} : vector<8x32xbf16>, vector<32x128xbf16>, vector<8x128xf32> -> vector<8x128xf32>
    %cst_40 = arith.constant 0.353553385 : f32
    %77 = vector.broadcast %cst_40 : f32 to vector<8x128xf32>
    %78 = arith.mulf %76, %77 : vector<8x128xf32>
    %79 = arith.truncf %78 : vector<8x128xf32> to vector<8x128xbf16>
    %80 = arith.index_cast %72 : i32 to index
    %c0_41 = arith.constant 0 : index
    %c0_42 = arith.constant 0 : index
    %81 = vector.load %arg17[%80, %c0_41, %c0_42] : memref<4x16x128xbf16, #tpu.memory_space<vmem>>, vector<1x16x128xbf16>
    %82 = vector.shape_cast %81 : vector<1x16x128xbf16> to vector<16x128xbf16>
    %cst_43 = arith.constant dense<0.000000e+00> : vector<8x16xf32>
    %83 = tpu.matmul %79, %82, %cst_43 {dimension_numbers = #tpu.dot_dimension_numbers<[1], [1], [0], [0], [0, 0, 1, 0], [], []>} : vector<8x128xbf16>, vector<16x128xbf16>, vector<8x16xf32> -> vector<8x16xf32>
    %cst_44 = arith.constant dense<0xFF800000> : vector<8xf32>
    %84 = vector.multi_reduction <maximumf>, %83, %cst_44 [1] : vector<8x16xf32> to vector<8xf32>
    %85 = vector.shape_cast %84 : vector<8xf32> to vector<8x1xf32>
    %86 = vector.broadcast %85 : vector<8x1xf32> to vector<8x16xf32>
    %87 = arith.subf %83, %86 : vector<8x16xf32>
    %88 = math.exp %87 : vector<8x16xf32>
    %cst_45 = arith.constant dense<0.000000e+00> : vector<8xf32>
    %89 = vector.multi_reduction <add>, %88, %cst_45 [1] : vector<8x16xf32> to vector<8xf32>
    %90 = vector.shape_cast %89 : vector<8xf32> to vector<8x1xf32>
    %91 = tpu.reciprocal %90 {approx = true} : vector<8x1xf32> -> vector<8x1xf32>
    %92 = vector.broadcast %91 : vector<8x1xf32> to vector<8x16xf32>
    %93 = arith.mulf %88, %92 : vector<8x16xf32>
    %94 = arith.truncf %93 : vector<8x16xf32> to vector<8x16xbf16>
    %95 = arith.index_cast %72 : i32 to index
    %c0_46 = arith.constant 0 : index
    %c0_47 = arith.constant 0 : index
    %96 = vector.load %arg18[%95, %c0_46, %c0_47] : memref<4x16x128xbf16, #tpu.memory_space<vmem>>, vector<1x16x128xbf16>
    %97 = vector.shape_cast %96 : vector<1x16x128xbf16> to vector<16x128xbf16>
    %cst_48 = arith.constant dense<0.000000e+00> : vector<8x128xf32>
    %98 = tpu.matmul %94, %97, %cst_48 {dimension_numbers = #tpu.dot_dimension_numbers<[1], [0], [0], [1], [0, 0, 1, 1], [], []>} : vector<8x16xbf16>, vector<16x128xbf16>, vector<8x128xf32> -> vector<8x128xf32>
    %c0_49 = arith.constant 0 : index
    %c0_50 = arith.constant 0 : index
    %99 = vector.load %arg19[%c0_49, %c0_50] : memref<8x32xf32, #tpu.memory_space<vmem>>, vector<8x32xf32>
    %100 = arith.truncf %98 : vector<8x128xf32> to vector<8x128xbf16>
    %101 = arith.index_cast %72 : i32 to index
    %c0_51 = arith.constant 0 : index
    %c0_52 = arith.constant 0 : index
    %102 = vector.load %arg8[%101, %c0_51, %c0_52] : memref<4x128x32xbf16, #tpu.memory_space<vmem>>, vector<1x128x32xbf16>
    %103 = vector.shape_cast %102 : vector<1x128x32xbf16> to vector<128x32xbf16>
    %cst_53 = arith.constant dense<0.000000e+00> : vector<8x32xf32>
    %104 = tpu.matmul %100, %103, %cst_53 {dimension_numbers = #tpu.dot_dimension_numbers<[1], [0], [0], [1], [0, 0, 1, 1], [], []>} : vector<8x128xbf16>, vector<128x32xbf16>, vector<8x32xf32> -> vector<8x32xf32>
    %105 = arith.addf %99, %104 : vector<8x32xf32>
    %c0_54 = arith.constant 0 : index
    %c0_55 = arith.constant 0 : index
    %106 = vector.load %arg19[%c0_54, %c0_55] : memref<8x32xf32, #tpu.memory_space<vmem>>, vector<8x32xf32>
    tpu.vector_store %arg19[%c0_54, %c0_55], %105 {strides = array<i32>} : memref<8x32xf32, #tpu.memory_space<vmem>>, vector<8x32xf32>,
    %c2_i32 = arith.constant 2 : i32
    %c1_i32_56 = arith.constant 1 : i32
    %107 = arith.muli %c2_i32, %c1_i32_56 : i32
    %c0_i32_57 = arith.constant 0 : i32
    %108 = arith.addi %c0_i32_57, %107 : i32
    %109 = arith.index_cast %108 : i32 to index
    %c0_58 = arith.constant 0 : index
    %c0_59 = arith.constant 0 : index
    %110 = vector.load %arg5[%109, %c0_58, %c0_59] : memref<4x32x128xbf16, #tpu.memory_space<vmem>>, vector<1x32x128xbf16>
    %111 = vector.shape_cast %110 : vector<1x32x128xbf16> to vector<32x128xbf16>
    %cst_60 = arith.constant dense<0.000000e+00> : vector<8x128xf32>
    %112 = tpu.matmul %32, %111, %cst_60 {dimension_numbers = #tpu.dot_dimension_numbers<[1], [0], [0], [1], [0, 0, 1, 1], [], []>} : vector<8x32xbf16>, vector<32x128xbf16>, vector<8x128xf32> -> vector<8x128xf32>
    %cst_61 = arith.constant 0.353553385 : f32
    %113 = vector.broadcast %cst_61 : f32 to vector<8x128xf32>
    %114 = arith.mulf %112, %113 : vector<8x128xf32>
    %115 = arith.truncf %114 : vector<8x128xf32> to vector<8x128xbf16>
    %116 = arith.index_cast %108 : i32 to index
    %c0_62 = arith.constant 0 : index
    %c0_63 = arith.constant 0 : index
    %117 = vector.load %arg17[%116, %c0_62, %c0_63] : memref<4x16x128xbf16, #tpu.memory_space<vmem>>, vector<1x16x128xbf16>
    %118 = vector.shape_cast %117 : vector<1x16x128xbf16> to vector<16x128xbf16>
    %cst_64 = arith.constant dense<0.000000e+00> : vector<8x16xf32>
    %119 = tpu.matmul %115, %118, %cst_64 {dimension_numbers = #tpu.dot_dimension_numbers<[1], [1], [0], [0], [0, 0, 1, 0], [], []>} : vector<8x128xbf16>, vector<16x128xbf16>, vector<8x16xf32> -> vector<8x16xf32>
    %cst_65 = arith.constant dense<0xFF800000> : vector<8xf32>
    %120 = vector.multi_reduction <maximumf>, %119, %cst_65 [1] : vector<8x16xf32> to vector<8xf32>
    %121 = vector.shape_cast %120 : vector<8xf32> to vector<8x1xf32>
    %122 = vector.broadcast %121 : vector<8x1xf32> to vector<8x16xf32>
    %123 = arith.subf %119, %122 : vector<8x16xf32>
    %124 = math.exp %123 : vector<8x16xf32>
    %cst_66 = arith.constant dense<0.000000e+00> : vector<8xf32>
    %125 = vector.multi_reduction <add>, %124, %cst_66 [1] : vector<8x16xf32> to vector<8xf32>
    %126 = vector.shape_cast %125 : vector<8xf32> to vector<8x1xf32>
    %127 = tpu.reciprocal %126 {approx = true} : vector<8x1xf32> -> vector<8x1xf32>
    %128 = vector.broadcast %127 : vector<8x1xf32> to vector<8x16xf32>
    %129 = arith.mulf %124, %128 : vector<8x16xf32>
    %130 = arith.truncf %129 : vector<8x16xf32> to vector<8x16xbf16>
    %131 = arith.index_cast %108 : i32 to index
    %c0_67 = arith.constant 0 : index
    %c0_68 = arith.constant 0 : index
    %132 = vector.load %arg18[%131, %c0_67, %c0_68] : memref<4x16x128xbf16, #tpu.memory_space<vmem>>, vector<1x16x128xbf16>
    %133 = vector.shape_cast %132 : vector<1x16x128xbf16> to vector<16x128xbf16>
    %cst_69 = arith.constant dense<0.000000e+00> : vector<8x128xf32>
    %134 = tpu.matmul %130, %133, %cst_69 {dimension_numbers = #tpu.dot_dimension_numbers<[1], [0], [0], [1], [0, 0, 1, 1], [], []>} : vector<8x16xbf16>, vector<16x128xbf16>, vector<8x128xf32> -> vector<8x128xf32>
    %c0_70 = arith.constant 0 : index
    %c0_71 = arith.constant 0 : index
    %135 = vector.load %arg19[%c0_70, %c0_71] : memref<8x32xf32, #tpu.memory_space<vmem>>, vector<8x32xf32>
    %136 = arith.truncf %134 : vector<8x128xf32> to vector<8x128xbf16>
    %137 = arith.index_cast %108 : i32 to index
    %c0_72 = arith.constant 0 : index
    %c0_73 = arith.constant 0 : index
    %138 = vector.load %arg8[%137, %c0_72, %c0_73] : memref<4x128x32xbf16, #tpu.memory_space<vmem>>, vector<1x128x32xbf16>
    %139 = vector.shape_cast %138 : vector<1x128x32xbf16> to vector<128x32xbf16>
    %cst_74 = arith.constant dense<0.000000e+00> : vector<8x32xf32>
    %140 = tpu.matmul %136, %139, %cst_74 {dimension_numbers = #tpu.dot_dimension_numbers<[1], [0], [0], [1], [0, 0, 1, 1], [], []>} : vector<8x128xbf16>, vector<128x32xbf16>, vector<8x32xf32> -> vector<8x32xf32>
    %141 = arith.addf %135, %140 : vector<8x32xf32>
    %c0_75 = arith.constant 0 : index
    %c0_76 = arith.constant 0 : index
    %142 = vector.load %arg19[%c0_75, %c0_76] : memref<8x32xf32, #tpu.memory_space<vmem>>, vector<8x32xf32>
    tpu.vector_store %arg19[%c0_75, %c0_76], %141 {strides = array<i32>} : memref<8x32xf32, #tpu.memory_space<vmem>>, vector<8x32xf32>,
    %c3_i32 = arith.constant 3 : i32
    %c1_i32_77 = arith.constant 1 : i32
    %143 = arith.muli %c3_i32, %c1_i32_77 : i32
    %c0_i32_78 = arith.constant 0 : i32
    %144 = arith.addi %c0_i32_78, %143 : i32
    %145 = arith.index_cast %144 : i32 to index
    %c0_79 = arith.constant 0 : index
    %c0_80 = arith.constant 0 : index
    %146 = vector.load %arg5[%145, %c0_79, %c0_80] : memref<4x32x128xbf16, #tpu.memory_space<vmem>>, vector<1x32x128xbf16>
    %147 = vector.shape_cast %146 : vector<1x32x128xbf16> to vector<32x128xbf16>
    %cst_81 = arith.constant dense<0.000000e+00> : vector<8x128xf32>
    %148 = tpu.matmul %32, %147, %cst_81 {dimension_numbers = #tpu.dot_dimension_numbers<[1], [0], [0], [1], [0, 0, 1, 1], [], []>} : vector<8x32xbf16>, vector<32x128xbf16>, vector<8x128xf32> -> vector<8x128xf32>
    %cst_82 = arith.constant 0.353553385 : f32
    %149 = vector.broadcast %cst_82 : f32 to vector<8x128xf32>
    %150 = arith.mulf %148, %149 : vector<8x128xf32>
    %151 = arith.truncf %150 : vector<8x128xf32> to vector<8x128xbf16>
    %152 = arith.index_cast %144 : i32 to index
    %c0_83 = arith.constant 0 : index
    %c0_84 = arith.constant 0 : index
    %153 = vector.load %arg17[%152, %c0_83, %c0_84] : memref<4x16x128xbf16, #tpu.memory_space<vmem>>, vector<1x16x128xbf16>
    %154 = vector.shape_cast %153 : vector<1x16x128xbf16> to vector<16x128xbf16>
    %cst_85 = arith.constant dense<0.000000e+00> : vector<8x16xf32>
    %155 = tpu.matmul %151, %154, %cst_85 {dimension_numbers = #tpu.dot_dimension_numbers<[1], [1], [0], [0], [0, 0, 1, 0], [], []>} : vector<8x128xbf16>, vector<16x128xbf16>, vector<8x16xf32> -> vector<8x16xf32>
    %cst_86 = arith.constant dense<0xFF800000> : vector<8xf32>
    %156 = vector.multi_reduction <maximumf>, %155, %cst_86 [1] : vector<8x16xf32> to vector<8xf32>
    %157 = vector.shape_cast %156 : vector<8xf32> to vector<8x1xf32>
    %158 = vector.broadcast %157 : vector<8x1xf32> to vector<8x16xf32>
    %159 = arith.subf %155, %158 : vector<8x16xf32>
    %160 = math.exp %159 : vector<8x16xf32>
    %cst_87 = arith.constant dense<0.000000e+00> : vector<8xf32>
    %161 = vector.multi_reduction <add>, %160, %cst_87 [1] : vector<8x16xf32> to vector<8xf32>
    %162 = vector.shape_cast %161 : vector<8xf32> to vector<8x1xf32>
    %163 = tpu.reciprocal %162 {approx = true} : vector<8x1xf32> -> vector<8x1xf32>
    %164 = vector.broadcast %163 : vector<8x1xf32> to vector<8x16xf32>
    %165 = arith.mulf %160, %164 : vector<8x16xf32>
    %166 = arith.truncf %165 : vector<8x16xf32> to vector<8x16xbf16>
    %167 = arith.index_cast %144 : i32 to index
    %c0_88 = arith.constant 0 : index
    %c0_89 = arith.constant 0 : index
    %168 = vector.load %arg18[%167, %c0_88, %c0_89] : memref<4x16x128xbf16, #tpu.memory_space<vmem>>, vector<1x16x128xbf16>
    %169 = vector.shape_cast %168 : vector<1x16x128xbf16> to vector<16x128xbf16>
    %cst_90 = arith.constant dense<0.000000e+00> : vector<8x128xf32>
    %170 = tpu.matmul %166, %169, %cst_90 {dimension_numbers = #tpu.dot_dimension_numbers<[1], [0], [0], [1], [0, 0, 1, 1], [], []>} : vector<8x16xbf16>, vector<16x128xbf16>, vector<8x128xf32> -> vector<8x128xf32>
    %c0_91 = arith.constant 0 : index
    %c0_92 = arith.constant 0 : index
    %171 = vector.load %arg19[%c0_91, %c0_92] : memref<8x32xf32, #tpu.memory_space<vmem>>, vector<8x32xf32>
    %172 = arith.truncf %170 : vector<8x128xf32> to vector<8x128xbf16>
    %173 = arith.index_cast %144 : i32 to index
    %c0_93 = arith.constant 0 : index
    %c0_94 = arith.constant 0 : index
    %174 = vector.load %arg8[%173, %c0_93, %c0_94] : memref<4x128x32xbf16, #tpu.memory_space<vmem>>, vector<1x128x32xbf16>
    %175 = vector.shape_cast %174 : vector<1x128x32xbf16> to vector<128x32xbf16>
    %cst_95 = arith.constant dense<0.000000e+00> : vector<8x32xf32>
    %176 = tpu.matmul %172, %175, %cst_95 {dimension_numbers = #tpu.dot_dimension_numbers<[1], [0], [0], [1], [0, 0, 1, 1], [], []>} : vector<8x128xbf16>, vector<128x32xbf16>, vector<8x32xf32> -> vector<8x32xf32>
    %177 = arith.addf %171, %176 : vector<8x32xf32>
    %c0_96 = arith.constant 0 : index
    %c0_97 = arith.constant 0 : index
    %178 = vector.load %arg19[%c0_96, %c0_97] : memref<8x32xf32, #tpu.memory_space<vmem>>, vector<8x32xf32>
    tpu.vector_store %arg19[%c0_96, %c0_97], %177 {strides = array<i32>} : memref<8x32xf32, #tpu.memory_space<vmem>>, vector<8x32xf32>,
    %c4_i32 = arith.constant 4 : i32
    %c0_98 = arith.constant 0 : index
    %c0_99 = arith.constant 0 : index
    %179 = vector.load %arg19[%c0_98, %c0_99] : memref<8x32xf32, #tpu.memory_space<vmem>>, vector<8x32xf32>
    %180 = arith.addf %9, %179 : vector<8x32xf32>
    %c0_100 = arith.constant 0 : index
    %c0_101 = arith.constant 0 : index
    %181 = vector.load %arg9[%c0_100, %c0_101] : memref<1x32xf32, #tpu.memory_space<vmem>>, vector<1x32xf32>
    %182 = vector.broadcast %181 : vector<1x32xf32> to vector<8x32xf32>
    %183 = arith.addf %180, %182 : vector<8x32xf32>
    %c0_102 = arith.constant 0 : index
    %c0_103 = arith.constant 0 : index
    %184 = vector.load %arg10[%c0_102, %c0_103] : memref<1x32xf32, #tpu.memory_space<vmem>>, vector<1x32xf32>
    %c0_104 = arith.constant 0 : index
    %c0_105 = arith.constant 0 : index
    %185 = vector.load %arg11[%c0_104, %c0_105] : memref<1x32xf32, #tpu.memory_space<vmem>>, vector<1x32xf32>
    %cst_106 = arith.constant dense<0.000000e+00> : vector<8xf32>
    %186 = vector.multi_reduction <add>, %183, %cst_106 [1] : vector<8x32xf32> to vector<8xf32>
    %187 = vector.shape_cast %186 : vector<8xf32> to vector<8x1xf32>
    %cst_107 = arith.constant 3.200000e+01 : f32
    %188 = vector.broadcast %cst_107 : f32 to vector<8x1xf32>
    %189 = arith.divf %187, %188 : vector<8x1xf32>
    %190 = vector.broadcast %189 : vector<8x1xf32> to vector<8x32xf32>
    %191 = arith.subf %183, %190 : vector<8x32xf32>
    %192 = arith.mulf %191, %191 : vector<8x32xf32>
    %cst_108 = arith.constant dense<0.000000e+00> : vector<8xf32>
    %193 = vector.multi_reduction <add>, %192, %cst_108 [1] : vector<8x32xf32> to vector<8xf32>
    %194 = vector.shape_cast %193 : vector<8xf32> to vector<8x1xf32>
    %cst_109 = arith.constant 3.200000e+01 : f32
    %195 = vector.broadcast %cst_109 : f32 to vector<8x1xf32>
    %196 = arith.divf %194, %195 : vector<8x1xf32>
    %197 = vector.broadcast %189 : vector<8x1xf32> to vector<8x32xf32>
    %198 = arith.subf %183, %197 : vector<8x32xf32>
    %cst_110 = arith.constant 9.99999974E-6 : f32
    %199 = vector.broadcast %cst_110 : f32 to vector<8x1xf32>
    %200 = arith.addf %196, %199 : vector<8x1xf32>
    %201 = math.rsqrt %200 : vector<8x1xf32>
    %202 = vector.broadcast %201 : vector<8x1xf32> to vector<8x32xf32>
    %203 = arith.mulf %198, %202 : vector<8x32xf32>
    %204 = vector.broadcast %184 : vector<1x32xf32> to vector<8x32xf32>
    %205 = arith.mulf %203, %204 : vector<8x32xf32>
    %206 = vector.broadcast %185 : vector<1x32xf32> to vector<8x32xf32>
    %207 = arith.addf %205, %206 : vector<8x32xf32>
    %208 = arith.truncf %207 : vector<8x32xf32> to vector<8x32xbf16>
    %c0_111 = arith.constant 0 : index
    %c0_112 = arith.constant 0 : index
    %209 = vector.load %arg12[%c0_111, %c0_112] : memref<32x128xbf16, #tpu.memory_space<vmem>>, vector<32x128xbf16>
    %cst_113 = arith.constant dense<0.000000e+00> : vector<8x128xf32>
    %210 = tpu.matmul %208, %209, %cst_113 {dimension_numbers = #tpu.dot_dimension_numbers<[1], [0], [0], [1], [0, 0, 1, 1], [], []>} : vector<8x32xbf16>, vector<32x128xbf16>, vector<8x128xf32> -> vector<8x128xf32>
    %c0_114 = arith.constant 0 : index
    %c0_115 = arith.constant 0 : index
    %211 = vector.load %arg13[%c0_114, %c0_115] : memref<1x128xf32, #tpu.memory_space<vmem>>, vector<1x128xf32>
    %212 = vector.broadcast %211 : vector<1x128xf32> to vector<8x128xf32>
    %213 = arith.addf %210, %212 : vector<8x128xf32>
    %cst_116 = arith.constant 5.000000e-01 : f32
    %214 = vector.broadcast %cst_116 : f32 to vector<8x128xf32>
    %215 = arith.mulf %214, %213 : vector<8x128xf32>
    %cst_117 = arith.constant 2.000000e+00 : f32
    %216 = math.sqrt %cst_117 : f32
    %217 = vector.broadcast %216 : f32 to vector<8x128xf32>
    %218 = arith.divf %213, %217 : vector<8x128xf32>
    %219 = math.erf %218 : vector<8x128xf32>
    %cst_118 = arith.constant 1.000000e+00 : f32
    %220 = vector.broadcast %cst_118 : f32 to vector<8x128xf32>
    %221 = arith.addf %220, %219 : vector<8x128xf32>
    %222 = arith.mulf %215, %221 : vector<8x128xf32>
    %223 = arith.truncf %222 : vector<8x128xf32> to vector<8x128xbf16>
    %c0_119 = arith.constant 0 : index
    %c0_120 = arith.constant 0 : index
    %224 = vector.load %arg14[%c0_119, %c0_120] : memref<128x32xbf16, #tpu.memory_space<vmem>>, vector<128x32xbf16>
    %cst_121 = arith.constant dense<0.000000e+00> : vector<8x32xf32>
    %225 = tpu.matmul %223, %224, %cst_121 {dimension_numbers = #tpu.dot_dimension_numbers<[1], [0], [0], [1], [0, 0, 1, 1], [], []>} : vector<8x128xbf16>, vector<128x32xbf16>, vector<8x32xf32> -> vector<8x32xf32>
    %c0_122 = arith.constant 0 : index
    %c0_123 = arith.constant 0 : index
    %226 = vector.load %arg15[%c0_122, %c0_123] : memref<1x32xf32, #tpu.memory_space<vmem>>, vector<1x32xf32>
    %227 = vector.broadcast %226 : vector<1x32xf32> to vector<8x32xf32>
    %228 = arith.addf %225, %227 : vector<8x32xf32>
    %229 = arith.addf %183, %228 : vector<8x32xf32>
    %c0_124 = arith.constant 0 : index
    %c0_125 = arith.constant 0 : index
    %c0_126 = arith.constant 0 : index
    %230 = vector.load %arg16[%c0_124, %c0_125, %c0_126] : memref<1x8x32xf32, #tpu.memory_space<vmem>>, vector<1x8x32xf32>
    %231 = vector.shape_cast %230 : vector<1x8x32xf32> to vector<8x32xf32>
    %232 = vector.shape_cast %229 : vector<8x32xf32> to vector<1x8x32xf32>
    tpu.vector_store %arg16[%c0_124, %c0_125, %c0_126], %232 {strides = array<i32>} : memref<1x8x32xf32, #tpu.memory_space<vmem>>, vector<1x8x32xf32>,
    return
  }
  func.func @transform_0(%arg0: i32, %arg1: i32) -> (i32, i32, i32) {
    %c0_i32 = arith.constant 0 : i32
    %c0_i32_0 = arith.constant 0 : i32
    %c0_i32_1 = arith.constant 0 : i32
    return %arg0, %c0_i32, %c0_i32_0 : i32, i32, i32
  }
  func.func @transform_1(%arg0: i32, %arg1: i32) -> (i32, i32) {
    %c0_i32 = arith.constant 0 : i32
    %c0_i32_0 = arith.constant 0 : i32
    %c0_i32_1 = arith.constant 0 : i32
    return %c0_i32, %c0_i32_0 : i32, i32
  }
  func.func @transform_2(%arg0: i32, %arg1: i32) -> (i32, i32) {
    %c0_i32 = arith.constant 0 : i32
    %c0_i32_0 = arith.constant 0 : i32
    %c0_i32_1 = arith.constant 0 : i32
    return %c0_i32, %c0_i32_0 : i32, i32
  }
  func.func @transform_3(%arg0: i32, %arg1: i32) -> (i32, i32, i32) {
    %c0_i32 = arith.constant 0 : i32
    %c0_i32_0 = arith.constant 0 : i32
    %c0_i32_1 = arith.constant 0 : i32
    %c0_i32_2 = arith.constant 0 : i32
    return %c0_i32, %c0_i32_0, %c0_i32_1 : i32, i32, i32
  }
  func.func @transform_4(%arg0: i32, %arg1: i32) -> (i32, i32, i32) {
    %c0_i32 = arith.constant 0 : i32
    %c0_i32_0 = arith.constant 0 : i32
    %c0_i32_1 = arith.constant 0 : i32
    %c0_i32_2 = arith.constant 0 : i32
    return %c0_i32, %c0_i32_0, %c0_i32_1 : i32, i32, i32
  }
  func.func @transform_5(%arg0: i32, %arg1: i32) -> (i32, i32, i32) {
    %c0_i32 = arith.constant 0 : i32
    %c0_i32_0 = arith.constant 0 : i32
    %c0_i32_1 = arith.constant 0 : i32
    %c0_i32_2 = arith.constant 0 : i32
    return %c0_i32, %c0_i32_0, %c0_i32_1 : i32, i32, i32
  }
  func.func @transform_6(%arg0: i32, %arg1: i32) -> (i32, i32, i32) {
    %c0_i32 = arith.constant 0 : i32
    %c0_i32_0 = arith.constant 0 : i32
    %c0_i32_1 = arith.constant 0 : i32
    %c0_i32_2 = arith.constant 0 : i32
    return %c0_i32, %c0_i32_0, %c0_i32_1 : i32, i32, i32
  }
  func.func @transform_7(%arg0: i32, %arg1: i32) -> (i32, i32) {
    %c0_i32 = arith.constant 0 : i32
    %c0_i32_0 = arith.constant 0 : i32
    %c0_i32_1 = arith.constant 0 : i32
    return %c0_i32, %c0_i32_0 : i32, i32
  }
  func.func @transform_8(%arg0: i32, %arg1: i32) -> (i32, i32) {
    %c0_i32 = arith.constant 0 : i32
    %c0_i32_0 = arith.constant 0 : i32
    %c0_i32_1 = arith.constant 0 : i32
    return %c0_i32, %c0_i32_0 : i32, i32
  }
  func.func @transform_9(%arg0: i32, %arg1: i32) -> (i32, i32) {
    %c0_i32 = arith.constant 0 : i32
    %c0_i32_0 = arith.constant 0 : i32
    %c0_i32_1 = arith.constant 0 : i32
    return %c0_i32, %c0_i32_0 : i32, i32
  }
  func.func @transform_10(%arg0: i32, %arg1: i32) -> (i32, i32) {
    %c0_i32 = arith.constant 0 : i32
    %c0_i32_0 = arith.constant 0 : i32
    %c0_i32_1 = arith.constant 0 : i32
    return %c0_i32, %c0_i32_0 : i32, i32
  }
  func.func @transform_11(%arg0: i32, %arg1: i32) -> (i32, i32) {
    %c0_i32 = arith.constant 0 : i32
    %c0_i32_0 = arith.constant 0 : i32
    %c0_i32_1 = arith.constant 0 : i32
    return %c0_i32, %c0_i32_0 : i32, i32
  }
  func.func @transform_12(%arg0: i32, %arg1: i32) -> (i32, i32) {
    %c0_i32 = arith.constant 0 : i32
    %c0_i32_0 = arith.constant 0 : i32
    %c0_i32_1 = arith.constant 0 : i32
    return %c0_i32, %c0_i32_0 : i32, i32
  }
  func.func @transform_13(%arg0: i32, %arg1: i32) -> (i32, i32) {
    %c0_i32 = arith.constant 0 : i32
    %c0_i32_0 = arith.constant 0 : i32
    %c0_i32_1 = arith.constant 0 : i32
    return %c0_i32, %c0_i32_0 : i32, i32
  }
  func.func @transform_14(%arg0: i32, %arg1: i32) -> (i32, i32, i32) {
    %c0_i32 = arith.constant 0 : i32
    %c0_i32_0 = arith.constant 0 : i32
    return %arg0, %arg1, %c0_i32 : i32, i32, i32
  }
}

</mosaic_0001>

<llo_original>
// kernel: tpu_custom_call.1
$region0: #{tpu_custom_call.1}
  #allocation0 [shape = 'u32[]', space=smem, size = 0x4, offset = 0x4, fixed_abs, tag = 'smem constant byte address 0x4 - core index']
  #allocation1 [shape = 'u32[144,128]{1,0:T(1,128)}', space=vmem, size = 0x12000, scoped, tag = 'internal scratch']
  #allocation2 [shape = 'bf16[4,16,128]{2,1,0:T(8,128)(2,1)}', space=vmem, size = 0x4000, scoped, tag = 'scratch operand']
  #allocation3 [shape = 'bf16[4,16,128]{2,1,0:T(8,128)(2,1)}', space=vmem, size = 0x4000, scoped, tag = 'scratch operand']
  #allocation4 [shape = 'f32[8,32]{1,0:T(8,128)}', space=vmem, size = 0x1000, scoped, tag = 'scratch operand']
  %s0 = inlined_call_operand.vmem [shape: f32[2,16,32], index: 0, kind: input, shape index: {}]
  %s1 = inlined_call_operand.vmem [shape: f32[1,32], index: 1, kind: input, shape index: {}]
  %s2 = inlined_call_operand.vmem [shape: f32[1,32], index: 2, kind: input, shape index: {}]
  %s3 = inlined_call_operand.vmem [shape: bf16[4,32,128], index: 3, kind: input, shape index: {}]
  %s4 = inlined_call_operand.vmem [shape: bf16[4,32,128], index: 4, kind: input, shape index: {}]
  %s5 = inlined_call_operand.vmem [shape: bf16[4,32,128], index: 5, kind: input, shape index: {}]
  %s6 = inlined_call_operand.vmem [shape: bf16[4,128,32], index: 6, kind: input, shape index: {}]
  %s7 = inlined_call_operand.vmem [shape: f32[1,32], index: 7, kind: input, shape index: {}]
  %s8 = inlined_call_operand.vmem [shape: f32[1,32], index: 8, kind: input, shape index: {}]
  %s9 = inlined_call_operand.vmem [shape: f32[1,32], index: 9, kind: input, shape index: {}]
  %s10 = inlined_call_operand.vmem [shape: bf16[32,128], index: 10, kind: input, shape index: {}]
  %s11 = inlined_call_operand.vmem [shape: f32[1,128], index: 11, kind: input, shape index: {}]
  %s12 = inlined_call_operand.vmem [shape: bf16[128,32], index: 12, kind: input, shape index: {}]
  %s13 = inlined_call_operand.vmem [shape: f32[1,32], index: 13, kind: input, shape index: {}]
  %s14 = inlined_call_operand.hbm [shape: f32[2,16,32], index: 14, kind: output, shape index: {}]
  %s15 = sld [smem:[#allocation0]]
  $region93: #{tpu_custom_call.1} parent=0
    _
  %s17 = ssub.s32 1, %s15
  %s18 = scalar_select 0, %s17, %s15
  $region1: #{tpu_custom_call.1} parent=0
    #allocation5 [shape = 'u8[8192]{0}', space=vmem, size = 0x2000, scoped, tag = 'output window, operand 0']
    #allocation6 [shape = 's32[2]{0}', space=sflag, size = 0x8, scoped, tag = 'scoped memory for tpu_custom_call.1']
    %19 = vsyncpa [#allocation6], 0
    %s20 = scalar_lea.sflag [#allocation6], 1
    %21 = vsyncpa %s20, 0
    loop: start=0, step=1, limit=6
    $region2: #{tpu_custom_call.1} parent=1 // loop_pre_header
      _
    $region3: #{tpu_custom_call.1} parent=1 // loop_header
      %s23 = sphi 0, %s27
      %p24 = scmp.ge.s32.totalorder %s23, 6
      %s30 = sphi 0, %s42
      %s31 = sphi 0, %s38
      %s32 = sphi 0, %s30
      %s33 = sphi 0, %s31
      %s34 = sphi 0, %s32
      %s35 = sphi 0, %s33
      %s45 = sphi 0, %s47
      %s48 = sphi 0, %s45
      %s49 = sphi 0, %s48
      %s65 = sphi 0, %s49
      %s69 = sphi 0, %s69
      %s71 = sphi 0, %s69
      %s72 = sphi 0, %s71
      %s86 = sphi 0, %s72
      %s90 = sphi 0, %s90
      %s92 = sphi 0, %s90
      %s93 = sphi 0, %s92
      %s107 = sphi 0, %s93
      %s111 = sphi 0, %s111
      %s113 = sphi 0, %s111
      %s114 = sphi 0, %s113
      %s128 = sphi 0, %s114
      %s132 = sphi 0, %s132
      %s134 = sphi 0, %s132
      %s135 = sphi 0, %s134
      %s149 = sphi 0, %s135
      %s153 = sphi 0, %s153
      %s155 = sphi 0, %s153
      %s156 = sphi 0, %s155
      %s170 = sphi 0, %s156
      %s174 = sphi 0, %s174
      %s176 = sphi 0, %s174
      %s177 = sphi 0, %s176
      %s191 = sphi 0, %s177
      %s195 = sphi 0, %s195
      %s197 = sphi 0, %s195
      %s198 = sphi 0, %s197
      %s212 = sphi 0, %s198
      %s216 = sphi 0, %s216
      %s218 = sphi 0, %s216
      %s219 = sphi 0, %s218
      %s233 = sphi 0, %s219
      %s237 = sphi 0, %s237
      %s239 = sphi 0, %s237
      %s240 = sphi 0, %s239
      %s254 = sphi 0, %s240
      %s258 = sphi 0, %s258
      %s260 = sphi 0, %s258
      %s261 = sphi 0, %s260
      %s275 = sphi 0, %s261
      %s279 = sphi 0, %s279
      %s281 = sphi 0, %s279
      %s282 = sphi 0, %s281
      %s296 = sphi 0, %s282
      %s300 = sphi 0, %s300
      %s302 = sphi 0, %s300
      %s303 = sphi 0, %s302
      %s317 = sphi 0, %s303
      %s321 = sphi 0, %s321
      %s323 = sphi 0, %s321
      %s324 = sphi 0, %s323
      %s338 = sphi 0, %s324
      %s346 = sphi 0, %s348
      %s349 = sphi 0, %s346
      %s350 = sphi 0, %s349
      %s366 = sphi 0, %s350
    $region4: #{tpu_custom_call.1} parent=1 // loop_header_branch
      %26 = sbr.rel (%p24) target = $region8
    $region5: #{tpu_custom_call.1} parent=1 // loop_body
      %s28 = ssub.s32 %s23, 1
      %s29 = ssub.s32 %s23, 2
      %s36 = sadd.s32 1, %s31
      %p37 = scmp.ge.s32.totalorder %s36, 2
      %s38 = scalar_select %p37, 0, %s36
      %s39 = sadd.s32 1, %s30
      %s40 = scalar_select %p37, %s39, %s30
      %p41 = scmp.ge.s32.totalorder %s40, 2
      %s42 = scalar_select %p41, 0, %s40
      %s43 = ssub.s32 %s30, %s42
      %p44 = scmp.eq.s32.totalorder %s43, 0
      %s46 = sadd.s32 %s45, 1
      %s47 = scalar_select %p44, %s45, %s46
      %p50 = pneg %p44
      %p51 = scmp.eq.s32.totalorder %s23, 3
      %p52 = por %p50, %p51
      %p53 = scmp.ne.s32.totalorder %s45, %s48
      %p54 = scmp.eq.s32.totalorder %s23, 0
      %p55 = por %p53, %p54
      %p56 = scmp.ne.s32.totalorder %s45, %s48
      %p57 = scmp.eq.s32.totalorder %s28, 3
      %p58 = por %p56, %p57
      %p59 = scmp.ne.s32.totalorder %s48, %s49
      %p60 = scmp.eq.s32.totalorder %s28, 0
      %p61 = por %p59, %p60
      %p62 = scmp.ne.s32.totalorder %s48, %s49
      %p63 = scmp.eq.s32.totalorder %s29, 3
      %p64 = por %p62, %p63
      %p66 = scmp.ne.s32.totalorder %s49, %s65
      %p67 = scmp.eq.s32.totalorder %s29, 0
      %p68 = por %p66, %p67
      %s70 = sadd.s32 %s69, 1
      %p73 = scmp.eq.s32.totalorder %s23, 3
      %p74 = scmp.ne.s32.totalorder %s69, %s71
      %p75 = scmp.eq.s32.totalorder %s23, 0
      %p76 = por %p74, %p75
      %p77 = scmp.ne.s32.totalorder %s69, %s71
      %p78 = scmp.eq.s32.totalorder %s28, 3
      %p79 = por %p77, %p78
      %p80 = scmp.ne.s32.totalorder %s71, %s72
      %p81 = scmp.eq.s32.totalorder %s28, 0
      %p82 = por %p80, %p81
      %p83 = scmp.ne.s32.totalorder %s71, %s72
      %p84 = scmp.eq.s32.totalorder %s29, 3
      %p85 = por %p83, %p84
      %p87 = scmp.ne.s32.totalorder %s72, %s86
      %p88 = scmp.eq.s32.totalorder %s29, 0
      %p89 = por %p87, %p88
      %s91 = sadd.s32 %s90, 1
      %p94 = scmp.eq.s32.totalorder %s23, 3
      %p95 = scmp.ne.s32.totalorder %s90, %s92
      %p96 = scmp.eq.s32.totalorder %s23, 0
      %p97 = por %p95, %p96
      %p98 = scmp.ne.s32.totalorder %s90, %s92
      %p99 = scmp.eq.s32.totalorder %s28, 3
      %p100 = por %p98, %p99
      %p101 = scmp.ne.s32.totalorder %s92, %s93
      %p102 = scmp.eq.s32.totalorder %s28, 0
      %p103 = por %p101, %p102
      %p104 = scmp.ne.s32.totalorder %s92, %s93
      %p105 = scmp.eq.s32.totalorder %s29, 3
      %p106 = por %p104, %p105
      %p108 = scmp.ne.s32.totalorder %s93, %s107
      %p109 = scmp.eq.s32.totalorder %s29, 0
      %p110 = por %p108, %p109
      %s112 = sadd.s32 %s111, 1
      %p115 = scmp.eq.s32.totalorder %s23, 3
      %p116 = scmp.ne.s32.totalorder %s111, %s113
      %p117 = scmp.eq.s32.totalorder %s23, 0
      %p118 = por %p116, %p117
      %p119 = scmp.ne.s32.totalorder %s111, %s113
      %p120 = scmp.eq.s32.totalorder %s28, 3
      %p121 = por %p119, %p120
      %p122 = scmp.ne.s32.totalorder %s113, %s114
      %p123 = scmp.eq.s32.totalorder %s28, 0
      %p124 = por %p122, %p123
      %p125 = scmp.ne.s32.totalorder %s113, %s114
      %p126 = scmp.eq.s32.totalorder %s29, 3
      %p127 = por %p125, %p126
      %p129 = scmp.ne.s32.totalorder %s114, %s128
      %p130 = scmp.eq.s32.totalorder %s29, 0
      %p131 = por %p129, %p130
      %s133 = sadd.s32 %s132, 1
      %p136 = scmp.eq.s32.totalorder %s23, 3
      %p137 = scmp.ne.s32.totalorder %s132, %s134
      %p138 = scmp.eq.s32.totalorder %s23, 0
      %p139 = por %p137, %p138
      %p140 = scmp.ne.s32.totalorder %s132, %s134
      %p141 = scmp.eq.s32.totalorder %s28, 3
      %p142 = por %p140, %p141
      %p143 = scmp.ne.s32.totalorder %s134, %s135
      %p144 = scmp.eq.s32.totalorder %s28, 0
      %p145 = por %p143, %p144
      %p146 = scmp.ne.s32.totalorder %s134, %s135
      %p147 = scmp.eq.s32.totalorder %s29, 3
      %p148 = por %p146, %p147
      %p150 = scmp.ne.s32.totalorder %s135, %s149
      %p151 = scmp.eq.s32.totalorder %s29, 0
      %p152 = por %p150, %p151
      %s154 = sadd.s32 %s153, 1
      %p157 = scmp.eq.s32.totalorder %s23, 3
      %p158 = scmp.ne.s32.totalorder %s153, %s155
      %p159 = scmp.eq.s32.totalorder %s23, 0
      %p160 = por %p158, %p159
      %p161 = scmp.ne.s32.totalorder %s153, %s155
      %p162 = scmp.eq.s32.totalorder %s28, 3
      %p163 = por %p161, %p162
      %p164 = scmp.ne.s32.totalorder %s155, %s156
      %p165 = scmp.eq.s32.totalorder %s28, 0
      %p166 = por %p164, %p165
      %p167 = scmp.ne.s32.totalorder %s155, %s156
      %p168 = scmp.eq.s32.totalorder %s29, 3
      %p169 = por %p167, %p168
      %p171 = scmp.ne.s32.totalorder %s156, %s170
      %p172 = scmp.eq.s32.totalorder %s29, 0
      %p173 = por %p171, %p172
      %s175 = sadd.s32 %s174, 1
      %p178 = scmp.eq.s32.totalorder %s23, 3
      %p179 = scmp.ne.s32.totalorder %s174, %s176
      %p180 = scmp.eq.s32.totalorder %s23, 0
      %p181 = por %p179, %p180
      %p182 = scmp.ne.s32.totalorder %s174, %s176
      %p183 = scmp.eq.s32.totalorder %s28, 3
      %p184 = por %p182, %p183
      %p185 = scmp.ne.s32.totalorder %s176, %s177
      %p186 = scmp.eq.s32.totalorder %s28, 0
      %p187 = por %p185, %p186
      %p188 = scmp.ne.s32.totalorder %s176, %s177
      %p189 = scmp.eq.s32.totalorder %s29, 3
      %p190 = por %p188, %p189
      %p192 = scmp.ne.s32.totalorder %s177, %s191
      %p193 = scmp.eq.s32.totalorder %s29, 0
      %p194 = por %p192, %p193
      %s196 = sadd.s32 %s195, 1
      %p199 = scmp.eq.s32.totalorder %s23, 3
      %p200 = scmp.ne.s32.totalorder %s195, %s197
      %p201 = scmp.eq.s32.totalorder %s23, 0
      %p202 = por %p200, %p201
      %p203 = scmp.ne.s32.totalorder %s195, %s197
      %p204 = scmp.eq.s32.totalorder %s28, 3
      %p205 = por %p203, %p204
      %p206 = scmp.ne.s32.totalorder %s197, %s198
      %p207 = scmp.eq.s32.totalorder %s28, 0
      %p208 = por %p206, %p207
      %p209 = scmp.ne.s32.totalorder %s197, %s198
      %p210 = scmp.eq.s32.totalorder %s29, 3
      %p211 = por %p209, %p210
      %p213 = scmp.ne.s32.totalorder %s198, %s212
      %p214 = scmp.eq.s32.totalorder %s29, 0
      %p215 = por %p213, %p214
      %s217 = sadd.s32 %s216, 1
      %p220 = scmp.eq.s32.totalorder %s23, 3
      %p221 = scmp.ne.s32.totalorder %s216, %s218
      %p222 = scmp.eq.s32.totalorder %s23, 0
      %p223 = por %p221, %p222
      %p224 = scmp.ne.s32.totalorder %s216, %s218
      %p225 = scmp.eq.s32.totalorder %s28, 3
      %p226 = por %p224, %p225
      %p227 = scmp.ne.s32.totalorder %s218, %s219
      %p228 = scmp.eq.s32.totalorder %s28, 0
      %p229 = por %p227, %p228
      %p230 = scmp.ne.s32.totalorder %s218, %s219
      %p231 = scmp.eq.s32.totalorder %s29, 3
      %p232 = por %p230, %p231
      %p234 = scmp.ne.s32.totalorder %s219, %s233
      %p235 = scmp.eq.s32.totalorder %s29, 0
      %p236 = por %p234, %p235
      %s238 = sadd.s32 %s237, 1
      %p241 = scmp.eq.s32.totalorder %s23, 3
      %p242 = scmp.ne.s32.totalorder %s237, %s239
      %p243 = scmp.eq.s32.totalorder %s23, 0
      %p244 = por %p242, %p243
      %p245 = scmp.ne.s32.totalorder %s237, %s239
      %p246 = scmp.eq.s32.totalorder %s28, 3
      %p247 = por %p245, %p246
      %p248 = scmp.ne.s32.totalorder %s239, %s240
      %p249 = scmp.eq.s32.totalorder %s28, 0
      %p250 = por %p248, %p249
      %p251 = scmp.ne.s32.totalorder %s239, %s240
      %p252 = scmp.eq.s32.totalorder %s29, 3
      %p253 = por %p251, %p252
      %p255 = scmp.ne.s32.totalorder %s240, %s254
      %p256 = scmp.eq.s32.totalorder %s29, 0
      %p257 = por %p255, %p256
      %s259 = sadd.s32 %s258, 1
      %p262 = scmp.eq.s32.totalorder %s23, 3
      %p263 = scmp.ne.s32.totalorder %s258, %s260
      %p264 = scmp.eq.s32.totalorder %s23, 0
      %p265 = por %p263, %p264
      %p266 = scmp.ne.s32.totalorder %s258, %s260
      %p267 = scmp.eq.s32.totalorder %s28, 3
      %p268 = por %p266, %p267
      %p269 = scmp.ne.s32.totalorder %s260, %s261
      %p270 = scmp.eq.s32.totalorder %s28, 0
      %p271 = por %p269, %p270
      %p272 = scmp.ne.s32.totalorder %s260, %s261
      %p273 = scmp.eq.s32.totalorder %s29, 3
      %p274 = por %p272, %p273
      %p276 = scmp.ne.s32.totalorder %s261, %s275
      %p277 = scmp.eq.s32.totalorder %s29, 0
      %p278 = por %p276, %p277
      %s280 = sadd.s32 %s279, 1
      %p283 = scmp.eq.s32.totalorder %s23, 3
      %p284 = scmp.ne.s32.totalorder %s279, %s281
      %p285 = scmp.eq.s32.totalorder %s23, 0
      %p286 = por %p284, %p285
      %p287 = scmp.ne.s32.totalorder %s279, %s281
      %p288 = scmp.eq.s32.totalorder %s28, 3
      %p289 = por %p287, %p288
      %p290 = scmp.ne.s32.totalorder %s281, %s282
      %p291 = scmp.eq.s32.totalorder %s28, 0
      %p292 = por %p290, %p291
      %p293 = scmp.ne.s32.totalorder %s281, %s282
      %p294 = scmp.eq.s32.totalorder %s29, 3
      %p295 = por %p293, %p294
      %p297 = scmp.ne.s32.totalorder %s282, %s296
      %p298 = scmp.eq.s32.totalorder %s29, 0
      %p299 = por %p297, %p298
      %s301 = sadd.s32 %s300, 1
      %p304 = scmp.eq.s32.totalorder %s23, 3
      %p305 = scmp.ne.s32.totalorder %s300, %s302
      %p306 = scmp.eq.s32.totalorder %s23, 0
      %p307 = por %p305, %p306
      %p308 = scmp.ne.s32.totalorder %s300, %s302
      %p309 = scmp.eq.s32.totalorder %s28, 3
      %p310 = por %p308, %p309
      %p311 = scmp.ne.s32.totalorder %s302, %s303
      %p312 = scmp.eq.s32.totalorder %s28, 0
      %p313 = por %p311, %p312
      %p314 = scmp.ne.s32.totalorder %s302, %s303
      %p315 = scmp.eq.s32.totalorder %s29, 3
      %p316 = por %p314, %p315
      %p318 = scmp.ne.s32.totalorder %s303, %s317
      %p319 = scmp.eq.s32.totalorder %s29, 0
      %p320 = por %p318, %p319
      %s322 = sadd.s32 %s321, 1
      %p325 = scmp.eq.s32.totalorder %s23, 3
      %p326 = scmp.ne.s32.totalorder %s321, %s323
      %p327 = scmp.eq.s32.totalorder %s23, 0
      %p328 = por %p326, %p327
      %p329 = scmp.ne.s32.totalorder %s321, %s323
      %p330 = scmp.eq.s32.totalorder %s28, 3
      %p331 = por %p329, %p330
      %p332 = scmp.ne.s32.totalorder %s323, %s324
      %p333 = scmp.eq.s32.totalorder %s28, 0
      %p334 = por %p332, %p333
      %p335 = scmp.ne.s32.totalorder %s323, %s324
      %p336 = scmp.eq.s32.totalorder %s29, 3
      %p337 = por %p335, %p336
      %p339 = scmp.ne.s32.totalorder %s324, %s338
      %p340 = scmp.eq.s32.totalorder %s29, 0
      %p341 = por %p339, %p340
      %s342 = ssub.s32 %s30, %s42
      %s343 = ssub.s32 %s31, %s38
      %s344 = sor.u32 %s342, %s343
      %p345 = scmp.eq.s32.totalorder %s344, 0
      %s347 = sadd.s32 %s346, 1
      %s348 = scalar_select %p345, %s346, %s347
      %p351 = pneg %p345
      %p352 = scmp.eq.s32.totalorder %s23, 3
      %p353 = por %p351, %p352
      %p354 = scmp.ne.s32.totalorder %s346, %s349
      %p355 = scmp.eq.s32.totalorder %s23, 0
      %p356 = por %p354, %p355
      %p357 = scmp.ne.s32.totalorder %s346, %s349
      %p358 = scmp.eq.s32.totalorder %s28, 3
      %p359 = por %p357, %p358
      %p360 = scmp.ne.s32.totalorder %s349, %s350
      %p361 = scmp.eq.s32.totalorder %s28, 0
      %p362 = por %p360, %p361
      %p363 = scmp.ne.s32.totalorder %s349, %s350
      %p364 = scmp.eq.s32.totalorder %s29, 3
      %p365 = por %p363, %p364
      %p367 = scmp.ne.s32.totalorder %s350, %s366
      %p368 = scmp.eq.s32.totalorder %s29, 0
      %p369 = por %p367, %p368
      %p370 = scmp.le.s32.totalorder 1, %s23
      %p371 = scmp.lt.s32.totalorder %s23, 5
      %p372 = pnand %p370, %p371
      %p373 = pneg %p372
      // Predicated region
      $region9: #{tpu_custom_call.1} parent=5 // pred_check
        _
      $region10: #{tpu_custom_call.1} parent=5 // pred_check_branch
        %375 = sbr.rel (%p372) target = $region12
      $region11: #{tpu_custom_call.1} parent=5 // pred_region
        %s376 = ssub.s32 %s23, 1
        // Predicated region
        $region13: #{tpu_custom_call.1} parent=11 // pred_check
          %p377 = pneg %p61
        $region14: #{tpu_custom_call.1} parent=11 // pred_check_branch
          %379 = sbr.rel (%p377) target = $region16
        $region15: #{tpu_custom_call.1} parent=11 // pred_region
          %p380 = scmp.lt.s32.totalorder %s32, 1
          %s381 = scalar_select %p380, %s32, 1
          %s382 = smul.addr %s381, 2
          %s383 = smul.addr %s382, 8
          %s384 = scalar_lea.vmem %s0, %s383
        $region16: #{tpu_custom_call.1} parent=11 // pred_fallthru
          _
        // Predicated region
        $region17: #{tpu_custom_call.1} parent=11 // pred_check
          %p385 = pneg %p82
        $region18: #{tpu_custom_call.1} parent=11 // pred_check_branch
          %387 = sbr.rel (%p385) target = $region20
        $region19: #{tpu_custom_call.1} parent=11 // pred_region
          _
        $region20: #{tpu_custom_call.1} parent=11 // pred_fallthru
          _
        // Predicated region
        $region21: #{tpu_custom_call.1} parent=11 // pred_check
          %p388 = pneg %p103
        $region22: #{tpu_custom_call.1} parent=11 // pred_check_branch
          %390 = sbr.rel (%p388) target = $region24
        $region23: #{tpu_custom_call.1} parent=11 // pred_region
          _
        $region24: #{tpu_custom_call.1} parent=11 // pred_fallthru
          _
        // Predicated region
        $region25: #{tpu_custom_call.1} parent=11 // pred_check
          %p391 = pneg %p124
        $region26: #{tpu_custom_call.1} parent=11 // pred_check_branch
          %393 = sbr.rel (%p391) target = $region28
        $region27: #{tpu_custom_call.1} parent=11 // pred_region
          _
        $region28: #{tpu_custom_call.1} parent=11 // pred_fallthru
          _
        // Predicated region
        $region29: #{tpu_custom_call.1} parent=11 // pred_check
          %p394 = pneg %p145
        $region30: #{tpu_custom_call.1} parent=11 // pred_check_branch
          %396 = sbr.rel (%p394) target = $region32
        $region31: #{tpu_custom_call.1} parent=11 // pred_region
          _
        $region32: #{tpu_custom_call.1} parent=11 // pred_fallthru
          _
        // Predicated region
        $region33: #{tpu_custom_call.1} parent=11 // pred_check
          %p397 = pneg %p166
        $region34: #{tpu_custom_call.1} parent=11 // pred_check_branch
          %399 = sbr.rel (%p397) target = $region36
        $region35: #{tpu_custom_call.1} parent=11 // pred_region
          _
        $region36: #{tpu_custom_call.1} parent=11 // pred_fallthru
          _
        // Predicated region
        $region37: #{tpu_custom_call.1} parent=11 // pred_check
          %p400 = pneg %p187
        $region38: #{tpu_custom_call.1} parent=11 // pred_check_branch
          %402 = sbr.rel (%p400) target = $region40
        $region39: #{tpu_custom_call.1} parent=11 // pred_region
          _
        $region40: #{tpu_custom_call.1} parent=11 // pred_fallthru
          _
        // Predicated region
        $region41: #{tpu_custom_call.1} parent=11 // pred_check
          %p403 = pneg %p208
        $region42: #{tpu_custom_call.1} parent=11 // pred_check_branch
          %405 = sbr.rel (%p403) target = $region44
        $region43: #{tpu_custom_call.1} parent=11 // pred_region
          _
        $region44: #{tpu_custom_call.1} parent=11 // pred_fallthru
          _
        // Predicated region
        $region45: #{tpu_custom_call.1} parent=11 // pred_check
          %p406 = pneg %p229
        $region46: #{tpu_custom_call.1} parent=11 // pred_check_branch
          %408 = sbr.rel (%p406) target = $region48
        $region47: #{tpu_custom_call.1} parent=11 // pred_region
          _
        $region48: #{tpu_custom_call.1} parent=11 // pred_fallthru
          _
        // Predicated region
        $region49: #{tpu_custom_call.1} parent=11 // pred_check
          %p409 = pneg %p250
        $region50: #{tpu_custom_call.1} parent=11 // pred_check_branch
          %411 = sbr.rel (%p409) target = $region52
        $region51: #{tpu_custom_call.1} parent=11 // pred_region
          _
        $region52: #{tpu_custom_call.1} parent=11 // pred_fallthru
          _
        // Predicated region
        $region53: #{tpu_custom_call.1} parent=11 // pred_check
          %p412 = pneg %p271
        $region54: #{tpu_custom_call.1} parent=11 // pred_check_branch
          %414 = sbr.rel (%p412) target = $region56
        $region55: #{tpu_custom_call.1} parent=11 // pred_region
          _
        $region56: #{tpu_custom_call.1} parent=11 // pred_fallthru
          _
        // Predicated region
        $region57: #{tpu_custom_call.1} parent=11 // pred_check
          %p415 = pneg %p292
        $region58: #{tpu_custom_call.1} parent=11 // pred_check_branch
          %417 = sbr.rel (%p415) target = $region60
        $region59: #{tpu_custom_call.1} parent=11 // pred_region
          _
        $region60: #{tpu_custom_call.1} parent=11 // pred_fallthru
          _
        // Predicated region
        $region61: #{tpu_custom_call.1} parent=11 // pred_check
          %p418 = pneg %p313
        $region62: #{tpu_custom_call.1} parent=11 // pred_check_branch
          %420 = sbr.rel (%p418) target = $region64
        $region63: #{tpu_custom_call.1} parent=11 // pred_region
          _
        $region64: #{tpu_custom_call.1} parent=11 // pred_fallthru
          _
        // Predicated region
        $region65: #{tpu_custom_call.1} parent=11 // pred_check
          %p421 = pneg %p334
        $region66: #{tpu_custom_call.1} parent=11 // pred_check_branch
          %423 = sbr.rel (%p421) target = $region68
        $region67: #{tpu_custom_call.1} parent=11 // pred_region
          _
        $region68: #{tpu_custom_call.1} parent=11 // pred_fallthru
          _
      $region12: #{tpu_custom_call.1} parent=5 // pred_fallthru
        _
      %p424 = scmp.lt.s32.totalorder %s23, 4
      // Predicated region
      $region69: #{tpu_custom_call.1} parent=5 // pred_check
        %p425 = pneg %p424
      $region70: #{tpu_custom_call.1} parent=5 // pred_check_branch
        %427 = sbr.rel (%p425) target = $region72
      $region71: #{tpu_custom_call.1} parent=5 // pred_region
        _
      $region72: #{tpu_custom_call.1} parent=5 // pred_fallthru
        _
      %p428 = scmp.le.s32.totalorder 1, %s23
      %p429 = scmp.lt.s32.totalorder %s23, 5
      %p430 = pnand %p428, %p429
      %p431 = pneg %p430
      // Predicated region
      $region73: #{tpu_custom_call.1} parent=5 // pred_check
        _
      $region74: #{tpu_custom_call.1} parent=5 // pred_check_branch
        %433 = sbr.rel (%p430) target = $region76
      $region75: #{tpu_custom_call.1} parent=5 // pred_region
        %s434 = ssub.s32 %s23, 1
        %p435 = scmp.lt.s32.totalorder %s32, 1
        %s436 = scalar_select %p435, %s32, 1
        %s437 = smul.addr %s436, 2
        %s438 = smul.addr %s437, 8
        %s439 = scalar_lea.vmem %s0, %s438
        %p440 = pneg %p61
        %p441 = pneg %p58
        %p442 = pneg %p82
        %p443 = pneg %p79
        %p444 = pneg %p103
        %p445 = pneg %p100
        %p446 = pneg %p124
        %p447 = pneg %p121
        %p448 = pneg %p145
        %p449 = pneg %p142
        %p450 = pneg %p166
        %p451 = pneg %p163
        %p452 = pneg %p187
        %p453 = pneg %p184
        %p454 = pneg %p208
        %p455 = pneg %p205
        %p456 = pneg %p229
        %p457 = pneg %p226
        %p458 = pneg %p250
        %p459 = pneg %p247
        %p460 = pneg %p271
        %p461 = pneg %p268
        %p462 = pneg %p292
        %p463 = pneg %p289
        %p464 = pneg %p313
        %p465 = pneg %p310
        %p466 = pneg %p334
        %p467 = pneg %p331
        %p468 = pneg %p362
        %p469 = pneg %p359
        %s470 = sand.u32 %s349, 1
        %s471 = scalar_lea.sflag [#allocation6], %s470
        %s472 = sand.u32 %s349, 1
        %s473 = smul.addr %s472, 8
        %s474 = scalar_lea.vmem [#allocation5], %s473
        %p475 = scmp.lt.s32.totalorder %s32, 1
        %s476 = scalar_select %p475, %s32, 1
        %s477 = smul.addr %s476, 2
        %s478 = smul.addr %s477, 8
        %s479 = scalar_lea.vmem %s0, %s478
        %v481 = vld [vmem:[%s1] sm:$0x1]
        %v482 = vld [vmem:[%s2] sm:$0x1]
        %p483 = scmp.eq.s32.totalorder %s33, 0
        // Predicated region
        $region77: #{tpu_custom_call.1} parent=75 // pred_check
          %p484 = pneg %p483
        $region78: #{tpu_custom_call.1} parent=75 // pred_check_branch
          %486 = sbr.rel (%p484) target = $region80
        $region79: #{tpu_custom_call.1} parent=75 // pred_region
          %v487 = vld [vmem:[%s479] sm:$0xff]
          %v488 = vld [vmem:[%s479 + $0x8] sm:$0xff]
          %vm489 = vcmask 261120
          %v490 = vsel %vm489, %v487, 0.0
          %491 = vadd.xlane.f32.xlu0 %v490
          %v492 = vpop.xlane.xlu0 %491
          %v493 = vsel %vm489, %v488, 0.0
          %494 = vadd.xlane.f32.xlu0 %v493
          %v495 = vpop.xlane.xlu0 %494
          %v496 = vrcp.pop 32.0
          %v497 = vmul.f32 %v492, %v496
          %v498 = vmul.f32 %v495, %v496
          %v499 = vsub.f32 %v487, %v497
          %v500 = vsub.f32 %v488, %v498
          %v501 = vmul.f32 %v499, %v499
          %v502 = vmul.f32 %v500, %v500
          %v503 = vsel %vm489, %v501, 0.0
          %504 = vadd.xlane.f32.xlu0 %v503
          %v505 = vpop.xlane.xlu0 %504
          %v506 = vsel %vm489, %v502, 0.0
          %507 = vadd.xlane.f32.xlu0 %v506
          %v508 = vpop.xlane.xlu0 %507
          %v509 = vmul.f32 %v505, %v496
          %v510 = vmul.f32 %v508, %v496
          %v511 = vadd.f32 %v509, 1e-05
          %v512 = vadd.f32 %v510, 1e-05
          %v513 = vrsqrt.pop %v511
          %v514 = vrsqrt.pop %v512
          %v515 = vmul.f32 %v499, %v513
          %v516 = vmul.f32 %v500, %v514
          %v518 = vlaneseq
          %v519 = vshrl.u32 %v518, 7
          %v520 = vsub.s32 0, %v519
          %v521 = vrot.slane %v481, %v520
          %v523 = vmul.f32 %v515, %v521
          %v524 = vmul.f32 %v516, %v521
          %v526 = vlaneseq
          %v527 = vshrl.u32 %v526, 7
          %v528 = vsub.s32 0, %v527
          %v529 = vrot.slane %v482, %v528
          %v531 = vadd.f32 %v523, %v529
          %v532 = vadd.f32 %v524, %v529
          %v533 = vpack.c.bf16 %v532, %v531
          %v534 = vld [vmem:[%s4] sm:$0xf]
          %v535 = vld [vmem:[%s4 + $0x4] sm:$0xf]
          %v536 = vld [vmem:[%s4 + $0x8] sm:$0xf]
          %v537 = vld [vmem:[%s4 + $0xc] sm:$0xf]
          %v542 = vunpack.c.l.b16 %v534
          %v543 = vunpack.c.l.b16 %v535
          %v544 = vunpack.c.l.b16 %v536
          %v545 = vunpack.c.l.b16 %v537
          %v546 = vpack.c.b16 %v543, %v542
          %v547 = vpack.c.b16 %v545, %v544
          %v551 = vsel %vm489, %v533, 0
          %553 = vmatprep.subr.bf16.mxu0 0
          %554 = vmatpush1.bf16.msra.mxu0 0
          %555 = vmatprep.subr.bf16.mxu0 0
          %556 = vmatpush1.bf16.msra.mxu0 0
          %557 = vmatprep.subr.bf16.mxu0 0
          %558 = vmatpush1.bf16.msra.mxu0 0
          %559 = vmatprep.subr.bf16.mxu0 0
          %560 = vmatpush1.bf16.msra.mxu0 0
          %561 = vmatprep.subr.bf16.mxu0 0
          %562 = vmatpush1.bf16.msra.mxu0 0
          %563 = vmatprep.subr.bf16.mxu0 0
          %564 = vmatpush1.bf16.msra.mxu0 0
          %565 = vmatprep.subr.bf16.mxu0 0
          %566 = vmatpush1.bf16.msra.mxu0 %v547
          %567 = vmatprep.subr.bf16.mxu0 0
          %568 = vmatpush1.bf16.msra.mxu0 %v546
          %569 = vmatprep.subr.bf16.mxu0 0
          %570 = vmatpush2.bf16.msra.mxu0 0
          %571 = vmatprep.subr.bf16.mxu0 0
          %572 = vmatpush2.bf16.msra.mxu0 0
          %573 = vmatprep.subr.bf16.mxu0 0
          %574 = vmatpush2.bf16.msra.mxu0 0
          %575 = vmatprep.subr.bf16.mxu0 0
          %576 = vmatpush2.bf16.msra.mxu0 0
          %577 = vmatprep.subr.bf16.mxu0 0
          %578 = vmatpush2.bf16.msra.mxu0 0
          %579 = vmatprep.subr.bf16.mxu0 0
          %580 = vmatpush2.bf16.msra.mxu0 0
          %581 = vmatprep.subr.bf16.mxu0 0
          %582 = vmatpush2.bf16.msra.mxu0 0
          %583 = vmatprep.subr.bf16.mxu0 0
          %584 = vmatpush2.bf16.msra.mxu0 0
          %585 = vmatprep.mubr.bf16.mxu0 0
          %586 = vmatmul.mubr.bf16.gmra.mxu0 %v551
          %v587 = vpop.f32.mrf.mxu0
          %v588 = vadd.f32 0.0, %v587
          %v589 = vpop.f32.mrf.mxu0
          %v590 = vpop.f32.mrf.mxu0
          %v591 = vadd.f32 0.0, %v590
          %v592 = vpop.f32.mrf.mxu0
          %593 = vdwg.mxu0
          %v594 = vpack.c.bf16 %v591, %v588
          %v596 = vunpack.c.l.b16 %v594
          %v597 = vunpack.c.h.b16 %v594
          %v598 = vpack.c.b16 %v596, %v596
          %v599 = vpack.c.b16 %v597, %v597
          %602 = vst [vmem:[#allocation2] sm:$0xf] %v598
          %603 = vst [vmem:[#allocation2 + $0x4] sm:$0xf] %v599
          %v604 = vld [vmem:[%s5] sm:$0xf]
          %v605 = vld [vmem:[%s5 + $0x4] sm:$0xf]
          %v606 = vld [vmem:[%s5 + $0x8] sm:$0xf]
          %v607 = vld [vmem:[%s5 + $0xc] sm:$0xf]
          %v612 = vunpack.c.l.b16 %v604
          %v613 = vunpack.c.l.b16 %v605
          %v614 = vunpack.c.l.b16 %v606
          %v615 = vunpack.c.l.b16 %v607
          %v616 = vpack.c.b16 %v613, %v612
          %v617 = vpack.c.b16 %v615, %v614
          %620 = vmatprep.subr.bf16.mxu0 0
          %621 = vmatpush1.bf16.msra.mxu0 0
          %622 = vmatprep.subr.bf16.mxu0 0
          %623 = vmatpush1.bf16.msra.mxu0 0
          %624 = vmatprep.subr.bf16.mxu0 0
          %625 = vmatpush1.bf16.msra.mxu0 0
          %626 = vmatprep.subr.bf16.mxu0 0
          %627 = vmatpush1.bf16.msra.mxu0 0
          %628 = vmatprep.subr.bf16.mxu0 0
          %629 = vmatpush1.bf16.msra.mxu0 0
          %630 = vmatprep.subr.bf16.mxu0 0
          %631 = vmatpush1.bf16.msra.mxu0 0
          %632 = vmatprep.subr.bf16.mxu0 0
          %633 = vmatpush1.bf16.msra.mxu0 %v617
          %634 = vmatprep.subr.bf16.mxu0 0
          %635 = vmatpush1.bf16.msra.mxu0 %v616
          %636 = vmatprep.subr.bf16.mxu0 0
          %637 = vmatpush2.bf16.msra.mxu0 0
          %638 = vmatprep.subr.bf16.mxu0 0
          %639 = vmatpush2.bf16.msra.mxu0 0
          %640 = vmatprep.subr.bf16.mxu0 0
          %641 = vmatpush2.bf16.msra.mxu0 0
          %642 = vmatprep.subr.bf16.mxu0 0
          %643 = vmatpush2.bf16.msra.mxu0 0
          %644 = vmatprep.subr.bf16.mxu0 0
          %645 = vmatpush2.bf16.msra.mxu0 0
          %646 = vmatprep.subr.bf16.mxu0 0
          %647 = vmatpush2.bf16.msra.mxu0 0
          %648 = vmatprep.subr.bf16.mxu0 0
          %649 = vmatpush2.bf16.msra.mxu0 0
          %650 = vmatprep.subr.bf16.mxu0 0
          %651 = vmatpush2.bf16.msra.mxu0 0
          %652 = vmatprep.mubr.bf16.mxu0 0
          %653 = vmatmul.mubr.bf16.gmra.mxu0 %v551
          %v654 = vpop.f32.mrf.mxu0
          %v655 = vadd.f32 0.0, %v654
          %v656 = vpop.f32.mrf.mxu0
          %v657 = vpop.f32.mrf.mxu0
          %v658 = vadd.f32 0.0, %v657
          %v659 = vpop.f32.mrf.mxu0
          %660 = vdwg.mxu0
          %v661 = vpack.c.bf16 %v658, %v655
          %v663 = vunpack.c.l.b16 %v661
          %v664 = vunpack.c.h.b16 %v661
          %v665 = vpack.c.b16 %v663, %v663
          %v666 = vpack.c.b16 %v664, %v664
          %669 = vst [vmem:[#allocation3] sm:$0xf] %v665
          %670 = vst [vmem:[#allocation3 + $0x4] sm:$0xf] %v666
          %s671 = scalar_lea.vmem %s4, 16
          %v672 = vld [vmem:[%s671] sm:$0xf]
          %v673 = vld [vmem:[%s671 + $0x4] sm:$0xf]
          %v674 = vld [vmem:[%s671 + $0x8] sm:$0xf]
          %v675 = vld [vmem:[%s671 + $0xc] sm:$0xf]
          %v680 = vunpack.c.l.b16 %v672
          %v681 = vunpack.c.l.b16 %v673
          %v682 = vunpack.c.l.b16 %v674
          %v683 = vunpack.c.l.b16 %v675
          %v684 = vpack.c.b16 %v681, %v680
          %v685 = vpack.c.b16 %v683, %v682
          %688 = vmatprep.subr.bf16.mxu0 0
          %689 = vmatpush1.bf16.msra.mxu0 0
          %690 = vmatprep.subr.bf16.mxu0 0
          %691 = vmatpush1.bf16.msra.mxu0 0
          %692 = vmatprep.subr.bf16.mxu0 0
          %693 = vmatpush1.bf16.msra.mxu0 0
          %694 = vmatprep.subr.bf16.mxu0 0
          %695 = vmatpush1.bf16.msra.mxu0 0
          %696 = vmatprep.subr.bf16.mxu0 0
          %697 = vmatpush1.bf16.msra.mxu0 0
          %698 = vmatprep.subr.bf16.mxu0 0
          %699 = vmatpush1.bf16.msra.mxu0 0
          %700 = vmatprep.subr.bf16.mxu0 0
          %701 = vmatpush1.bf16.msra.mxu0 %v685
          %702 = vmatprep.subr.bf16.mxu0 0
          %703 = vmatpush1.bf16.msra.mxu0 %v684
          %704 = vmatprep.subr.bf16.mxu0 0
          %705 = vmatpush2.bf16.msra.mxu0 0
          %706 = vmatprep.subr.bf16.mxu0 0
          %707 = vmatpush2.bf16.msra.mxu0 0
          %708 = vmatprep.subr.bf16.mxu0 0
          %709 = vmatpush2.bf16.msra.mxu0 0
          %710 = vmatprep.subr.bf16.mxu0 0
          %711 = vmatpush2.bf16.msra.mxu0 0
          %712 = vmatprep.subr.bf16.mxu0 0
          %713 = vmatpush2.bf16.msra.mxu0 0
          %714 = vmatprep.subr.bf16.mxu0 0
          %715 = vmatpush2.bf16.msra.mxu0 0
          %716 = vmatprep.subr.bf16.mxu0 0
          %717 = vmatpush2.bf16.msra.mxu0 0
          %718 = vmatprep.subr.bf16.mxu0 0
          %719 = vmatpush2.bf16.msra.mxu0 0
          %720 = vmatprep.mubr.bf16.mxu0 0
          %721 = vmatmul.mubr.bf16.gmra.mxu0 %v551
          %v722 = vpop.f32.mrf.mxu0
          %v723 = vadd.f32 0.0, %v722
          %v724 = vpop.f32.mrf.mxu0
          %v725 = vpop.f32.mrf.mxu0
          %v726 = vadd.f32 0.0, %v725
          %v727 = vpop.f32.mrf.mxu0
          %728 = vdwg.mxu0
          %v729 = vpack.c.bf16 %v726, %v723
          %v731 = vunpack.c.l.b16 %v729
          %v732 = vunpack.c.h.b16 %v729
          %v733 = vpack.c.b16 %v731, %v731
          %v734 = vpack.c.b16 %v732, %v732
          %s737 = scalar_lea.vmem [#allocation2], 8
          %738 = vst [vmem:[%s737] sm:$0xf] %v733
          %739 = vst [vmem:[%s737 + $0x4] sm:$0xf] %v734
          %s740 = scalar_lea.vmem %s5, 16
          %v741 = vld [vmem:[%s740] sm:$0xf]
          %v742 = vld [vmem:[%s740 + $0x4] sm:$0xf]
          %v743 = vld [vmem:[%s740 + $0x8] sm:$0xf]
          %v744 = vld [vmem:[%s740 + $0xc] sm:$0xf]
          %v749 = vunpack.c.l.b16 %v741
          %v750 = vunpack.c.l.b16 %v742
          %v751 = vunpack.c.l.b16 %v743
          %v752 = vunpack.c.l.b16 %v744
          %v753 = vpack.c.b16 %v750, %v749
          %v754 = vpack.c.b16 %v752, %v751
          %757 = vmatprep.subr.bf16.mxu0 0
          %758 = vmatpush1.bf16.msra.mxu0 0
          %759 = vmatprep.subr.bf16.mxu0 0
          %760 = vmatpush1.bf16.msra.mxu0 0
          %761 = vmatprep.subr.bf16.mxu0 0
          %762 = vmatpush1.bf16.msra.mxu0 0
          %763 = vmatprep.subr.bf16.mxu0 0
          %764 = vmatpush1.bf16.msra.mxu0 0
          %765 = vmatprep.subr.bf16.mxu0 0
          %766 = vmatpush1.bf16.msra.mxu0 0
          %767 = vmatprep.subr.bf16.mxu0 0
          %768 = vmatpush1.bf16.msra.mxu0 0
          %769 = vmatprep.subr.bf16.mxu0 0
          %770 = vmatpush1.bf16.msra.mxu0 %v754
          %771 = vmatprep.subr.bf16.mxu0 0
          %772 = vmatpush1.bf16.msra.mxu0 %v753
          %773 = vmatprep.subr.bf16.mxu0 0
          %774 = vmatpush2.bf16.msra.mxu0 0
          %775 = vmatprep.subr.bf16.mxu0 0
          %776 = vmatpush2.bf16.msra.mxu0 0
          %777 = vmatprep.subr.bf16.mxu0 0
          %778 = vmatpush2.bf16.msra.mxu0 0
          %779 = vmatprep.subr.bf16.mxu0 0
          %780 = vmatpush2.bf16.msra.mxu0 0
          %781 = vmatprep.subr.bf16.mxu0 0
          %782 = vmatpush2.bf16.msra.mxu0 0
          %783 = vmatprep.subr.bf16.mxu0 0
          %784 = vmatpush2.bf16.msra.mxu0 0
          %785 = vmatprep.subr.bf16.mxu0 0
          %786 = vmatpush2.bf16.msra.mxu0 0
          %787 = vmatprep.subr.bf16.mxu0 0
          %788 = vmatpush2.bf16.msra.mxu0 0
          %789 = vmatprep.mubr.bf16.mxu0 0
          %790 = vmatmul.mubr.bf16.gmra.mxu0 %v551
          %v791 = vpop.f32.mrf.mxu0
          %v792 = vadd.f32 0.0, %v791
          %v793 = vpop.f32.mrf.mxu0
          %v794 = vpop.f32.mrf.mxu0
          %v795 = vadd.f32 0.0, %v794
          %v796 = vpop.f32.mrf.mxu0
          %797 = vdwg.mxu0
          %v798 = vpack.c.bf16 %v795, %v792
          %v800 = vunpack.c.l.b16 %v798
          %v801 = vunpack.c.h.b16 %v798
          %v802 = vpack.c.b16 %v800, %v800
          %v803 = vpack.c.b16 %v801, %v801
          %s806 = scalar_lea.vmem [#allocation3], 8
          %807 = vst [vmem:[%s806] sm:$0xf] %v802
          %808 = vst [vmem:[%s806 + $0x4] sm:$0xf] %v803
          %s809 = scalar_lea.vmem %s4, 32
          %v810 = vld [vmem:[%s809] sm:$0xf]
          %v811 = vld [vmem:[%s809 + $0x4] sm:$0xf]
          %v812 = vld [vmem:[%s809 + $0x8] sm:$0xf]
          %v813 = vld [vmem:[%s809 + $0xc] sm:$0xf]
          %v818 = vunpack.c.l.b16 %v810
          %v819 = vunpack.c.l.b16 %v811
          %v820 = vunpack.c.l.b16 %v812
          %v821 = vunpack.c.l.b16 %v813
          %v822 = vpack.c.b16 %v819, %v818
          %v823 = vpack.c.b16 %v821, %v820
          %826 = vmatprep.subr.bf16.mxu0 0
          %827 = vmatpush1.bf16.msra.mxu0 0
          %828 = vmatprep.subr.bf16.mxu0 0
          %829 = vmatpush1.bf16.msra.mxu0 0
          %830 = vmatprep.subr.bf16.mxu0 0
          %831 = vmatpush1.bf16.msra.mxu0 0
          %832 = vmatprep.subr.bf16.mxu0 0
          %833 = vmatpush1.bf16.msra.mxu0 0
          %834 = vmatprep.subr.bf16.mxu0 0
          %835 = vmatpush1.bf16.msra.mxu0 0
          %836 = vmatprep.subr.bf16.mxu0 0
          %837 = vmatpush1.bf16.msra.mxu0 0
          %838 = vmatprep.subr.bf16.mxu0 0
          %839 = vmatpush1.bf16.msra.mxu0 %v823
          %840 = vmatprep.subr.bf16.mxu0 0
          %841 = vmatpush1.bf16.msra.mxu0 %v822
          %842 = vmatprep.subr.bf16.mxu0 0
          %843 = vmatpush2.bf16.msra.mxu0 0
          %844 = vmatprep.subr.bf16.mxu0 0
          %845 = vmatpush2.bf16.msra.mxu0 0
          %846 = vmatprep.subr.bf16.mxu0 0
          %847 = vmatpush2.bf16.msra.mxu0 0
          %848 = vmatprep.subr.bf16.mxu0 0
          %849 = vmatpush2.bf16.msra.mxu0 0
          %850 = vmatprep.subr.bf16.mxu0 0
          %851 = vmatpush2.bf16.msra.mxu0 0
          %852 = vmatprep.subr.bf16.mxu0 0
          %853 = vmatpush2.bf16.msra.mxu0 0
          %854 = vmatprep.subr.bf16.mxu0 0
          %855 = vmatpush2.bf16.msra.mxu0 0
          %856 = vmatprep.subr.bf16.mxu0 0
          %857 = vmatpush2.bf16.msra.mxu0 0
          %858 = vmatprep.mubr.bf16.mxu0 0
          %859 = vmatmul.mubr.bf16.gmra.mxu0 %v551
          %v860 = vpop.f32.mrf.mxu0
          %v861 = vadd.f32 0.0, %v860
          %v862 = vpop.f32.mrf.mxu0
          %v863 = vpop.f32.mrf.mxu0
          %v864 = vadd.f32 0.0, %v863
          %v865 = vpop.f32.mrf.mxu0
          %866 = vdwg.mxu0
          %v867 = vpack.c.bf16 %v864, %v861
          %v869 = vunpack.c.l.b16 %v867
          %v870 = vunpack.c.h.b16 %v867
          %v871 = vpack.c.b16 %v869, %v869
          %v872 = vpack.c.b16 %v870, %v870
          %s875 = scalar_lea.vmem [#allocation2], 16
          %876 = vst [vmem:[%s875] sm:$0xf] %v871
          %877 = vst [vmem:[%s875 + $0x4] sm:$0xf] %v872
          %s878 = scalar_lea.vmem %s5, 32
          %v879 = vld [vmem:[%s878] sm:$0xf]
          %v880 = vld [vmem:[%s878 + $0x4] sm:$0xf]
          %v881 = vld [vmem:[%s878 + $0x8] sm:$0xf]
          %v882 = vld [vmem:[%s878 + $0xc] sm:$0xf]
          %v887 = vunpack.c.l.b16 %v879
          %v888 = vunpack.c.l.b16 %v880
          %v889 = vunpack.c.l.b16 %v881
          %v890 = vunpack.c.l.b16 %v882
          %v891 = vpack.c.b16 %v888, %v887
          %v892 = vpack.c.b16 %v890, %v889
          %895 = vmatprep.subr.bf16.mxu0 0
          %896 = vmatpush1.bf16.msra.mxu0 0
          %897 = vmatprep.subr.bf16.mxu0 0
          %898 = vmatpush1.bf16.msra.mxu0 0
          %899 = vmatprep.subr.bf16.mxu0 0
          %900 = vmatpush1.bf16.msra.mxu0 0
          %901 = vmatprep.subr.bf16.mxu0 0
          %902 = vmatpush1.bf16.msra.mxu0 0
          %903 = vmatprep.subr.bf16.mxu0 0
          %904 = vmatpush1.bf16.msra.mxu0 0
          %905 = vmatprep.subr.bf16.mxu0 0
          %906 = vmatpush1.bf16.msra.mxu0 0
          %907 = vmatprep.subr.bf16.mxu0 0
          %908 = vmatpush1.bf16.msra.mxu0 %v892
          %909 = vmatprep.subr.bf16.mxu0 0
          %910 = vmatpush1.bf16.msra.mxu0 %v891
          %911 = vmatprep.subr.bf16.mxu0 0
          %912 = vmatpush2.bf16.msra.mxu0 0
          %913 = vmatprep.subr.bf16.mxu0 0
          %914 = vmatpush2.bf16.msra.mxu0 0
          %915 = vmatprep.subr.bf16.mxu0 0
          %916 = vmatpush2.bf16.msra.mxu0 0
          %917 = vmatprep.subr.bf16.mxu0 0
          %918 = vmatpush2.bf16.msra.mxu0 0
          %919 = vmatprep.subr.bf16.mxu0 0
          %920 = vmatpush2.bf16.msra.mxu0 0
          %921 = vmatprep.subr.bf16.mxu0 0
          %922 = vmatpush2.bf16.msra.mxu0 0
          %923 = vmatprep.subr.bf16.mxu0 0
          %924 = vmatpush2.bf16.msra.mxu0 0
          %925 = vmatprep.subr.bf16.mxu0 0
          %926 = vmatpush2.bf16.msra.mxu0 0
          %927 = vmatprep.mubr.bf16.mxu0 0
          %928 = vmatmul.mubr.bf16.gmra.mxu0 %v551
          %v929 = vpop.f32.mrf.mxu0
          %v930 = vadd.f32 0.0, %v929
          %v931 = vpop.f32.mrf.mxu0
          %v932 = vpop.f32.mrf.mxu0
          %v933 = vadd.f32 0.0, %v932
          %v934 = vpop.f32.mrf.mxu0
          %935 = vdwg.mxu0
          %v936 = vpack.c.bf16 %v933, %v930
          %v938 = vunpack.c.l.b16 %v936
          %v939 = vunpack.c.h.b16 %v936
          %v940 = vpack.c.b16 %v938, %v938
          %v941 = vpack.c.b16 %v939, %v939
          %s944 = scalar_lea.vmem [#allocation3], 16
          %945 = vst [vmem:[%s944] sm:$0xf] %v940
          %946 = vst [vmem:[%s944 + $0x4] sm:$0xf] %v941
          %s947 = scalar_lea.vmem %s4, 48
          %v948 = vld [vmem:[%s947] sm:$0xf]
          %v949 = vld [vmem:[%s947 + $0x4] sm:$0xf]
          %v950 = vld [vmem:[%s947 + $0x8] sm:$0xf]
          %v951 = vld [vmem:[%s947 + $0xc] sm:$0xf]
          %v956 = vunpack.c.l.b16 %v948
          %v957 = vunpack.c.l.b16 %v949
          %v958 = vunpack.c.l.b16 %v950
          %v959 = vunpack.c.l.b16 %v951
          %v960 = vpack.c.b16 %v957, %v956
          %v961 = vpack.c.b16 %v959, %v958
          %964 = vmatprep.subr.bf16.mxu0 0
          %965 = vmatpush1.bf16.msra.mxu0 0
          %966 = vmatprep.subr.bf16.mxu0 0
          %967 = vmatpush1.bf16.msra.mxu0 0
          %968 = vmatprep.subr.bf16.mxu0 0
          %969 = vmatpush1.bf16.msra.mxu0 0
          %970 = vmatprep.subr.bf16.mxu0 0
          %971 = vmatpush1.bf16.msra.mxu0 0
          %972 = vmatprep.subr.bf16.mxu0 0
          %973 = vmatpush1.bf16.msra.mxu0 0
          %974 = vmatprep.subr.bf16.mxu0 0
          %975 = vmatpush1.bf16.msra.mxu0 0
          %976 = vmatprep.subr.bf16.mxu0 0
          %977 = vmatpush1.bf16.msra.mxu0 %v961
          %978 = vmatprep.subr.bf16.mxu0 0
          %979 = vmatpush1.bf16.msra.mxu0 %v960
          %980 = vmatprep.subr.bf16.mxu0 0
          %981 = vmatpush2.bf16.msra.mxu0 0
          %982 = vmatprep.subr.bf16.mxu0 0
          %983 = vmatpush2.bf16.msra.mxu0 0
          %984 = vmatprep.subr.bf16.mxu0 0
          %985 = vmatpush2.bf16.msra.mxu0 0
          %986 = vmatprep.subr.bf16.mxu0 0
          %987 = vmatpush2.bf16.msra.mxu0 0
          %988 = vmatprep.subr.bf16.mxu0 0
          %989 = vmatpush2.bf16.msra.mxu0 0
          %990 = vmatprep.subr.bf16.mxu0 0
          %991 = vmatpush2.bf16.msra.mxu0 0
          %992 = vmatprep.subr.bf16.mxu0 0
          %993 = vmatpush2.bf16.msra.mxu0 0
          %994 = vmatprep.subr.bf16.mxu0 0
          %995 = vmatpush2.bf16.msra.mxu0 0
          %996 = vmatprep.mubr.bf16.mxu0 0
          %997 = vmatmul.mubr.bf16.gmra.mxu0 %v551
          %v998 = vpop.f32.mrf.mxu0
          %v999 = vadd.f32 0.0, %v998
          %v1000 = vpop.f32.mrf.mxu0
          %v1001 = vpop.f32.mrf.mxu0
          %v1002 = vadd.f32 0.0, %v1001
          %v1003 = vpop.f32.mrf.mxu0
          %1004 = vdwg.mxu0
          %v1005 = vpack.c.bf16 %v1002, %v999
          %v1007 = vunpack.c.l.b16 %v1005
          %v1008 = vunpack.c.h.b16 %v1005
          %v1009 = vpack.c.b16 %v1007, %v1007
          %v1010 = vpack.c.b16 %v1008, %v1008
          %s1013 = scalar_lea.vmem [#allocation2], 24
          %1014 = vst [vmem:[%s1013] sm:$0xf] %v1009
          %1015 = vst [vmem:[%s1013 + $0x4] sm:$0xf] %v1010
          %s1016 = scalar_lea.vmem %s5, 48
          %v1017 = vld [vmem:[%s1016] sm:$0xf]
          %v1018 = vld [vmem:[%s1016 + $0x4] sm:$0xf]
          %v1019 = vld [vmem:[%s1016 + $0x8] sm:$0xf]
          %v1020 = vld [vmem:[%s1016 + $0xc] sm:$0xf]
          %v1025 = vunpack.c.l.b16 %v1017
          %v1026 = vunpack.c.l.b16 %v1018
          %v1027 = vunpack.c.l.b16 %v1019
          %v1028 = vunpack.c.l.b16 %v1020
          %v1029 = vpack.c.b16 %v1026, %v1025
          %v1030 = vpack.c.b16 %v1028, %v1027
          %1033 = vmatprep.subr.bf16.mxu0 0
          %1034 = vmatpush1.bf16.msra.mxu0 0
          %1035 = vmatprep.subr.bf16.mxu0 0
          %1036 = vmatpush1.bf16.msra.mxu0 0
          %1037 = vmatprep.subr.bf16.mxu0 0
          %1038 = vmatpush1.bf16.msra.mxu0 0
          %1039 = vmatprep.subr.bf16.mxu0 0
          %1040 = vmatpush1.bf16.msra.mxu0 0
          %1041 = vmatprep.subr.bf16.mxu0 0
          %1042 = vmatpush1.bf16.msra.mxu0 0
          %1043 = vmatprep.subr.bf16.mxu0 0
          %1044 = vmatpush1.bf16.msra.mxu0 0
          %1045 = vmatprep.subr.bf16.mxu0 0
          %1046 = vmatpush1.bf16.msra.mxu0 %v1030
          %1047 = vmatprep.subr.bf16.mxu0 0
          %1048 = vmatpush1.bf16.msra.mxu0 %v1029
          %1049 = vmatprep.subr.bf16.mxu0 0
          %1050 = vmatpush2.bf16.msra.mxu0 0
          %1051 = vmatprep.subr.bf16.mxu0 0
          %1052 = vmatpush2.bf16.msra.mxu0 0
          %1053 = vmatprep.subr.bf16.mxu0 0
          %1054 = vmatpush2.bf16.msra.mxu0 0
          %1055 = vmatprep.subr.bf16.mxu0 0
          %1056 = vmatpush2.bf16.msra.mxu0 0
          %1057 = vmatprep.subr.bf16.mxu0 0
          %1058 = vmatpush2.bf16.msra.mxu0 0
          %1059 = vmatprep.subr.bf16.mxu0 0
          %1060 = vmatpush2.bf16.msra.mxu0 0
          %1061 = vmatprep.subr.bf16.mxu0 0
          %1062 = vmatpush2.bf16.msra.mxu0 0
          %1063 = vmatprep.subr.bf16.mxu0 0
          %1064 = vmatpush2.bf16.msra.mxu0 0
          %1065 = vmatprep.mubr.bf16.mxu0 0
          %1066 = vmatmul.mubr.bf16.gmra.mxu0 %v551
          %v1067 = vpop.f32.mrf.mxu0
          %v1068 = vadd.f32 0.0, %v1067
          %v1069 = vpop.f32.mrf.mxu0
          %v1070 = vpop.f32.mrf.mxu0
          %v1071 = vadd.f32 0.0, %v1070
          %v1072 = vpop.f32.mrf.mxu0
          %1073 = vdwg.mxu0
          %v1074 = vpack.c.bf16 %v1071, %v1068
          %v1076 = vunpack.c.l.b16 %v1074
          %v1077 = vunpack.c.h.b16 %v1074
          %v1078 = vpack.c.b16 %v1076, %v1076
          %v1079 = vpack.c.b16 %v1077, %v1077
          %s1082 = scalar_lea.vmem [#allocation3], 24
          %1083 = vst [vmem:[%s1082] sm:$0xf] %v1078
          %1084 = vst [vmem:[%s1082 + $0x4] sm:$0xf] %v1079
        $region80: #{tpu_custom_call.1} parent=75 // pred_fallthru
          _
        %s1085 = smul.u32 %s33, 8
        %s1086 = scalar_lea.vmem %s479, %s1085
        %v1087 = vld [vmem:[%s1086] sm:$0xff]
        %vm1088 = vcmask 261120
        %v1089 = vsel %vm1088, %v1087, 0.0
        %1090 = vadd.xlane.f32.xlu0 %v1089
        %v1091 = vpop.xlane.xlu0 %1090
        %v1092 = vrcp.pop 32.0
        %v1093 = vmul.f32 %v1091, %v1092
        %v1094 = vsub.f32 %v1087, %v1093
        %v1095 = vmul.f32 %v1094, %v1094
        %v1096 = vsel %vm1088, %v1095, 0.0
        %1097 = vadd.xlane.f32.xlu0 %v1096
        %v1098 = vpop.xlane.xlu0 %1097
        %v1099 = vmul.f32 %v1098, %v1092
        %v1100 = vadd.f32 %v1099, 1e-05
        %v1101 = vrsqrt.pop %v1100
        %v1102 = vmul.f32 %v1094, %v1101
        %v1104 = vlaneseq
        %v1105 = vshrl.u32 %v1104, 7
        %v1106 = vsub.s32 0, %v1105
        %v1107 = vrot.slane %v481, %v1106
        %v1109 = vmul.f32 %v1102, %v1107
        %v1111 = vlaneseq
        %v1112 = vshrl.u32 %v1111, 7
        %v1113 = vsub.s32 0, %v1112
        %v1114 = vrot.slane %v482, %v1113
        %v1116 = vadd.f32 %v1109, %v1114
        %v1117 = vpack.c.bf16 %v1116, %v1116
        %1118 = vst.msk [vmem:[#allocation4] sm:$0xff] %vm1088, 0.0
        %v1119 = vld [vmem:[%s3] sm:$0xf]
        %v1120 = vld [vmem:[%s3 + $0x4] sm:$0xf]
        %v1121 = vld [vmem:[%s3 + $0x8] sm:$0xf]
        %v1122 = vld [vmem:[%s3 + $0xc] sm:$0xf]
        %v1127 = vunpack.c.l.b16 %v1119
        %v1128 = vunpack.c.l.b16 %v1120
        %v1129 = vunpack.c.l.b16 %v1121
        %v1130 = vunpack.c.l.b16 %v1122
        %v1131 = vpack.c.b16 %v1128, %v1127
        %v1132 = vpack.c.b16 %v1130, %v1129
        %v1136 = vsel %vm1088, %v1117, 0
        %1138 = vmatprep.subr.bf16.mxu0 0
        %1139 = vmatpush1.bf16.msra.mxu0 0
        %1140 = vmatprep.subr.bf16.mxu0 0
        %1141 = vmatpush1.bf16.msra.mxu0 0
        %1142 = vmatprep.subr.bf16.mxu0 0
        %1143 = vmatpush1.bf16.msra.mxu0 0
        %1144 = vmatprep.subr.bf16.mxu0 0
        %1145 = vmatpush1.bf16.msra.mxu0 0
        %1146 = vmatprep.subr.bf16.mxu0 0
        %1147 = vmatpush1.bf16.msra.mxu0 0
        %1148 = vmatprep.subr.bf16.mxu0 0
        %1149 = vmatpush1.bf16.msra.mxu0 0
        %1150 = vmatprep.subr.bf16.mxu0 0
        %1151 = vmatpush1.bf16.msra.mxu0 %v1132
        %1152 = vmatprep.subr.bf16.mxu0 0
        %1153 = vmatpush1.bf16.msra.mxu0 %v1131
        %1154 = vmatprep.subr.bf16.mxu0 0
        %1155 = vmatpush2.bf16.msra.mxu0 0
        %1156 = vmatprep.subr.bf16.mxu0 0
        %1157 = vmatpush2.bf16.msra.mxu0 0
        %1158 = vmatprep.subr.bf16.mxu0 0
        %1159 = vmatpush2.bf16.msra.mxu0 0
        %1160 = vmatprep.subr.bf16.mxu0 0
        %1161 = vmatpush2.bf16.msra.mxu0 0
        %1162 = vmatprep.subr.bf16.mxu0 0
        %1163 = vmatpush2.bf16.msra.mxu0 0
        %1164 = vmatprep.subr.bf16.mxu0 0
        %1165 = vmatpush2.bf16.msra.mxu0 0
        %1166 = vmatprep.subr.bf16.mxu0 0
        %1167 = vmatpush2.bf16.msra.mxu0 0
        %1168 = vmatprep.subr.bf16.mxu0 0
        %1169 = vmatpush2.bf16.msra.mxu0 0
        %1170 = vmatprep.mubr.bf16.mxu0 0
        %1171 = vmatmul.mubr.bf16.gmra.mxu0 %v1136
        %v1172 = vpop.f32.mrf.mxu0
        %v1173 = vadd.f32 0.0, %v1172
        %v1174 = vpop.f32.mrf.mxu0
        %v1175 = vpop.f32.mrf.mxu0
        %v1176 = vpop.f32.mrf.mxu0
        %1177 = vdwg.mxu0
        %v1178 = vmul.f32 %v1173, 0.35355338
        %v1179 = vpack.c.bf16 %v1178, %v1178
        %v1180 = vld [vmem:[#allocation2] sm:$0xf]
        %v1181 = vld [vmem:[#allocation2 + $0x4] sm:$0xf]
        %v1184 = vunpack.c.l.b16 %v1180
        %v1185 = vunpack.c.l.b16 %v1181
        %v1186 = vpack.c.b16 %v1185, %v1184
        %1188 = vmatprep.subr.bf16.mxu0 0
        %1189 = vmatpush1.bf16.xpose.msra.mxu0 0
        %1190 = vmatprep.subr.bf16.mxu0 0
        %1191 = vmatpush1.bf16.xpose.msra.mxu0 0
        %1192 = vmatprep.subr.bf16.mxu0 0
        %1193 = vmatpush1.bf16.xpose.msra.mxu0 0
        %1194 = vmatprep.subr.bf16.mxu0 0
        %1195 = vmatpush1.bf16.xpose.msra.mxu0 0
        %1196 = vmatprep.subr.bf16.mxu0 0
        %1197 = vmatpush1.bf16.xpose.msra.mxu0 0
        %1198 = vmatprep.subr.bf16.mxu0 0
        %1199 = vmatpush1.bf16.xpose.msra.mxu0 0
        %1200 = vmatprep.subr.bf16.mxu0 0
        %1201 = vmatpush1.bf16.xpose.msra.mxu0 0
        %1202 = vmatprep.subr.bf16.mxu0 0
        %1203 = vmatpush1.bf16.xpose.msra.mxu0 %v1186
        %1204 = vmatprep.subr.bf16.mxu0 0
        %1205 = vmatpush2.bf16.xpose.msra.mxu0 0
        %1206 = vmatprep.subr.bf16.mxu0 0
        %1207 = vmatpush2.bf16.xpose.msra.mxu0 0
        %1208 = vmatprep.subr.bf16.mxu0 0
        %1209 = vmatpush2.bf16.xpose.msra.mxu0 0
        %1210 = vmatprep.subr.bf16.mxu0 0
        %1211 = vmatpush2.bf16.xpose.msra.mxu0 0
        %1212 = vmatprep.subr.bf16.mxu0 0
        %1213 = vmatpush2.bf16.xpose.msra.mxu0 0
        %1214 = vmatprep.subr.bf16.mxu0 0
        %1215 = vmatpush2.bf16.xpose.msra.mxu0 0
        %1216 = vmatprep.subr.bf16.mxu0 0
        %1217 = vmatpush2.bf16.xpose.msra.mxu0 0
        %1218 = vmatprep.subr.bf16.mxu0 0
        %1219 = vmatpush2.bf16.xpose.msra.mxu0 0
        %1220 = vmatprep.mubr.bf16.mxu0 0
        %1221 = vmatmul.mubr.bf16.gmra.mxu0 %v1179
        %v1222 = vpop.f32.mrf.mxu0
        %v1223 = vadd.f32 0.0, %v1222
        %v1224 = vpop.f32.mrf.mxu0
        %v1225 = vpop.f32.mrf.mxu0
        %v1226 = vpop.f32.mrf.mxu0
        %1227 = vdwg.mxu0
        %vm1228 = vcmask 130048
        %v1229 = vsel %vm1228, %v1223, -inf
        %1230 = vmax.xlane.f32.xlu0 %v1229
        %v1231 = vpop.xlane.xlu0 %1230
        %v1232 = vsub.f32 %v1223, %v1231
        %v1233 = vmul.f32 %v1232, 1.442695
        %v1234 = vpow.pop %v1233
        %v1235 = vsel %vm1228, %v1234, 0.0
        %1236 = vadd.xlane.f32.xlu0 %v1235
        %v1237 = vpop.xlane.xlu0 %1236
        %v1238 = vrcp.pop %v1237
        %v1239 = vmul.f32 %v1234, %v1238
        %v1240 = vpack.c.bf16 %v1239, %v1239
        %v1241 = vld [vmem:[#allocation3] sm:$0xf]
        %v1242 = vld [vmem:[#allocation3 + $0x4] sm:$0xf]
        %v1245 = vunpack.c.l.b16 %v1241
        %v1246 = vunpack.c.l.b16 %v1242
        %v1247 = vpack.c.b16 %v1246, %v1245
        %v1250 = vsel %vm1228, %v1240, 0
        %1252 = vmatprep.subr.bf16.mxu0 0
        %1253 = vmatpush1.bf16.msra.mxu0 0
        %1254 = vmatprep.subr.bf16.mxu0 0
        %1255 = vmatpush1.bf16.msra.mxu0 0
        %1256 = vmatprep.subr.bf16.mxu0 0
        %1257 = vmatpush1.bf16.msra.mxu0 0
        %1258 = vmatprep.subr.bf16.mxu0 0
        %1259 = vmatpush1.bf16.msra.mxu0 0
        %1260 = vmatprep.subr.bf16.mxu0 0
        %1261 = vmatpush1.bf16.msra.mxu0 0
        %1262 = vmatprep.subr.bf16.mxu0 0
        %1263 = vmatpush1.bf16.msra.mxu0 0
        %1264 = vmatprep.subr.bf16.mxu0 0
        %1265 = vmatpush1.bf16.msra.mxu0 0
        %1266 = vmatprep.subr.bf16.mxu0 0
        %1267 = vmatpush1.bf16.msra.mxu0 %v1247
        %1268 = vmatprep.subr.bf16.mxu0 0
        %1269 = vmatpush2.bf16.msra.mxu0 0
        %1270 = vmatprep.subr.bf16.mxu0 0
        %1271 = vmatpush2.bf16.msra.mxu0 0
        %1272 = vmatprep.subr.bf16.mxu0 0
        %1273 = vmatpush2.bf16.msra.mxu0 0
        %1274 = vmatprep.subr.bf16.mxu0 0
        %1275 = vmatpush2.bf16.msra.mxu0 0
        %1276 = vmatprep.subr.bf16.mxu0 0
        %1277 = vmatpush2.bf16.msra.mxu0 0
        %1278 = vmatprep.subr.bf16.mxu0 0
        %1279 = vmatpush2.bf16.msra.mxu0 0
        %1280 = vmatprep.subr.bf16.mxu0 0
        %1281 = vmatpush2.bf16.msra.mxu0 0
        %1282 = vmatprep.subr.bf16.mxu0 0
        %1283 = vmatpush2.bf16.msra.mxu0 0
        %1284 = vmatprep.mubr.bf16.mxu0 0
        %1285 = vmatmul.mubr.bf16.gmra.mxu0 %v1250
        %v1286 = vpop.f32.mrf.mxu0
        %v1287 = vadd.f32 0.0, %v1286
        %v1288 = vpop.f32.mrf.mxu0
        %v1289 = vpop.f32.mrf.mxu0
        %v1290 = vpop.f32.mrf.mxu0
        %1291 = vdwg.mxu0
        %v1292 = vld [vmem:[#allocation4] sm:$0xff]
        %v1293 = vpack.c.bf16 %v1287, %v1287
        %v1294 = vld [vmem:[%s6] sm:$0xf]
        %v1295 = vld [vmem:[%s6 + $0x4] sm:$0xf]
        %v1296 = vld [vmem:[%s6 + $0x8] sm:$0xf]
        %v1297 = vld [vmem:[%s6 + $0xc] sm:$0xf]
        %v1298 = vld [vmem:[%s6 + $0x10] sm:$0xf]
        %v1299 = vld [vmem:[%s6 + $0x14] sm:$0xf]
        %v1300 = vld [vmem:[%s6 + $0x18] sm:$0xf]
        %v1301 = vld [vmem:[%s6 + $0x1c] sm:$0xf]
        %v1302 = vld [vmem:[%s6 + $0x20] sm:$0xf]
        %v1303 = vld [vmem:[%s6 + $0x24] sm:$0xf]
        %v1304 = vld [vmem:[%s6 + $0x28] sm:$0xf]
        %v1305 = vld [vmem:[%s6 + $0x2c] sm:$0xf]
        %v1306 = vld [vmem:[%s6 + $0x30] sm:$0xf]
        %v1307 = vld [vmem:[%s6 + $0x34] sm:$0xf]
        %v1308 = vld [vmem:[%s6 + $0x38] sm:$0xf]
        %v1309 = vld [vmem:[%s6 + $0x3c] sm:$0xf]
        %v1326 = vunpack.c.l.b16 %v1294
        %v1327 = vunpack.c.l.b16 %v1295
        %v1328 = vunpack.c.l.b16 %v1296
        %v1329 = vunpack.c.l.b16 %v1297
        %v1330 = vunpack.c.l.b16 %v1298
        %v1331 = vunpack.c.l.b16 %v1299
        %v1332 = vunpack.c.l.b16 %v1300
        %v1333 = vunpack.c.l.b16 %v1301
        %v1334 = vunpack.c.l.b16 %v1302
        %v1335 = vunpack.c.l.b16 %v1303
        %v1336 = vunpack.c.l.b16 %v1304
        %v1337 = vunpack.c.l.b16 %v1305
        %v1338 = vunpack.c.l.b16 %v1306
        %v1339 = vunpack.c.l.b16 %v1307
        %v1340 = vunpack.c.l.b16 %v1308
        %v1341 = vunpack.c.l.b16 %v1309
        %v1342 = vpack.c.b16 %v1327, %v1326
        %v1343 = vpack.c.b16 %v1329, %v1328
        %v1344 = vpack.c.b16 %v1331, %v1330
        %v1345 = vpack.c.b16 %v1333, %v1332
        %v1346 = vpack.c.b16 %v1335, %v1334
        %v1347 = vpack.c.b16 %v1337, %v1336
        %v1348 = vpack.c.b16 %v1339, %v1338
        %v1349 = vpack.c.b16 %v1341, %v1340
        %1358 = vmatprep.subr.bf16.mxu0 0
        %1359 = vmatpush1.bf16.msra.mxu0 %v1349
        %1360 = vmatprep.subr.bf16.mxu0 0
        %1361 = vmatpush1.bf16.msra.mxu0 %v1348
        %1362 = vmatprep.subr.bf16.mxu0 0
        %1363 = vmatpush1.bf16.msra.mxu0 %v1347
        %1364 = vmatprep.subr.bf16.mxu0 0
        %1365 = vmatpush1.bf16.msra.mxu0 %v1346
        %1366 = vmatprep.subr.bf16.mxu0 0
        %1367 = vmatpush1.bf16.msra.mxu0 %v1345
        %1368 = vmatprep.subr.bf16.mxu0 0
        %1369 = vmatpush1.bf16.msra.mxu0 %v1344
        %1370 = vmatprep.subr.bf16.mxu0 0
        %1371 = vmatpush1.bf16.msra.mxu0 %v1343
        %1372 = vmatprep.subr.bf16.mxu0 0
        %1373 = vmatpush1.bf16.msra.mxu0 %v1342
        %1374 = vmatprep.subr.bf16.mxu0 0
        %1375 = vmatpush2.bf16.msra.mxu0 0
        %1376 = vmatprep.subr.bf16.mxu0 0
        %1377 = vmatpush2.bf16.msra.mxu0 0
        %1378 = vmatprep.subr.bf16.mxu0 0
        %1379 = vmatpush2.bf16.msra.mxu0 0
        %1380 = vmatprep.subr.bf16.mxu0 0
        %1381 = vmatpush2.bf16.msra.mxu0 0
        %1382 = vmatprep.subr.bf16.mxu0 0
        %1383 = vmatpush2.bf16.msra.mxu0 0
        %1384 = vmatprep.subr.bf16.mxu0 0
        %1385 = vmatpush2.bf16.msra.mxu0 0
        %1386 = vmatprep.subr.bf16.mxu0 0
        %1387 = vmatpush2.bf16.msra.mxu0 0
        %1388 = vmatprep.subr.bf16.mxu0 0
        %1389 = vmatpush2.bf16.msra.mxu0 0
        %1390 = vmatprep.mubr.bf16.mxu0 0
        %1391 = vmatmul.mubr.bf16.gmra.mxu0 %v1293
        %v1392 = vpop.f32.mrf.mxu0
        %v1393 = vadd.f32 0.0, %v1392
        %v1394 = vpop.f32.mrf.mxu0
        %v1395 = vpop.f32.mrf.mxu0
        %v1396 = vpop.f32.mrf.mxu0
        %1397 = vdwg.mxu0
        %v1398 = vadd.f32 %v1292, %v1393
        %1399 = vst.msk [vmem:[#allocation4] sm:$0xff] %vm1088, %v1398
        %s1400 = scalar_lea.vmem %s3, 16
        %v1401 = vld [vmem:[%s1400] sm:$0xf]
        %v1402 = vld [vmem:[%s1400 + $0x4] sm:$0xf]
        %v1403 = vld [vmem:[%s1400 + $0x8] sm:$0xf]
        %v1404 = vld [vmem:[%s1400 + $0xc] sm:$0xf]
        %v1409 = vunpack.c.l.b16 %v1401
        %v1410 = vunpack.c.l.b16 %v1402
        %v1411 = vunpack.c.l.b16 %v1403
        %v1412 = vunpack.c.l.b16 %v1404
        %v1413 = vpack.c.b16 %v1410, %v1409
        %v1414 = vpack.c.b16 %v1412, %v1411
        %1417 = vmatprep.subr.bf16.mxu0 0
        %1418 = vmatpush1.bf16.msra.mxu0 0
        %1419 = vmatprep.subr.bf16.mxu0 0
        %1420 = vmatpush1.bf16.msra.mxu0 0
        %1421 = vmatprep.subr.bf16.mxu0 0
        %1422 = vmatpush1.bf16.msra.mxu0 0
        %1423 = vmatprep.subr.bf16.mxu0 0
        %1424 = vmatpush1.bf16.msra.mxu0 0
        %1425 = vmatprep.subr.bf16.mxu0 0
        %1426 = vmatpush1.bf16.msra.mxu0 0
        %1427 = vmatprep.subr.bf16.mxu0 0
        %1428 = vmatpush1.bf16.msra.mxu0 0
        %1429 = vmatprep.subr.bf16.mxu0 0
        %1430 = vmatpush1.bf16.msra.mxu0 %v1414
        %1431 = vmatprep.subr.bf16.mxu0 0
        %1432 = vmatpush1.bf16.msra.mxu0 %v1413
        %1433 = vmatprep.subr.bf16.mxu0 0
        %1434 = vmatpush2.bf16.msra.mxu0 0
        %1435 = vmatprep.subr.bf16.mxu0 0
        %1436 = vmatpush2.bf16.msra.mxu0 0
        %1437 = vmatprep.subr.bf16.mxu0 0
        %1438 = vmatpush2.bf16.msra.mxu0 0
        %1439 = vmatprep.subr.bf16.mxu0 0
        %1440 = vmatpush2.bf16.msra.mxu0 0
        %1441 = vmatprep.subr.bf16.mxu0 0
        %1442 = vmatpush2.bf16.msra.mxu0 0
        %1443 = vmatprep.subr.bf16.mxu0 0
        %1444 = vmatpush2.bf16.msra.mxu0 0
        %1445 = vmatprep.subr.bf16.mxu0 0
        %1446 = vmatpush2.bf16.msra.mxu0 0
        %1447 = vmatprep.subr.bf16.mxu0 0
        %1448 = vmatpush2.bf16.msra.mxu0 0
        %1449 = vmatprep.mubr.bf16.mxu0 0
        %1450 = vmatmul.mubr.bf16.gmra.mxu0 %v1136
        %v1451 = vpop.f32.mrf.mxu0
        %v1452 = vadd.f32 0.0, %v1451
        %v1453 = vpop.f32.mrf.mxu0
        %v1454 = vpop.f32.mrf.mxu0
        %v1455 = vpop.f32.mrf.mxu0
        %1456 = vdwg.mxu0
        %v1457 = vmul.f32 %v1452, 0.35355338
        %v1458 = vpack.c.bf16 %v1457, %v1457
        %s1459 = scalar_lea.vmem [#allocation2], 8
        %v1460 = vld [vmem:[%s1459] sm:$0xf]
        %v1461 = vld [vmem:[%s1459 + $0x4] sm:$0xf]
        %v1464 = vunpack.c.l.b16 %v1460
        %v1465 = vunpack.c.l.b16 %v1461
        %v1466 = vpack.c.b16 %v1465, %v1464
        %1468 = vmatprep.subr.bf16.mxu0 0
        %1469 = vmatpush1.bf16.xpose.msra.mxu0 0
        %1470 = vmatprep.subr.bf16.mxu0 0
        %1471 = vmatpush1.bf16.xpose.msra.mxu0 0
        %1472 = vmatprep.subr.bf16.mxu0 0
        %1473 = vmatpush1.bf16.xpose.msra.mxu0 0
        %1474 = vmatprep.subr.bf16.mxu0 0
        %1475 = vmatpush1.bf16.xpose.msra.mxu0 0
        %1476 = vmatprep.subr.bf16.mxu0 0
        %1477 = vmatpush1.bf16.xpose.msra.mxu0 0
        %1478 = vmatprep.subr.bf16.mxu0 0
        %1479 = vmatpush1.bf16.xpose.msra.mxu0 0
        %1480 = vmatprep.subr.bf16.mxu0 0
        %1481 = vmatpush1.bf16.xpose.msra.mxu0 0
        %1482 = vmatprep.subr.bf16.mxu0 0
        %1483 = vmatpush1.bf16.xpose.msra.mxu0 %v1466
        %1484 = vmatprep.subr.bf16.mxu0 0
        %1485 = vmatpush2.bf16.xpose.msra.mxu0 0
        %1486 = vmatprep.subr.bf16.mxu0 0
        %1487 = vmatpush2.bf16.xpose.msra.mxu0 0
        %1488 = vmatprep.subr.bf16.mxu0 0
        %1489 = vmatpush2.bf16.xpose.msra.mxu0 0
        %1490 = vmatprep.subr.bf16.mxu0 0
        %1491 = vmatpush2.bf16.xpose.msra.mxu0 0
        %1492 = vmatprep.subr.bf16.mxu0 0
        %1493 = vmatpush2.bf16.xpose.msra.mxu0 0
        %1494 = vmatprep.subr.bf16.mxu0 0
        %1495 = vmatpush2.bf16.xpose.msra.mxu0 0
        %1496 = vmatprep.subr.bf16.mxu0 0
        %1497 = vmatpush2.bf16.xpose.msra.mxu0 0
        %1498 = vmatprep.subr.bf16.mxu0 0
        %1499 = vmatpush2.bf16.xpose.msra.mxu0 0
        %1500 = vmatprep.mubr.bf16.mxu0 0
        %1501 = vmatmul.mubr.bf16.gmra.mxu0 %v1458
        %v1502 = vpop.f32.mrf.mxu0
        %v1503 = vadd.f32 0.0, %v1502
        %v1504 = vpop.f32.mrf.mxu0
        %v1505 = vpop.f32.mrf.mxu0
        %v1506 = vpop.f32.mrf.mxu0
        %1507 = vdwg.mxu0
        %v1508 = vsel %vm1228, %v1503, -inf
        %1509 = vmax.xlane.f32.xlu0 %v1508
        %v1510 = vpop.xlane.xlu0 %1509
        %v1511 = vsub.f32 %v1503, %v1510
        %v1512 = vmul.f32 %v1511, 1.442695
        %v1513 = vpow.pop %v1512
        %v1514 = vsel %vm1228, %v1513, 0.0
        %1515 = vadd.xlane.f32.xlu0 %v1514
        %v1516 = vpop.xlane.xlu0 %1515
        %v1517 = vrcp.pop %v1516
        %v1518 = vmul.f32 %v1513, %v1517
        %v1519 = vpack.c.bf16 %v1518, %v1518
        %s1520 = scalar_lea.vmem [#allocation3], 8
        %v1521 = vld [vmem:[%s1520] sm:$0xf]
        %v1522 = vld [vmem:[%s1520 + $0x4] sm:$0xf]
        %v1525 = vunpack.c.l.b16 %v1521
        %v1526 = vunpack.c.l.b16 %v1522
        %v1527 = vpack.c.b16 %v1526, %v1525
        %v1530 = vsel %vm1228, %v1519, 0
        %1532 = vmatprep.subr.bf16.mxu0 0
        %1533 = vmatpush1.bf16.msra.mxu0 0
        %1534 = vmatprep.subr.bf16.mxu0 0
        %1535 = vmatpush1.bf16.msra.mxu0 0
        %1536 = vmatprep.subr.bf16.mxu0 0
        %1537 = vmatpush1.bf16.msra.mxu0 0
        %1538 = vmatprep.subr.bf16.mxu0 0
        %1539 = vmatpush1.bf16.msra.mxu0 0
        %1540 = vmatprep.subr.bf16.mxu0 0
        %1541 = vmatpush1.bf16.msra.mxu0 0
        %1542 = vmatprep.subr.bf16.mxu0 0
        %1543 = vmatpush1.bf16.msra.mxu0 0
        %1544 = vmatprep.subr.bf16.mxu0 0
        %1545 = vmatpush1.bf16.msra.mxu0 0
        %1546 = vmatprep.subr.bf16.mxu0 0
        %1547 = vmatpush1.bf16.msra.mxu0 %v1527
        %1548 = vmatprep.subr.bf16.mxu0 0
        %1549 = vmatpush2.bf16.msra.mxu0 0
        %1550 = vmatprep.subr.bf16.mxu0 0
        %1551 = vmatpush2.bf16.msra.mxu0 0
        %1552 = vmatprep.subr.bf16.mxu0 0
        %1553 = vmatpush2.bf16.msra.mxu0 0
        %1554 = vmatprep.subr.bf16.mxu0 0
        %1555 = vmatpush2.bf16.msra.mxu0 0
        %1556 = vmatprep.subr.bf16.mxu0 0
        %1557 = vmatpush2.bf16.msra.mxu0 0
        %1558 = vmatprep.subr.bf16.mxu0 0
        %1559 = vmatpush2.bf16.msra.mxu0 0
        %1560 = vmatprep.subr.bf16.mxu0 0
        %1561 = vmatpush2.bf16.msra.mxu0 0
        %1562 = vmatprep.subr.bf16.mxu0 0
        %1563 = vmatpush2.bf16.msra.mxu0 0
        %1564 = vmatprep.mubr.bf16.mxu0 0
        %1565 = vmatmul.mubr.bf16.gmra.mxu0 %v1530
        %v1566 = vpop.f32.mrf.mxu0
        %v1567 = vadd.f32 0.0, %v1566
        %v1568 = vpop.f32.mrf.mxu0
        %v1569 = vpop.f32.mrf.mxu0
        %v1570 = vpop.f32.mrf.mxu0
        %1571 = vdwg.mxu0
        %v1572 = vld [vmem:[#allocation4] sm:$0xff]
        %v1573 = vpack.c.bf16 %v1567, %v1567
        %s1574 = scalar_lea.vmem %s6, 64
        %v1575 = vld [vmem:[%s1574] sm:$0xf]
        %v1576 = vld [vmem:[%s1574 + $0x4] sm:$0xf]
        %v1577 = vld [vmem:[%s1574 + $0x8] sm:$0xf]
        %v1578 = vld [vmem:[%s1574 + $0xc] sm:$0xf]
        %v1579 = vld [vmem:[%s1574 + $0x10] sm:$0xf]
        %v1580 = vld [vmem:[%s1574 + $0x14] sm:$0xf]
        %v1581 = vld [vmem:[%s1574 + $0x18] sm:$0xf]
        %v1582 = vld [vmem:[%s1574 + $0x1c] sm:$0xf]
        %v1583 = vld [vmem:[%s1574 + $0x20] sm:$0xf]
        %v1584 = vld [vmem:[%s1574 + $0x24] sm:$0xf]
        %v1585 = vld [vmem:[%s1574 + $0x28] sm:$0xf]
        %v1586 = vld [vmem:[%s1574 + $0x2c] sm:$0xf]
        %v1587 = vld [vmem:[%s1574 + $0x30] sm:$0xf]
        %v1588 = vld [vmem:[%s1574 + $0x34] sm:$0xf]
        %v1589 = vld [vmem:[%s1574 + $0x38] sm:$0xf]
        %v1590 = vld [vmem:[%s1574 + $0x3c] sm:$0xf]
        %v1607 = vunpack.c.l.b16 %v1575
        %v1608 = vunpack.c.l.b16 %v1576
        %v1609 = vunpack.c.l.b16 %v1577
        %v1610 = vunpack.c.l.b16 %v1578
        %v1611 = vunpack.c.l.b16 %v1579
        %v1612 = vunpack.c.l.b16 %v1580
        %v1613 = vunpack.c.l.b16 %v1581
        %v1614 = vunpack.c.l.b16 %v1582
        %v1615 = vunpack.c.l.b16 %v1583
        %v1616 = vunpack.c.l.b16 %v1584
        %v1617 = vunpack.c.l.b16 %v1585
        %v1618 = vunpack.c.l.b16 %v1586
        %v1619 = vunpack.c.l.b16 %v1587
        %v1620 = vunpack.c.l.b16 %v1588
        %v1621 = vunpack.c.l.b16 %v1589
        %v1622 = vunpack.c.l.b16 %v1590
        %v1623 = vpack.c.b16 %v1608, %v1607
        %v1624 = vpack.c.b16 %v1610, %v1609
        %v1625 = vpack.c.b16 %v1612, %v1611
        %v1626 = vpack.c.b16 %v1614, %v1613
        %v1627 = vpack.c.b16 %v1616, %v1615
        %v1628 = vpack.c.b16 %v1618, %v1617
        %v1629 = vpack.c.b16 %v1620, %v1619
        %v1630 = vpack.c.b16 %v1622, %v1621
        %1639 = vmatprep.subr.bf16.mxu0 0
        %1640 = vmatpush1.bf16.msra.mxu0 %v1630
        %1641 = vmatprep.subr.bf16.mxu0 0
        %1642 = vmatpush1.bf16.msra.mxu0 %v1629
        %1643 = vmatprep.subr.bf16.mxu0 0
        %1644 = vmatpush1.bf16.msra.mxu0 %v1628
        %1645 = vmatprep.subr.bf16.mxu0 0
        %1646 = vmatpush1.bf16.msra.mxu0 %v1627
        %1647 = vmatprep.subr.bf16.mxu0 0
        %1648 = vmatpush1.bf16.msra.mxu0 %v1626
        %1649 = vmatprep.subr.bf16.mxu0 0
        %1650 = vmatpush1.bf16.msra.mxu0 %v1625
        %1651 = vmatprep.subr.bf16.mxu0 0
        %1652 = vmatpush1.bf16.msra.mxu0 %v1624
        %1653 = vmatprep.subr.bf16.mxu0 0
        %1654 = vmatpush1.bf16.msra.mxu0 %v1623
        %1655 = vmatprep.subr.bf16.mxu0 0
        %1656 = vmatpush2.bf16.msra.mxu0 0
        %1657 = vmatprep.subr.bf16.mxu0 0
        %1658 = vmatpush2.bf16.msra.mxu0 0
        %1659 = vmatprep.subr.bf16.mxu0 0
        %1660 = vmatpush2.bf16.msra.mxu0 0
        %1661 = vmatprep.subr.bf16.mxu0 0
        %1662 = vmatpush2.bf16.msra.mxu0 0
        %1663 = vmatprep.subr.bf16.mxu0 0
        %1664 = vmatpush2.bf16.msra.mxu0 0
        %1665 = vmatprep.subr.bf16.mxu0 0
        %1666 = vmatpush2.bf16.msra.mxu0 0
        %1667 = vmatprep.subr.bf16.mxu0 0
        %1668 = vmatpush2.bf16.msra.mxu0 0
        %1669 = vmatprep.subr.bf16.mxu0 0
        %1670 = vmatpush2.bf16.msra.mxu0 0
        %1671 = vmatprep.mubr.bf16.mxu0 0
        %1672 = vmatmul.mubr.bf16.gmra.mxu0 %v1573
        %v1673 = vpop.f32.mrf.mxu0
        %v1674 = vadd.f32 0.0, %v1673
        %v1675 = vpop.f32.mrf.mxu0
        %v1676 = vpop.f32.mrf.mxu0
        %v1677 = vpop.f32.mrf.mxu0
        %1678 = vdwg.mxu0
        %v1679 = vadd.f32 %v1572, %v1674
        %1680 = vst.msk [vmem:[#allocation4] sm:$0xff] %vm1088, %v1679
        %s1681 = scalar_lea.vmem %s3, 32
        %v1682 = vld [vmem:[%s1681] sm:$0xf]
        %v1683 = vld [vmem:[%s1681 + $0x4] sm:$0xf]
        %v1684 = vld [vmem:[%s1681 + $0x8] sm:$0xf]
        %v1685 = vld [vmem:[%s1681 + $0xc] sm:$0xf]
        %v1690 = vunpack.c.l.b16 %v1682
        %v1691 = vunpack.c.l.b16 %v1683
        %v1692 = vunpack.c.l.b16 %v1684
        %v1693 = vunpack.c.l.b16 %v1685
        %v1694 = vpack.c.b16 %v1691, %v1690
        %v1695 = vpack.c.b16 %v1693, %v1692
        %1698 = vmatprep.subr.bf16.mxu0 0
        %1699 = vmatpush1.bf16.msra.mxu0 0
        %1700 = vmatprep.subr.bf16.mxu0 0
        %1701 = vmatpush1.bf16.msra.mxu0 0
        %1702 = vmatprep.subr.bf16.mxu0 0
        %1703 = vmatpush1.bf16.msra.mxu0 0
        %1704 = vmatprep.subr.bf16.mxu0 0
        %1705 = vmatpush1.bf16.msra.mxu0 0
        %1706 = vmatprep.subr.bf16.mxu0 0
        %1707 = vmatpush1.bf16.msra.mxu0 0
        %1708 = vmatprep.subr.bf16.mxu0 0
        %1709 = vmatpush1.bf16.msra.mxu0 0
        %1710 = vmatprep.subr.bf16.mxu0 0
        %1711 = vmatpush1.bf16.msra.mxu0 %v1695
        %1712 = vmatprep.subr.bf16.mxu0 0
        %1713 = vmatpush1.bf16.msra.mxu0 %v1694
        %1714 = vmatprep.subr.bf16.mxu0 0
        %1715 = vmatpush2.bf16.msra.mxu0 0
        %1716 = vmatprep.subr.bf16.mxu0 0
        %1717 = vmatpush2.bf16.msra.mxu0 0
        %1718 = vmatprep.subr.bf16.mxu0 0
        %1719 = vmatpush2.bf16.msra.mxu0 0
        %1720 = vmatprep.subr.bf16.mxu0 0
        %1721 = vmatpush2.bf16.msra.mxu0 0
        %1722 = vmatprep.subr.bf16.mxu0 0
        %1723 = vmatpush2.bf16.msra.mxu0 0
        %1724 = vmatprep.subr.bf16.mxu0 0
        %1725 = vmatpush2.bf16.msra.mxu0 0
        %1726 = vmatprep.subr.bf16.mxu0 0
        %1727 = vmatpush2.bf16.msra.mxu0 0
        %1728 = vmatprep.subr.bf16.mxu0 0
        %1729 = vmatpush2.bf16.msra.mxu0 0
        %1730 = vmatprep.mubr.bf16.mxu0 0
        %1731 = vmatmul.mubr.bf16.gmra.mxu0 %v1136
        %v1732 = vpop.f32.mrf.mxu0
        %v1733 = vadd.f32 0.0, %v1732
        %v1734 = vpop.f32.mrf.mxu0
        %v1735 = vpop.f32.mrf.mxu0
        %v1736 = vpop.f32.mrf.mxu0
        %1737 = vdwg.mxu0
        %v1738 = vmul.f32 %v1733, 0.35355338
        %v1739 = vpack.c.bf16 %v1738, %v1738
        %s1740 = scalar_lea.vmem [#allocation2], 16
        %v1741 = vld [vmem:[%s1740] sm:$0xf]
        %v1742 = vld [vmem:[%s1740 + $0x4] sm:$0xf]
        %v1745 = vunpack.c.l.b16 %v1741
        %v1746 = vunpack.c.l.b16 %v1742
        %v1747 = vpack.c.b16 %v1746, %v1745
        %1749 = vmatprep.subr.bf16.mxu0 0
        %1750 = vmatpush1.bf16.xpose.msra.mxu0 0
        %1751 = vmatprep.subr.bf16.mxu0 0
        %1752 = vmatpush1.bf16.xpose.msra.mxu0 0
        %1753 = vmatprep.subr.bf16.mxu0 0
        %1754 = vmatpush1.bf16.xpose.msra.mxu0 0
        %1755 = vmatprep.subr.bf16.mxu0 0
        %1756 = vmatpush1.bf16.xpose.msra.mxu0 0
        %1757 = vmatprep.subr.bf16.mxu0 0
        %1758 = vmatpush1.bf16.xpose.msra.mxu0 0
        %1759 = vmatprep.subr.bf16.mxu0 0
        %1760 = vmatpush1.bf16.xpose.msra.mxu0 0
        %1761 = vmatprep.subr.bf16.mxu0 0
        %1762 = vmatpush1.bf16.xpose.msra.mxu0 0
        %1763 = vmatprep.subr.bf16.mxu0 0
        %1764 = vmatpush1.bf16.xpose.msra.mxu0 %v1747
        %1765 = vmatprep.subr.bf16.mxu0 0
        %1766 = vmatpush2.bf16.xpose.msra.mxu0 0
        %1767 = vmatprep.subr.bf16.mxu0 0
        %1768 = vmatpush2.bf16.xpose.msra.mxu0 0
        %1769 = vmatprep.subr.bf16.mxu0 0
        %1770 = vmatpush2.bf16.xpose.msra.mxu0 0
        %1771 = vmatprep.subr.bf16.mxu0 0
        %1772 = vmatpush2.bf16.xpose.msra.mxu0 0
        %1773 = vmatprep.subr.bf16.mxu0 0
        %1774 = vmatpush2.bf16.xpose.msra.mxu0 0
        %1775 = vmatprep.subr.bf16.mxu0 0
        %1776 = vmatpush2.bf16.xpose.msra.mxu0 0
        %1777 = vmatprep.subr.bf16.mxu0 0
        %1778 = vmatpush2.bf16.xpose.msra.mxu0 0
        %1779 = vmatprep.subr.bf16.mxu0 0
        %1780 = vmatpush2.bf16.xpose.msra.mxu0 0
        %1781 = vmatprep.mubr.bf16.mxu0 0
        %1782 = vmatmul.mubr.bf16.gmra.mxu0 %v1739
        %v1783 = vpop.f32.mrf.mxu0
        %v1784 = vadd.f32 0.0, %v1783
        %v1785 = vpop.f32.mrf.mxu0
        %v1786 = vpop.f32.mrf.mxu0
        %v1787 = vpop.f32.mrf.mxu0
        %1788 = vdwg.mxu0
        %v1789 = vsel %vm1228, %v1784, -inf
        %1790 = vmax.xlane.f32.xlu0 %v1789
        %v1791 = vpop.xlane.xlu0 %1790
        %v1792 = vsub.f32 %v1784, %v1791
        %v1793 = vmul.f32 %v1792, 1.442695
        %v1794 = vpow.pop %v1793
        %v1795 = vsel %vm1228, %v1794, 0.0
        %1796 = vadd.xlane.f32.xlu0 %v1795
        %v1797 = vpop.xlane.xlu0 %1796
        %v1798 = vrcp.pop %v1797
        %v1799 = vmul.f32 %v1794, %v1798
        %v1800 = vpack.c.bf16 %v1799, %v1799
        %s1801 = scalar_lea.vmem [#allocation3], 16
        %v1802 = vld [vmem:[%s1801] sm:$0xf]
        %v1803 = vld [vmem:[%s1801 + $0x4] sm:$0xf]
        %v1806 = vunpack.c.l.b16 %v1802
        %v1807 = vunpack.c.l.b16 %v1803
        %v1808 = vpack.c.b16 %v1807, %v1806
        %v1811 = vsel %vm1228, %v1800, 0
        %1813 = vmatprep.subr.bf16.mxu0 0
        %1814 = vmatpush1.bf16.msra.mxu0 0
        %1815 = vmatprep.subr.bf16.mxu0 0
        %1816 = vmatpush1.bf16.msra.mxu0 0
        %1817 = vmatprep.subr.bf16.mxu0 0
        %1818 = vmatpush1.bf16.msra.mxu0 0
        %1819 = vmatprep.subr.bf16.mxu0 0
        %1820 = vmatpush1.bf16.msra.mxu0 0
        %1821 = vmatprep.subr.bf16.mxu0 0
        %1822 = vmatpush1.bf16.msra.mxu0 0
        %1823 = vmatprep.subr.bf16.mxu0 0
        %1824 = vmatpush1.bf16.msra.mxu0 0
        %1825 = vmatprep.subr.bf16.mxu0 0
        %1826 = vmatpush1.bf16.msra.mxu0 0
        %1827 = vmatprep.subr.bf16.mxu0 0
        %1828 = vmatpush1.bf16.msra.mxu0 %v1808
        %1829 = vmatprep.subr.bf16.mxu0 0
        %1830 = vmatpush2.bf16.msra.mxu0 0
        %1831 = vmatprep.subr.bf16.mxu0 0
        %1832 = vmatpush2.bf16.msra.mxu0 0
        %1833 = vmatprep.subr.bf16.mxu0 0
        %1834 = vmatpush2.bf16.msra.mxu0 0
        %1835 = vmatprep.subr.bf16.mxu0 0
        %1836 = vmatpush2.bf16.msra.mxu0 0
        %1837 = vmatprep.subr.bf16.mxu0 0
        %1838 = vmatpush2.bf16.msra.mxu0 0
        %1839 = vmatprep.subr.bf16.mxu0 0
        %1840 = vmatpush2.bf16.msra.mxu0 0
        %1841 = vmatprep.subr.bf16.mxu0 0
        %1842 = vmatpush2.bf16.msra.mxu0 0
        %1843 = vmatprep.subr.bf16.mxu0 0
        %1844 = vmatpush2.bf16.msra.mxu0 0
        %1845 = vmatprep.mubr.bf16.mxu0 0
        %1846 = vmatmul.mubr.bf16.gmra.mxu0 %v1811
        %v1847 = vpop.f32.mrf.mxu0
        %v1848 = vadd.f32 0.0, %v1847
        %v1849 = vpop.f32.mrf.mxu0
        %v1850 = vpop.f32.mrf.mxu0
        %v1851 = vpop.f32.mrf.mxu0
        %1852 = vdwg.mxu0
        %v1853 = vld [vmem:[#allocation4] sm:$0xff]
        %v1854 = vpack.c.bf16 %v1848, %v1848
        %s1855 = scalar_lea.vmem %s6, 128
        %v1856 = vld [vmem:[%s1855] sm:$0xf]
        %v1857 = vld [vmem:[%s1855 + $0x4] sm:$0xf]
        %v1858 = vld [vmem:[%s1855 + $0x8] sm:$0xf]
        %v1859 = vld [vmem:[%s1855 + $0xc] sm:$0xf]
        %v1860 = vld [vmem:[%s1855 + $0x10] sm:$0xf]
        %v1861 = vld [vmem:[%s1855 + $0x14] sm:$0xf]
        %v1862 = vld [vmem:[%s1855 + $0x18] sm:$0xf]
        %v1863 = vld [vmem:[%s1855 + $0x1c] sm:$0xf]
        %v1864 = vld [vmem:[%s1855 + $0x20] sm:$0xf]
        %v1865 = vld [vmem:[%s1855 + $0x24] sm:$0xf]
        %v1866 = vld [vmem:[%s1855 + $0x28] sm:$0xf]
        %v1867 = vld [vmem:[%s1855 + $0x2c] sm:$0xf]
        %v1868 = vld [vmem:[%s1855 + $0x30] sm:$0xf]
        %v1869 = vld [vmem:[%s1855 + $0x34] sm:$0xf]
        %v1870 = vld [vmem:[%s1855 + $0x38] sm:$0xf]
        %v1871 = vld [vmem:[%s1855 + $0x3c] sm:$0xf]
        %v1888 = vunpack.c.l.b16 %v1856
        %v1889 = vunpack.c.l.b16 %v1857
        %v1890 = vunpack.c.l.b16 %v1858
        %v1891 = vunpack.c.l.b16 %v1859
        %v1892 = vunpack.c.l.b16 %v1860
        %v1893 = vunpack.c.l.b16 %v1861
        %v1894 = vunpack.c.l.b16 %v1862
        %v1895 = vunpack.c.l.b16 %v1863
        %v1896 = vunpack.c.l.b16 %v1864
        %v1897 = vunpack.c.l.b16 %v1865
        %v1898 = vunpack.c.l.b16 %v1866
        %v1899 = vunpack.c.l.b16 %v1867
        %v1900 = vunpack.c.l.b16 %v1868
        %v1901 = vunpack.c.l.b16 %v1869
        %v1902 = vunpack.c.l.b16 %v1870
        %v1903 = vunpack.c.l.b16 %v1871
        %v1904 = vpack.c.b16 %v1889, %v1888
        %v1905 = vpack.c.b16 %v1891, %v1890
        %v1906 = vpack.c.b16 %v1893, %v1892
        %v1907 = vpack.c.b16 %v1895, %v1894
        %v1908 = vpack.c.b16 %v1897, %v1896
        %v1909 = vpack.c.b16 %v1899, %v1898
        %v1910 = vpack.c.b16 %v1901, %v1900
        %v1911 = vpack.c.b16 %v1903, %v1902
        %1920 = vmatprep.subr.bf16.mxu0 0
        %1921 = vmatpush1.bf16.msra.mxu0 %v1911
        %1922 = vmatprep.subr.bf16.mxu0 0
        %1923 = vmatpush1.bf16.msra.mxu0 %v1910
        %1924 = vmatprep.subr.bf16.mxu0 0
        %1925 = vmatpush1.bf16.msra.mxu0 %v1909
        %1926 = vmatprep.subr.bf16.mxu0 0
        %1927 = vmatpush1.bf16.msra.mxu0 %v1908
        %1928 = vmatprep.subr.bf16.mxu0 0
        %1929 = vmatpush1.bf16.msra.mxu0 %v1907
        %1930 = vmatprep.subr.bf16.mxu0 0
        %1931 = vmatpush1.bf16.msra.mxu0 %v1906
        %1932 = vmatprep.subr.bf16.mxu0 0
        %1933 = vmatpush1.bf16.msra.mxu0 %v1905
        %1934 = vmatprep.subr.bf16.mxu0 0
        %1935 = vmatpush1.bf16.msra.mxu0 %v1904
        %1936 = vmatprep.subr.bf16.mxu0 0
        %1937 = vmatpush2.bf16.msra.mxu0 0
        %1938 = vmatprep.subr.bf16.mxu0 0
        %1939 = vmatpush2.bf16.msra.mxu0 0
        %1940 = vmatprep.subr.bf16.mxu0 0
        %1941 = vmatpush2.bf16.msra.mxu0 0
        %1942 = vmatprep.subr.bf16.mxu0 0
        %1943 = vmatpush2.bf16.msra.mxu0 0
        %1944 = vmatprep.subr.bf16.mxu0 0
        %1945 = vmatpush2.bf16.msra.mxu0 0
        %1946 = vmatprep.subr.bf16.mxu0 0
        %1947 = vmatpush2.bf16.msra.mxu0 0
        %1948 = vmatprep.subr.bf16.mxu0 0
        %1949 = vmatpush2.bf16.msra.mxu0 0
        %1950 = vmatprep.subr.bf16.mxu0 0
        %1951 = vmatpush2.bf16.msra.mxu0 0
        %1952 = vmatprep.mubr.bf16.mxu0 0
        %1953 = vmatmul.mubr.bf16.gmra.mxu0 %v1854
        %v1954 = vpop.f32.mrf.mxu0
        %v1955 = vadd.f32 0.0, %v1954
        %v1956 = vpop.f32.mrf.mxu0
        %v1957 = vpop.f32.mrf.mxu0
        %v1958 = vpop.f32.mrf.mxu0
        %1959 = vdwg.mxu0
        %v1960 = vadd.f32 %v1853, %v1955
        %1961 = vst.msk [vmem:[#allocation4] sm:$0xff] %vm1088, %v1960
        %s1962 = scalar_lea.vmem %s3, 48
        %v1963 = vld [vmem:[%s1962] sm:$0xf]
        %v1964 = vld [vmem:[%s1962 + $0x4] sm:$0xf]
        %v1965 = vld [vmem:[%s1962 + $0x8] sm:$0xf]
        %v1966 = vld [vmem:[%s1962 + $0xc] sm:$0xf]
        %v1971 = vunpack.c.l.b16 %v1963
        %v1972 = vunpack.c.l.b16 %v1964
        %v1973 = vunpack.c.l.b16 %v1965
        %v1974 = vunpack.c.l.b16 %v1966
        %v1975 = vpack.c.b16 %v1972, %v1971
        %v1976 = vpack.c.b16 %v1974, %v1973
        %1979 = vmatprep.subr.bf16.mxu0 0
        %1980 = vmatpush1.bf16.msra.mxu0 0
        %1981 = vmatprep.subr.bf16.mxu0 0
        %1982 = vmatpush1.bf16.msra.mxu0 0
        %1983 = vmatprep.subr.bf16.mxu0 0
        %1984 = vmatpush1.bf16.msra.mxu0 0
        %1985 = vmatprep.subr.bf16.mxu0 0
        %1986 = vmatpush1.bf16.msra.mxu0 0
        %1987 = vmatprep.subr.bf16.mxu0 0
        %1988 = vmatpush1.bf16.msra.mxu0 0
        %1989 = vmatprep.subr.bf16.mxu0 0
        %1990 = vmatpush1.bf16.msra.mxu0 0
        %1991 = vmatprep.subr.bf16.mxu0 0
        %1992 = vmatpush1.bf16.msra.mxu0 %v1976
        %1993 = vmatprep.subr.bf16.mxu0 0
        %1994 = vmatpush1.bf16.msra.mxu0 %v1975
        %1995 = vmatprep.subr.bf16.mxu0 0
        %1996 = vmatpush2.bf16.msra.mxu0 0
        %1997 = vmatprep.subr.bf16.mxu0 0
        %1998 = vmatpush2.bf16.msra.mxu0 0
        %1999 = vmatprep.subr.bf16.mxu0 0
        %2000 = vmatpush2.bf16.msra.mxu0 0
        %2001 = vmatprep.subr.bf16.mxu0 0
        %2002 = vmatpush2.bf16.msra.mxu0 0
        %2003 = vmatprep.subr.bf16.mxu0 0
        %2004 = vmatpush2.bf16.msra.mxu0 0
        %2005 = vmatprep.subr.bf16.mxu0 0
        %2006 = vmatpush2.bf16.msra.mxu0 0
        %2007 = vmatprep.subr.bf16.mxu0 0
        %2008 = vmatpush2.bf16.msra.mxu0 0
        %2009 = vmatprep.subr.bf16.mxu0 0
        %2010 = vmatpush2.bf16.msra.mxu0 0
        %2011 = vmatprep.mubr.bf16.mxu0 0
        %2012 = vmatmul.mubr.bf16.gmra.mxu0 %v1136
        %v2013 = vpop.f32.mrf.mxu0
        %v2014 = vadd.f32 0.0, %v2013
        %v2015 = vpop.f32.mrf.mxu0
        %v2016 = vpop.f32.mrf.mxu0
        %v2017 = vpop.f32.mrf.mxu0
        %2018 = vdwg.mxu0
        %v2019 = vmul.f32 %v2014, 0.35355338
        %v2020 = vpack.c.bf16 %v2019, %v2019
        %s2021 = scalar_lea.vmem [#allocation2], 24
        %v2022 = vld [vmem:[%s2021] sm:$0xf]
        %v2023 = vld [vmem:[%s2021 + $0x4] sm:$0xf]
        %v2026 = vunpack.c.l.b16 %v2022
        %v2027 = vunpack.c.l.b16 %v2023
        %v2028 = vpack.c.b16 %v2027, %v2026
        %2030 = vmatprep.subr.bf16.mxu0 0
        %2031 = vmatpush1.bf16.xpose.msra.mxu0 0
        %2032 = vmatprep.subr.bf16.mxu0 0
        %2033 = vmatpush1.bf16.xpose.msra.mxu0 0
        %2034 = vmatprep.subr.bf16.mxu0 0
        %2035 = vmatpush1.bf16.xpose.msra.mxu0 0
        %2036 = vmatprep.subr.bf16.mxu0 0
        %2037 = vmatpush1.bf16.xpose.msra.mxu0 0
        %2038 = vmatprep.subr.bf16.mxu0 0
        %2039 = vmatpush1.bf16.xpose.msra.mxu0 0
        %2040 = vmatprep.subr.bf16.mxu0 0
        %2041 = vmatpush1.bf16.xpose.msra.mxu0 0
        %2042 = vmatprep.subr.bf16.mxu0 0
        %2043 = vmatpush1.bf16.xpose.msra.mxu0 0
        %2044 = vmatprep.subr.bf16.mxu0 0
        %2045 = vmatpush1.bf16.xpose.msra.mxu0 %v2028
        %2046 = vmatprep.subr.bf16.mxu0 0
        %2047 = vmatpush2.bf16.xpose.msra.mxu0 0
        %2048 = vmatprep.subr.bf16.mxu0 0
        %2049 = vmatpush2.bf16.xpose.msra.mxu0 0
        %2050 = vmatprep.subr.bf16.mxu0 0
        %2051 = vmatpush2.bf16.xpose.msra.mxu0 0
        %2052 = vmatprep.subr.bf16.mxu0 0
        %2053 = vmatpush2.bf16.xpose.msra.mxu0 0
        %2054 = vmatprep.subr.bf16.mxu0 0
        %2055 = vmatpush2.bf16.xpose.msra.mxu0 0
        %2056 = vmatprep.subr.bf16.mxu0 0
        %2057 = vmatpush2.bf16.xpose.msra.mxu0 0
        %2058 = vmatprep.subr.bf16.mxu0 0
        %2059 = vmatpush2.bf16.xpose.msra.mxu0 0
        %2060 = vmatprep.subr.bf16.mxu0 0
        %2061 = vmatpush2.bf16.xpose.msra.mxu0 0
        %2062 = vmatprep.mubr.bf16.mxu0 0
        %2063 = vmatmul.mubr.bf16.gmra.mxu0 %v2020
        %v2064 = vpop.f32.mrf.mxu0
        %v2065 = vadd.f32 0.0, %v2064
        %v2066 = vpop.f32.mrf.mxu0
        %v2067 = vpop.f32.mrf.mxu0
        %v2068 = vpop.f32.mrf.mxu0
        %2069 = vdwg.mxu0
        %v2070 = vsel %vm1228, %v2065, -inf
        %2071 = vmax.xlane.f32.xlu0 %v2070
        %v2072 = vpop.xlane.xlu0 %2071
        %v2073 = vsub.f32 %v2065, %v2072
        %v2074 = vmul.f32 %v2073, 1.442695
        %v2075 = vpow.pop %v2074
        %v2076 = vsel %vm1228, %v2075, 0.0
        %2077 = vadd.xlane.f32.xlu0 %v2076
        %v2078 = vpop.xlane.xlu0 %2077
        %v2079 = vrcp.pop %v2078
        %v2080 = vmul.f32 %v2075, %v2079
        %v2081 = vpack.c.bf16 %v2080, %v2080
        %s2082 = scalar_lea.vmem [#allocation3], 24
        %v2083 = vld [vmem:[%s2082] sm:$0xf]
        %v2084 = vld [vmem:[%s2082 + $0x4] sm:$0xf]
        %v2087 = vunpack.c.l.b16 %v2083
        %v2088 = vunpack.c.l.b16 %v2084
        %v2089 = vpack.c.b16 %v2088, %v2087
        %v2092 = vsel %vm1228, %v2081, 0
        %2094 = vmatprep.subr.bf16.mxu0 0
        %2095 = vmatpush1.bf16.msra.mxu0 0
        %2096 = vmatprep.subr.bf16.mxu0 0
        %2097 = vmatpush1.bf16.msra.mxu0 0
        %2098 = vmatprep.subr.bf16.mxu0 0
        %2099 = vmatpush1.bf16.msra.mxu0 0
        %2100 = vmatprep.subr.bf16.mxu0 0
        %2101 = vmatpush1.bf16.msra.mxu0 0
        %2102 = vmatprep.subr.bf16.mxu0 0
        %2103 = vmatpush1.bf16.msra.mxu0 0
        %2104 = vmatprep.subr.bf16.mxu0 0
        %2105 = vmatpush1.bf16.msra.mxu0 0
        %2106 = vmatprep.subr.bf16.mxu0 0
        %2107 = vmatpush1.bf16.msra.mxu0 0
        %2108 = vmatprep.subr.bf16.mxu0 0
        %2109 = vmatpush1.bf16.msra.mxu0 %v2089
        %2110 = vmatprep.subr.bf16.mxu0 0
        %2111 = vmatpush2.bf16.msra.mxu0 0
        %2112 = vmatprep.subr.bf16.mxu0 0
        %2113 = vmatpush2.bf16.msra.mxu0 0
        %2114 = vmatprep.subr.bf16.mxu0 0
        %2115 = vmatpush2.bf16.msra.mxu0 0
        %2116 = vmatprep.subr.bf16.mxu0 0
        %2117 = vmatpush2.bf16.msra.mxu0 0
        %2118 = vmatprep.subr.bf16.mxu0 0
        %2119 = vmatpush2.bf16.msra.mxu0 0
        %2120 = vmatprep.subr.bf16.mxu0 0
        %2121 = vmatpush2.bf16.msra.mxu0 0
        %2122 = vmatprep.subr.bf16.mxu0 0
        %2123 = vmatpush2.bf16.msra.mxu0 0
        %2124 = vmatprep.subr.bf16.mxu0 0
        %2125 = vmatpush2.bf16.msra.mxu0 0
        %2126 = vmatprep.mubr.bf16.mxu0 0
        %2127 = vmatmul.mubr.bf16.gmra.mxu0 %v2092
        %v2128 = vpop.f32.mrf.mxu0
        %v2129 = vadd.f32 0.0, %v2128
        %v2130 = vpop.f32.mrf.mxu0
        %v2131 = vpop.f32.mrf.mxu0
        %v2132 = vpop.f32.mrf.mxu0
        %2133 = vdwg.mxu0
        %v2134 = vld [vmem:[#allocation4] sm:$0xff]
        %v2135 = vpack.c.bf16 %v2129, %v2129
        %s2136 = scalar_lea.vmem %s6, 192
        %v2137 = vld [vmem:[%s2136] sm:$0xf]
        %v2138 = vld [vmem:[%s2136 + $0x4] sm:$0xf]
        %v2139 = vld [vmem:[%s2136 + $0x8] sm:$0xf]
        %v2140 = vld [vmem:[%s2136 + $0xc] sm:$0xf]
        %v2141 = vld [vmem:[%s2136 + $0x10] sm:$0xf]
        %v2142 = vld [vmem:[%s2136 + $0x14] sm:$0xf]
        %v2143 = vld [vmem:[%s2136 + $0x18] sm:$0xf]
        %v2144 = vld [vmem:[%s2136 + $0x1c] sm:$0xf]
        %v2145 = vld [vmem:[%s2136 + $0x20] sm:$0xf]
        %v2146 = vld [vmem:[%s2136 + $0x24] sm:$0xf]
        %v2147 = vld [vmem:[%s2136 + $0x28] sm:$0xf]
        %v2148 = vld [vmem:[%s2136 + $0x2c] sm:$0xf]
        %v2149 = vld [vmem:[%s2136 + $0x30] sm:$0xf]
        %v2150 = vld [vmem:[%s2136 + $0x34] sm:$0xf]
        %v2151 = vld [vmem:[%s2136 + $0x38] sm:$0xf]
        %v2152 = vld [vmem:[%s2136 + $0x3c] sm:$0xf]
        %v2169 = vunpack.c.l.b16 %v2137
        %v2170 = vunpack.c.l.b16 %v2138
        %v2171 = vunpack.c.l.b16 %v2139
        %v2172 = vunpack.c.l.b16 %v2140
        %v2173 = vunpack.c.l.b16 %v2141
        %v2174 = vunpack.c.l.b16 %v2142
        %v2175 = vunpack.c.l.b16 %v2143
        %v2176 = vunpack.c.l.b16 %v2144
        %v2177 = vunpack.c.l.b16 %v2145
        %v2178 = vunpack.c.l.b16 %v2146
        %v2179 = vunpack.c.l.b16 %v2147
        %v2180 = vunpack.c.l.b16 %v2148
        %v2181 = vunpack.c.l.b16 %v2149
        %v2182 = vunpack.c.l.b16 %v2150
        %v2183 = vunpack.c.l.b16 %v2151
        %v2184 = vunpack.c.l.b16 %v2152
        %v2185 = vpack.c.b16 %v2170, %v2169
        %v2186 = vpack.c.b16 %v2172, %v2171
        %v2187 = vpack.c.b16 %v2174, %v2173
        %v2188 = vpack.c.b16 %v2176, %v2175
        %v2189 = vpack.c.b16 %v2178, %v2177
        %v2190 = vpack.c.b16 %v2180, %v2179
        %v2191 = vpack.c.b16 %v2182, %v2181
        %v2192 = vpack.c.b16 %v2184, %v2183
        %2201 = vmatprep.subr.bf16.mxu0 0
        %2202 = vmatpush1.bf16.msra.mxu0 %v2192
        %2203 = vmatprep.subr.bf16.mxu0 0
        %2204 = vmatpush1.bf16.msra.mxu0 %v2191
        %2205 = vmatprep.subr.bf16.mxu0 0
        %2206 = vmatpush1.bf16.msra.mxu0 %v2190
        %2207 = vmatprep.subr.bf16.mxu0 0
        %2208 = vmatpush1.bf16.msra.mxu0 %v2189
        %2209 = vmatprep.subr.bf16.mxu0 0
        %2210 = vmatpush1.bf16.msra.mxu0 %v2188
        %2211 = vmatprep.subr.bf16.mxu0 0
        %2212 = vmatpush1.bf16.msra.mxu0 %v2187
        %2213 = vmatprep.subr.bf16.mxu0 0
        %2214 = vmatpush1.bf16.msra.mxu0 %v2186
        %2215 = vmatprep.subr.bf16.mxu0 0
        %2216 = vmatpush1.bf16.msra.mxu0 %v2185
        %2217 = vmatprep.subr.bf16.mxu0 0
        %2218 = vmatpush2.bf16.msra.mxu0 0
        %2219 = vmatprep.subr.bf16.mxu0 0
        %2220 = vmatpush2.bf16.msra.mxu0 0
        %2221 = vmatprep.subr.bf16.mxu0 0
        %2222 = vmatpush2.bf16.msra.mxu0 0
        %2223 = vmatprep.subr.bf16.mxu0 0
        %2224 = vmatpush2.bf16.msra.mxu0 0
        %2225 = vmatprep.subr.bf16.mxu0 0
        %2226 = vmatpush2.bf16.msra.mxu0 0
        %2227 = vmatprep.subr.bf16.mxu0 0
        %2228 = vmatpush2.bf16.msra.mxu0 0
        %2229 = vmatprep.subr.bf16.mxu0 0
        %2230 = vmatpush2.bf16.msra.mxu0 0
        %2231 = vmatprep.subr.bf16.mxu0 0
        %2232 = vmatpush2.bf16.msra.mxu0 0
        %2233 = vmatprep.mubr.bf16.mxu0 0
        %2234 = vmatmul.mubr.bf16.gmra.mxu0 %v2135
        %v2235 = vpop.f32.mrf.mxu0
        %v2236 = vadd.f32 0.0, %v2235
        %v2237 = vpop.f32.mrf.mxu0
        %v2238 = vpop.f32.mrf.mxu0
        %v2239 = vpop.f32.mrf.mxu0
        %2240 = vdwg.mxu0
        %v2241 = vadd.f32 %v2134, %v2236
        %2242 = vst.msk [vmem:[#allocation4] sm:$0xff] %vm1088, %v2241
        %v2243 = vld [vmem:[#allocation4] sm:$0xff]
        %v2244 = vadd.f32 %v1087, %v2243
        %v2245 = vld [vmem:[%s7] sm:$0x1]
        %v2247 = vlaneseq
        %v2248 = vshrl.u32 %v2247, 7
        %v2249 = vsub.s32 0, %v2248
        %v2250 = vrot.slane %v2245, %v2249
        %v2252 = vadd.f32 %v2244, %v2250
        %v2253 = vld [vmem:[%s8] sm:$0x1]
        %v2254 = vld [vmem:[%s9] sm:$0x1]
        %v2255 = vsel %vm1088, %v2252, 0.0
        %2256 = vadd.xlane.f32.xlu0 %v2255
        %v2257 = vpop.xlane.xlu0 %2256
        %v2258 = vmul.f32 %v2257, %v1092
        %v2259 = vsub.f32 %v2252, %v2258
        %v2260 = vmul.f32 %v2259, %v2259
        %v2261 = vsel %vm1088, %v2260, 0.0
        %2262 = vadd.xlane.f32.xlu0 %v2261
        %v2263 = vpop.xlane.xlu0 %2262
        %v2264 = vmul.f32 %v2263, %v1092
        %v2265 = vadd.f32 %v2264, 1e-05
        %v2266 = vrsqrt.pop %v2265
        %v2267 = vmul.f32 %v2259, %v2266
        %v2269 = vlaneseq
        %v2270 = vshrl.u32 %v2269, 7
        %v2271 = vsub.s32 0, %v2270
        %v2272 = vrot.slane %v2253, %v2271
        %v2274 = vmul.f32 %v2267, %v2272
        %v2276 = vlaneseq
        %v2277 = vshrl.u32 %v2276, 7
        %v2278 = vsub.s32 0, %v2277
        %v2279 = vrot.slane %v2254, %v2278
        %v2281 = vadd.f32 %v2274, %v2279
        %v2282 = vpack.c.bf16 %v2281, %v2281
        %v2283 = vld [vmem:[%s10] sm:$0xf]
        %v2284 = vld [vmem:[%s10 + $0x4] sm:$0xf]
        %v2285 = vld [vmem:[%s10 + $0x8] sm:$0xf]
        %v2286 = vld [vmem:[%s10 + $0xc] sm:$0xf]
        %v2287 = vld [vmem:[%s11] sm:$0x1]
        %v2289 = vlaneseq
        %v2290 = vshrl.u32 %v2289, 7
        %v2291 = vsub.s32 0, %v2290
        %v2292 = vrot.slane %v2287, %v2291
        %v2298 = vunpack.c.l.b16 %v2283
        %v2299 = vunpack.c.l.b16 %v2284
        %v2300 = vunpack.c.l.b16 %v2285
        %v2301 = vunpack.c.l.b16 %v2286
        %v2302 = vpack.c.b16 %v2299, %v2298
        %v2303 = vpack.c.b16 %v2301, %v2300
        %v2307 = vsel %vm1088, %v2282, 0
        %2309 = vmatprep.subr.bf16.mxu0 0
        %2310 = vmatpush1.bf16.msra.mxu0 0
        %2311 = vmatprep.subr.bf16.mxu0 0
        %2312 = vmatpush1.bf16.msra.mxu0 0
        %2313 = vmatprep.subr.bf16.mxu0 0
        %2314 = vmatpush1.bf16.msra.mxu0 0
        %2315 = vmatprep.subr.bf16.mxu0 0
        %2316 = vmatpush1.bf16.msra.mxu0 0
        %2317 = vmatprep.subr.bf16.mxu0 0
        %2318 = vmatpush1.bf16.msra.mxu0 0
        %2319 = vmatprep.subr.bf16.mxu0 0
        %2320 = vmatpush1.bf16.msra.mxu0 0
        %2321 = vmatprep.subr.bf16.mxu0 0
        %2322 = vmatpush1.bf16.msra.mxu0 %v2303
        %2323 = vmatprep.subr.bf16.mxu0 0
        %2324 = vmatpush1.bf16.msra.mxu0 %v2302
        %2325 = vmatprep.subr.bf16.mxu0 0
        %2326 = vmatpush2.bf16.msra.mxu0 0
        %2327 = vmatprep.subr.bf16.mxu0 0
        %2328 = vmatpush2.bf16.msra.mxu0 0
        %2329 = vmatprep.subr.bf16.mxu0 0
        %2330 = vmatpush2.bf16.msra.mxu0 0
        %2331 = vmatprep.subr.bf16.mxu0 0
        %2332 = vmatpush2.bf16.msra.mxu0 0
        %2333 = vmatprep.subr.bf16.mxu0 0
        %2334 = vmatpush2.bf16.msra.mxu0 0
        %2335 = vmatprep.subr.bf16.mxu0 0
        %2336 = vmatpush2.bf16.msra.mxu0 0
        %2337 = vmatprep.subr.bf16.mxu0 0
        %2338 = vmatpush2.bf16.msra.mxu0 0
        %2339 = vmatprep.subr.bf16.mxu0 0
        %2340 = vmatpush2.bf16.msra.mxu0 0
        %2341 = vmatprep.mubr.bf16.mxu0 0
        %2342 = vmatmul.mubr.bf16.gmra.mxu0 %v2307
        %v2343 = vpop.f32.mrf.mxu0
        %v2344 = vadd.f32 %v2292, %v2343
        %v2345 = vpop.f32.mrf.mxu0
        %v2346 = vpop.f32.mrf.mxu0
        %v2347 = vpop.f32.mrf.mxu0
        %2348 = vdwg.mxu0
        %v2349 = vmul.f32 %v2344, 0.5
        %v2350 = vrcp.pop 1.4142135
        %v2351 = vmul.f32 %v2344, %v2350
        %v2352 = verf.f32.pop %v2351
        %v2353 = vadd.f32 %v2352, 1.0
        %v2354 = vmul.f32 %v2349, %v2353
        %v2355 = vpack.c.bf16 %v2354, %v2354
        %v2356 = vld [vmem:[%s12] sm:$0xf]
        %v2357 = vld [vmem:[%s12 + $0x4] sm:$0xf]
        %v2358 = vld [vmem:[%s12 + $0x8] sm:$0xf]
        %v2359 = vld [vmem:[%s12 + $0xc] sm:$0xf]
        %v2360 = vld [vmem:[%s12 + $0x10] sm:$0xf]
        %v2361 = vld [vmem:[%s12 + $0x14] sm:$0xf]
        %v2362 = vld [vmem:[%s12 + $0x18] sm:$0xf]
        %v2363 = vld [vmem:[%s12 + $0x1c] sm:$0xf]
        %v2364 = vld [vmem:[%s12 + $0x20] sm:$0xf]
        %v2365 = vld [vmem:[%s12 + $0x24] sm:$0xf]
        %v2366 = vld [vmem:[%s12 + $0x28] sm:$0xf]
        %v2367 = vld [vmem:[%s12 + $0x2c] sm:$0xf]
        %v2368 = vld [vmem:[%s12 + $0x30] sm:$0xf]
        %v2369 = vld [vmem:[%s12 + $0x34] sm:$0xf]
        %v2370 = vld [vmem:[%s12 + $0x38] sm:$0xf]
        %v2371 = vld [vmem:[%s12 + $0x3c] sm:$0xf]
        %v2372 = vld [vmem:[%s13] sm:$0x1]
        %v2374 = vlaneseq
        %v2375 = vshrl.u32 %v2374, 7
        %v2376 = vsub.s32 0, %v2375
        %v2377 = vrot.slane %v2372, %v2376
        %v2395 = vunpack.c.l.b16 %v2356
        %v2396 = vunpack.c.l.b16 %v2357
        %v2397 = vunpack.c.l.b16 %v2358
        %v2398 = vunpack.c.l.b16 %v2359
        %v2399 = vunpack.c.l.b16 %v2360
        %v2400 = vunpack.c.l.b16 %v2361
        %v2401 = vunpack.c.l.b16 %v2362
        %v2402 = vunpack.c.l.b16 %v2363
        %v2403 = vunpack.c.l.b16 %v2364
        %v2404 = vunpack.c.l.b16 %v2365
        %v2405 = vunpack.c.l.b16 %v2366
        %v2406 = vunpack.c.l.b16 %v2367
        %v2407 = vunpack.c.l.b16 %v2368
        %v2408 = vunpack.c.l.b16 %v2369
        %v2409 = vunpack.c.l.b16 %v2370
        %v2410 = vunpack.c.l.b16 %v2371
        %v2411 = vpack.c.b16 %v2396, %v2395
        %v2412 = vpack.c.b16 %v2398, %v2397
        %v2413 = vpack.c.b16 %v2400, %v2399
        %v2414 = vpack.c.b16 %v2402, %v2401
        %v2415 = vpack.c.b16 %v2404, %v2403
        %v2416 = vpack.c.b16 %v2406, %v2405
        %v2417 = vpack.c.b16 %v2408, %v2407
        %v2418 = vpack.c.b16 %v2410, %v2409
        %2427 = vmatprep.subr.bf16.mxu0 0
        %2428 = vmatpush1.bf16.msra.mxu0 %v2418
        %2429 = vmatprep.subr.bf16.mxu0 0
        %2430 = vmatpush1.bf16.msra.mxu0 %v2417
        %2431 = vmatprep.subr.bf16.mxu0 0
        %2432 = vmatpush1.bf16.msra.mxu0 %v2416
        %2433 = vmatprep.subr.bf16.mxu0 0
        %2434 = vmatpush1.bf16.msra.mxu0 %v2415
        %2435 = vmatprep.subr.bf16.mxu0 0
        %2436 = vmatpush1.bf16.msra.mxu0 %v2414
        %2437 = vmatprep.subr.bf16.mxu0 0
        %2438 = vmatpush1.bf16.msra.mxu0 %v2413
        %2439 = vmatprep.subr.bf16.mxu0 0
        %2440 = vmatpush1.bf16.msra.mxu0 %v2412
        %2441 = vmatprep.subr.bf16.mxu0 0
        %2442 = vmatpush1.bf16.msra.mxu0 %v2411
        %2443 = vmatprep.subr.bf16.mxu0 0
        %2444 = vmatpush2.bf16.msra.mxu0 0
        %2445 = vmatprep.subr.bf16.mxu0 0
        %2446 = vmatpush2.bf16.msra.mxu0 0
        %2447 = vmatprep.subr.bf16.mxu0 0
        %2448 = vmatpush2.bf16.msra.mxu0 0
        %2449 = vmatprep.subr.bf16.mxu0 0
        %2450 = vmatpush2.bf16.msra.mxu0 0
        %2451 = vmatprep.subr.bf16.mxu0 0
        %2452 = vmatpush2.bf16.msra.mxu0 0
        %2453 = vmatprep.subr.bf16.mxu0 0
        %2454 = vmatpush2.bf16.msra.mxu0 0
        %2455 = vmatprep.subr.bf16.mxu0 0
        %2456 = vmatpush2.bf16.msra.mxu0 0
        %2457 = vmatprep.subr.bf16.mxu0 0
        %2458 = vmatpush2.bf16.msra.mxu0 0
        %2459 = vmatprep.mubr.bf16.mxu0 0
        %2460 = vmatmul.mubr.bf16.gmra.mxu0 %v2355
        %v2461 = vpop.f32.mrf.mxu0
        %v2462 = vadd.f32 %v2377, %v2461
        %v2463 = vpop.f32.mrf.mxu0
        %v2464 = vpop.f32.mrf.mxu0
        %v2465 = vpop.f32.mrf.mxu0
        %2466 = vdwg.mxu0
        %v2467 = vadd.f32 %v2252, %v2462
        %2468 = vst.msk [vmem:[%s474] sm:$0xff] %vm1088, %v2467
        %s2469 = sand.u32 %s349, 1
        %s2470 = scalar_lea.sflag [#allocation6], %s2469
        %s2471 = sand.u32 %s349, 1
        %s2472 = smul.addr %s2471, 8
        %s2473 = scalar_lea.vmem [#allocation5], %s2472
        // Predicated region
        $region81: #{tpu_custom_call.1} parent=75 // pred_check
          %p2474 = pneg %p359
        $region82: #{tpu_custom_call.1} parent=75 // pred_check_branch
          %2476 = sbr.rel (%p2474) target = $region84
        $region83: #{tpu_custom_call.1} parent=75 // pred_region
          %s2478 = ssub.s32 128, 128
          %2479 = vsyncadd %s2470, %s2478
          %s2480 = smul.addr %s32, 2
          %s2481 = sadd.s32 %s33, %s2480
          %s2482 = smul.addr %s2481, 128
          %s2483 = scalar_lea.hbm %s14, %s2482
          %s2485 = sshll.u32 %s2473, 4
          %s2486 = int_to_ptr.vmem [resolvable:$true] %s2485
          %2488 = dma.vmem_to_hbm [thread:$0]  %s2486, 128, %s2483, %s2470
        $region84: #{tpu_custom_call.1} parent=75 // pred_fallthru
          _
      $region76: #{tpu_custom_call.1} parent=5 // pred_fallthru
        _
      %p2489 = scmp.le.s32.totalorder 2, %s23
      // Predicated region
      $region85: #{tpu_custom_call.1} parent=5 // pred_check
        %p2490 = pneg %p2489
      $region86: #{tpu_custom_call.1} parent=5 // pred_check_branch
        %2492 = sbr.rel (%p2490) target = $region88
      $region87: #{tpu_custom_call.1} parent=5 // pred_region
        %s2493 = ssub.s32 %s23, 2
        // Predicated region
        $region89: #{tpu_custom_call.1} parent=87 // pred_check
          %p2494 = pneg %p365
        $region90: #{tpu_custom_call.1} parent=87 // pred_check_branch
          %2496 = sbr.rel (%p2494) target = $region92
        $region91: #{tpu_custom_call.1} parent=87 // pred_region
          %s2497 = sand.u32 %s350, 1
          %s2498 = scalar_lea.sflag [#allocation6], %s2497
          %s2499 = sand.u32 %s350, 1
          %s2500 = smul.addr %s2499, 8
          %s2501 = scalar_lea.vmem [#allocation5], %s2500
          %2502 = dma.done %s2498, 128
        $region92: #{tpu_custom_call.1} parent=87 // pred_fallthru
          _
      $region88: #{tpu_custom_call.1} parent=5 // pred_fallthru
        _
    $region6: #{tpu_custom_call.1} parent=1 // loop_footer
      %s27 = sadd.s32 1, %s23
    $region7: #{tpu_custom_call.1} parent=1 // loop_footer_branch
      %22 = sbr.rel target = $region3
    $region8: #{tpu_custom_call.1} parent=1 // loop_exit
      _
    %2503 = vsyncpa [#allocation6], 1
    %s2504 = scalar_lea.sflag [#allocation6], 1
    %2505 = vsyncpa %s2504, 1

</llo_original>
